<compile_context>
chip_gen: v5e
topology: v5e:2x2
jax: 0.10.0
libtpu: 0.0.40
codegen_flags: <defaults>
</compile_context>

<pallas_src>
import functools

import jax
import jax.numpy as jnp
from jax import lax
from jax.experimental import pallas as pl
from jax.experimental.pallas import tpu as pltpu


# ----------------------------- Pallas kernel --------------------------------

def _gatv2_kernel(xl_ref, xlt_ref, xr_ref, e0_ref, mask_ref,
                  w1_ref, b1_ref, w2we_ref, b2we_ref,
                  attblk_ref, bias_ref, out_ref, *, heads, out_per_head):
    H, C = heads, out_per_head
    HC = H * C
    N = xl_ref.shape[0]          # all source nodes
    TI = xr_ref.shape[0]         # target-node tile handled by this grid step
    f32 = jnp.float32
    bf16 = jnp.bfloat16

    # ---- fused edge MLP + lin_edge:  ep = relu(e0 @ w1 + b1) @ (w2 @ we) + b2 @ we ----
    # (non-edge rows produce relu(b1)-based values; they are masked out of the softmax and
    #  excluded from the 'mean' fill by mask_norm, so this is wasted work, not a numerics bug.)
    h1 = jnp.dot(e0_ref[...], w1_ref[...], preferred_element_type=f32) + b1_ref[...]   # [TI*N, ED]
    h1 = jnp.maximum(h1, 0.0)
    ep = jnp.dot(h1.astype(bf16), w2we_ref[...], preferred_element_type=f32) + b2we_ref[...]
    ep3 = ep.reshape(TI, N, HC)                                                         # f32
    ep_bf = ep3.astype(bf16)

    # ---- masks derived in-kernel ----
    mask = mask_ref[...].astype(f32)                                  # [TI, N], 1.0 where edge j->i
    cnt = jnp.sum(mask, axis=-1, keepdims=True)                       # [TI, 1]
    mask_norm = (mask * pl.reciprocal(jnp.maximum(cnt, 1.0), approx=True)).astype(bf16)

    row_g = pl.program_id(0) * TI + lax.broadcasted_iota(jnp.int32, (TI, N), 0)
    col = lax.broadcasted_iota(jnp.int32, (TI, N), 1)
    eye_t = row_g == col                                              # self-loop positions
    maskf = jnp.maximum(mask, eye_t.astype(f32))                      # real edges + self loops

    # ---- 'mean' self-loop edge attr: batched MXU contraction [TI,1,N] @ [TI,N,HC] ----
    loop_ep = lax.dot_general(mask_norm[:, None, :], ep_bf,
                              (((2,), (1,)), ((0,), (0,))),
                              preferred_element_type=f32)[:, 0, :]    # [TI, HC]

    # ---- scores for ALL heads: one leaky_relu, one bf16 MXU matmul against block-diag att ----
    xr = xr_ref[...].astype(f32)                                      # [TI, HC]
    xl = xl_ref[...]                                                  # [N, HC] bf16 (agg values)
    t = xr[:, None, :] + xl.astype(f32)[None, :, :] + ep3             # [TI, N, HC]
    t = jnp.where(t > 0, t, 0.2 * t)
    s = jnp.dot(t.astype(bf16).reshape(TI * N, HC), attblk_ref[...],
                preferred_element_type=f32)                           # [TI*N, H]
    s_t = jnp.transpose(s.reshape(TI, N, H), (0, 2, 1))               # [TI, H, N]  (j on lanes)

    # ---- diagonal (self-loop) score on a [TI, HC] side path, spliced into its column ----
    td = xr + xlt_ref[...].astype(f32) + loop_ep                      # [TI, HC]
    td = jnp.where(td > 0, td, 0.2 * td)
    sd = jnp.dot(td.astype(bf16), attblk_ref[...], preferred_element_type=f32)   # [TI, H]
    s_t = jnp.where(eye_t[:, None, :], sd[:, :, None], s_t)

    # ---- masked softmax over neighbours (lane axis), all heads in one pass ----
    mfb = maskf[:, None, :]                                           # [TI, 1, N]
    s_t = jnp.where(mfb > 0, s_t, -1e30)
    m = jnp.max(s_t, axis=-1, keepdims=True)                          # [TI, H, 1]
    p = jnp.exp(s_t - m) * mfb
    denom = jnp.sum(p, axis=-1, keepdims=True)
    alpha = (p * pl.reciprocal(denom, approx=True)).astype(bf16)      # [TI, H, N]

    # ---- aggregation: head-batched MXU contraction over neighbours (K = N per head) ----
    outs = []
    for h in range(H):
        a_h = alpha[:, h, :]                                          # [TI, N] bf16
        v_h = xl[:, h * C:(h + 1) * C]                                # [N, C]  bf16
        outs.append(jnp.dot(a_h, v_h, preferred_element_type=f32))    # [TI, C]
    out = jnp.concatenate(outs, axis=-1) + bias_ref[...]              # [TI, HC]
    out_ref[...] = out


# ------------------------------- wrapper -------------------------------------

def gatv2_conv_layer(x, edge_index, edge_attr, params, *, heads, out_per_head, tile_i=None):
    """x: [N, F_in] f32; edge_index: [2, E] i32; edge_attr: [E, 1+edge_dim] f32."""
    N, IN = x.shape
    ED = params["emb"].shape[1]
    H, C = heads, out_per_head
    HC = H * C
    bf16 = jnp.bfloat16

    src, dst = edge_index[0], edge_index[1]

    # ---- plain-JAX glue: embedding lookup + densification (scatter), built directly in bf16 ----
    etype = edge_attr[:, 0].astype(jnp.int32)
    e0_edges = (edge_attr[:, 1:].astype(jnp.float32)
                + jnp.take(params["emb"], etype, axis=0)).astype(bf16)
    e0_dense = jnp.zeros((N, N, ED), bf16).at[dst, src].set(e0_edges)
    mask = jnp.zeros((N, N), bf16).at[dst, src].set(1.0)
    mask = mask * (1.0 - jnp.eye(N, dtype=bf16))                 # remove_self_loops
    e0_flat = e0_dense.reshape(N * N, ED)

    # ---- hoisted node projections (one-time; no per-grid-step recompute) ----
    xl = (x @ params["wl"] + params["bl"]).astype(bf16)          # [N, HC]
    xr = (x @ params["wr"] + params["br"]).astype(bf16)          # [N, HC]

    # ---- wrapper-side algebraic fusion / repacking (one-time) ----
    w2we = (params["w2"] @ params["we"]).astype(bf16)            # fuse lin_edge into MLP layer 2
    b2we = params["b2"] @ params["we"]                           # [1, HC] f32
    row_h = (jnp.arange(HC) // C)[:, None]
    col_h = jnp.arange(H)[None, :]
    att_blk = jnp.where(row_h == col_h,
                        params["att"].reshape(HC)[:, None], 0.0).astype(bf16)   # [HC, H]

    # target-node tile (16 keeps bf16-blocked inputs sublane-aligned and gives grid >= 2
    # so v7x's two TensorCores both get work); fall back to full N.
    if tile_i is None:
        tile_i = 16 if N % 16 == 0 else N
    TI = tile_i
    assert N % TI == 0
    grid = (N // TI,)

    inputs = (
        xl,                               # full x_l  -> attention term x_l[j] + aggregation values
        xl,                               # tiled x_l -> diagonal (self-loop) term
        xr,                               # tiled x_r -> target term
        e0_flat,
        mask,
        params["w1"].astype(bf16), params["b1"],
        w2we, b2we,
        att_blk, params["bias"],
    )

    in_specs = [
        pl.BlockSpec((N, HC), lambda i: (0, 0)),           # x_l (full, resident)
        pl.BlockSpec((TI, HC), lambda i: (i, 0)),          # x_l (target tile, diagonal term)
        pl.BlockSpec((TI, HC), lambda i: (i, 0)),          # x_r (target tile)
        pl.BlockSpec((TI * N, ED), lambda i: (i, 0)),      # densified edge feats for tile targets
        pl.BlockSpec((TI, N), lambda i: (i, 0)),           # adjacency mask rows
        pl.BlockSpec((ED, ED), lambda i: (0, 0)),          # w1
        pl.BlockSpec((1, ED), lambda i: (0, 0)),           # b1
        pl.BlockSpec((ED, HC), lambda i: (0, 0)),          # w2 @ we (fused)
        pl.BlockSpec((1, HC), lambda i: (0, 0)),           # b2 @ we (fused)
        pl.BlockSpec((HC, H), lambda i: (0, 0)),           # block-diagonal att
        pl.BlockSpec((1, HC), lambda i: (0, 0)),           # output bias
    ]
    out_specs = pl.BlockSpec((TI, HC), lambda i: (i, 0))

    kernel = functools.partial(_gatv2_kernel, heads=H, out_per_head=C)
    return pl.pallas_call(
        kernel,
        out_shape=jax.ShapeDtypeStruct((N, HC), jnp.float32),
        grid=grid,
        in_specs=in_specs,
        out_specs=out_specs,
        compiler_params=pltpu.CompilerParams(
            dimension_semantics=("parallel",),
            vmem_limit_bytes=48 * 1024 * 1024),
    )(*inputs)


# ----------------------- pure-JAX reference (sanity) -------------------------

def _reference(x, edge_index, edge_attr, params, *, heads, out_per_head):
    N = x.shape[0]
    H, C = heads, out_per_head
    src, dst = edge_index[0], edge_index[1]

    etype = edge_attr[:, 0].astype(jnp.int32)
    e0_edges = edge_attr[:, 1:] + jnp.take(params["emb"], etype, axis=0)
    ED = params["emb"].shape[1]
    e0_dense = jnp.zeros((N, N, ED)).at[dst, src].set(e0_edges)
    mask = jnp.zeros((N, N)).at[dst, src].set(1.0) * (1.0 - jnp.eye(N))
    maskf = jnp.maximum(mask, jnp.eye(N))

    xl = x @ params["wl"] + params["bl"]
    xr = x @ params["wr"] + params["br"]
    h1 = jnp.maximum(e0_dense.reshape(N * N, ED) @ params["w1"] + params["b1"], 0.0)
    enh = h1 @ params["w2"] + params["b2"]
    ep3 = (enh @ params["we"]).reshape(N, N, H * C)
    cnt = jnp.sum(mask, axis=-1, keepdims=True)
    loop_ep = jnp.sum(mask[:, :, None] * ep3, axis=1) / jnp.maximum(cnt, 1.0)

    outs = []
    for h in range(H):
        lo, hi = h * C, (h + 1) * C
        ep_full = jnp.where(jnp.eye(N)[:, :, None] > 0, loop_ep[:, None, lo:hi], ep3[:, :, lo:hi])
        t = xr[:, None, lo:hi] + xl[None, :, lo:hi] + ep_full
        t = jnp.where(t > 0, t, 0.2 * t)
        s = jnp.sum(t * params["att"][h][None, None, :], axis=-1)
        s = jnp.where(maskf > 0, s, -1e30)
        p = jnp.exp(s - jnp.max(s, axis=-1, keepdims=True)) * maskf
        alpha = p / jnp.sum(p, axis=-1, keepdims=True)
        outs.append(alpha @ xl[:, lo:hi])
    return jnp.concatenate(outs, axis=-1) + params["bias"]


# ---------------------------------- main --------------------------------------

if __name__ == "__main__":
    N = 32            # num_nodes (two i-tiles of 16 -> grid=(2,))
    IN = 16           # in_channels
    C = 8             # out_channels per head
    H = 4             # heads
    ED = 8            # edge_dim
    HC = H * C

    key = jax.random.PRNGKey(0)
    keys = jax.random.split(key, 16)

    def init(k, shape, scale=0.2):
        return (scale * jax.random.normal(k, shape)).astype(jnp.float32)

    params = {
        "emb":  init(keys[0], (2, ED)),          # edge_type_encoder
        "w1":   init(keys[1], (ED, ED)),         # edge_encoder Linear 1
        "b1":   init(keys[2], (1, ED), 0.05),
        "w2":   init(keys[3], (ED, ED)),         # edge_encoder Linear 2
        "b2":   init(keys[4], (1, ED), 0.05),
        "we":   init(keys[5], (ED, HC)),         # GATv2 lin_edge (no bias)
        "wl":   init(keys[6], (IN, HC)),         # GATv2 lin_l
        "bl":   init(keys[7], (1, HC), 0.05),
        "wr":   init(keys[8], (IN, HC)),         # GATv2 lin_r
        "br":   init(keys[9], (1, HC), 0.05),
        "att":  init(keys[10], (H, C)),          # GATv2 attention vector
        "bias": init(keys[11], (1, HC), 0.05),   # GATv2 output bias
    }

    # deterministic node features
    x = init(keys[12], (N, IN), 1.0)

    # deterministic simple graph (no self loops, unique edges)
    pairs = [(i, j) for i in range(N) for j in range(N) if i != j][::5]
    E = len(pairs)
    src = jnp.array([p[0] for p in pairs], dtype=jnp.int32)
    dst = jnp.array([p[1] for p in pairs], dtype=jnp.int32)
    edge_index = jnp.stack([src, dst], axis=0)                           # [2, E]

    # edge_attr: column 0 = edge type in {0,1}, columns 1..ED = continuous features
    etype = (jnp.arange(E) % 2).astype(jnp.float32)[:, None]
    efeat = init(keys[13], (E, ED), 1.0)
    edge_attr = jnp.concatenate([etype, efeat], axis=1)                  # [E, 1+ED]

    out = gatv2_conv_layer(x, edge_index, edge_attr, params,
                           heads=H, out_per_head=C)
    out = jax.block_until_ready(out)

    ref = _reference(x, edge_index, edge_attr, params, heads=H, out_per_head=C)
    assert out.shape == (N, HC)
    # bf16 MXU operands + approx reciprocals vs. pure-f32 reference -> loose tolerance.
    assert jnp.max(jnp.abs(out - ref)) < 1e-1

    print("KERNEL_OK")
</pallas_src>

<mosaic_0001>
module attributes {stable_mosaic.version = 11 : i64} {
  func.func @_gatv2_kernel(%arg0: i32, %arg1: memref<32x32xbf16, #tpu.memory_space<vmem>>, %arg2: memref<16x32xbf16, #tpu.memory_space<vmem>>, %arg3: memref<16x32xbf16, #tpu.memory_space<vmem>>, %arg4: memref<512x8xbf16, #tpu.memory_space<vmem>>, %arg5: memref<16x32xbf16, #tpu.memory_space<vmem>>, %arg6: memref<8x8xbf16, #tpu.memory_space<vmem>>, %arg7: memref<1x8xf32, #tpu.memory_space<vmem>>, %arg8: memref<8x32xbf16, #tpu.memory_space<vmem>>, %arg9: memref<1x32xf32, #tpu.memory_space<vmem>>, %arg10: memref<32x4xbf16, #tpu.memory_space<vmem>>, %arg11: memref<1x32xf32, #tpu.memory_space<vmem>>, %arg12: memref<16x32xf32, #tpu.memory_space<vmem>>) attributes {dimension_semantics = [#tpu.dimension_semantics<parallel>], iteration_bounds = array<i64: 2>, scalar_prefetch = 0 : i64, scratch_operands = 0 : i64, tpu.core_type = #tpu.core_type<tc>, window_params = [{pipeline_mode = #tpu.pipeline_mode<synchronous>, transform_indices = @transform_0, window_bounds = array<i64: 32, 32>}, {transform_indices = @transform_1, window_bounds = array<i64: 16, 32>}, {transform_indices = @transform_2, window_bounds = array<i64: 16, 32>}, {transform_indices = @transform_3, window_bounds = array<i64: 512, 8>}, {transform_indices = @transform_4, window_bounds = array<i64: 16, 32>}, {pipeline_mode = #tpu.pipeline_mode<synchronous>, transform_indices = @transform_5, window_bounds = array<i64: 8, 8>}, {pipeline_mode = #tpu.pipeline_mode<synchronous>, transform_indices = @transform_6, window_bounds = array<i64: 1, 8>}, {pipeline_mode = #tpu.pipeline_mode<synchronous>, transform_indices = @transform_7, window_bounds = array<i64: 8, 32>}, {pipeline_mode = #tpu.pipeline_mode<synchronous>, transform_indices = @transform_8, window_bounds = array<i64: 1, 32>}, {pipeline_mode = #tpu.pipeline_mode<synchronous>, transform_indices = @transform_9, window_bounds = array<i64: 32, 4>}, {pipeline_mode = #tpu.pipeline_mode<synchronous>, transform_indices = @transform_10, window_bounds = array<i64: 1, 32>}, {transform_indices = @transform_11, window_bounds = array<i64: 16, 32>}]} {
    %c0 = arith.constant 0 : index
    %c0_0 = arith.constant 0 : index
    %0 = vector.load %arg4[%c0, %c0_0] : memref<512x8xbf16, #tpu.memory_space<vmem>>, vector<512x8xbf16>
    %c0_1 = arith.constant 0 : index
    %c0_2 = arith.constant 0 : index
    %1 = vector.load %arg6[%c0_1, %c0_2] : memref<8x8xbf16, #tpu.memory_space<vmem>>, vector<8x8xbf16>
    %cst = arith.constant dense<0.000000e+00> : vector<512x8xf32>
    %2 = tpu.matmul %0, %1, %cst {dimension_numbers = #tpu.dot_dimension_numbers<[1], [0], [0], [1], [0, 0, 1, 1], [], []>} : vector<512x8xbf16>, vector<8x8xbf16>, vector<512x8xf32> -> vector<512x8xf32>
    %c0_3 = arith.constant 0 : index
    %c0_4 = arith.constant 0 : index
    %3 = vector.load %arg7[%c0_3, %c0_4] : memref<1x8xf32, #tpu.memory_space<vmem>>, vector<1x8xf32>
    %4 = vector.broadcast %3 : vector<1x8xf32> to vector<512x8xf32>
    %5 = arith.addf %2, %4 : vector<512x8xf32>
    %cst_5 = arith.constant 0.000000e+00 : f32
    %6 = vector.broadcast %cst_5 : f32 to vector<512x8xf32>
    %7 = arith.maximumf %5, %6 : vector<512x8xf32>
    %8 = arith.truncf %7 : vector<512x8xf32> to vector<512x8xbf16>
    %c0_6 = arith.constant 0 : index
    %c0_7 = arith.constant 0 : index
    %9 = vector.load %arg8[%c0_6, %c0_7] : memref<8x32xbf16, #tpu.memory_space<vmem>>, vector<8x32xbf16>
    %cst_8 = arith.constant dense<0.000000e+00> : vector<512x32xf32>
    %10 = tpu.matmul %8, %9, %cst_8 {dimension_numbers = #tpu.dot_dimension_numbers<[1], [0], [0], [1], [0, 0, 1, 1], [], []>} : vector<512x8xbf16>, vector<8x32xbf16>, vector<512x32xf32> -> vector<512x32xf32>
    %c0_9 = arith.constant 0 : index
    %c0_10 = arith.constant 0 : index
    %11 = vector.load %arg9[%c0_9, %c0_10] : memref<1x32xf32, #tpu.memory_space<vmem>>, vector<1x32xf32>
    %12 = vector.broadcast %11 : vector<1x32xf32> to vector<512x32xf32>
    %13 = arith.addf %10, %12 : vector<512x32xf32>
    %14 = vector.shape_cast %13 : vector<512x32xf32> to vector<16x32x32xf32>
    %15 = arith.truncf %14 : vector<16x32x32xf32> to vector<16x32x32xbf16>
    %c0_11 = arith.constant 0 : index
    %c0_12 = arith.constant 0 : index
    %16 = vector.load %arg5[%c0_11, %c0_12] : memref<16x32xbf16, #tpu.memory_space<vmem>>, vector<16x32xbf16>
    %17 = arith.extf %16 : vector<16x32xbf16> to vector<16x32xf32>
    %cst_13 = arith.constant dense<0.000000e+00> : vector<16xf32>
    %18 = vector.multi_reduction <add>, %17, %cst_13 [1] : vector<16x32xf32> to vector<16xf32>
    %19 = vector.shape_cast %18 : vector<16xf32> to vector<16x1xf32>
    %cst_14 = arith.constant 1.000000e+00 : f32
    %20 = vector.broadcast %cst_14 : f32 to vector<16x1xf32>
    %21 = arith.maximumf %19, %20 : vector<16x1xf32>
    %22 = tpu.reciprocal %21 {approx = true} : vector<16x1xf32> -> vector<16x1xf32>
    %23 = vector.broadcast %22 : vector<16x1xf32> to vector<16x32xf32>
    %24 = arith.mulf %17, %23 : vector<16x32xf32>
    %25 = arith.truncf %24 : vector<16x32xf32> to vector<16x32xbf16>
    %c16_i32 = arith.constant 16 : i32
    %26 = arith.muli %arg0, %c16_i32 : i32
    %27 = tpu.iota {dimensions = array<i32: 0>} : vector<16x32xi32>
    %28 = vector.broadcast %26 : i32 to vector<16x32xi32>
    %29 = arith.addi %28, %27 : vector<16x32xi32>
    %30 = tpu.iota {dimensions = array<i32: 1>} : vector<16x32xi32>
    %31 = arith.cmpi eq, %29, %30 : vector<16x32xi32>
    %32 = arith.extui %31 : vector<16x32xi1> to vector<16x32xi32>
    %33 = arith.sitofp %32 : vector<16x32xi32> to vector<16x32xf32>
    %34 = arith.maximumf %17, %33 : vector<16x32xf32>
    %35 = vector.shape_cast %25 : vector<16x32xbf16> to vector<16x1x32xbf16>
    %cst_15 = arith.constant dense<0.000000e+00> : vector<16x1x32xf32>
    %36 = tpu.matmul %35, %15, %cst_15 {dimension_numbers = #tpu.dot_dimension_numbers<[2], [1], [1], [2], [0, 0, 0, 1, 1, 2], [0], [0]>} : vector<16x1x32xbf16>, vector<16x32x32xbf16>, vector<16x1x32xf32> -> vector<16x1x32xf32>
    %37 = vector.shape_cast %36 : vector<16x1x32xf32> to vector<16x32xf32>
    %c0_16 = arith.constant 0 : index
    %c0_17 = arith.constant 0 : index
    %38 = vector.load %arg3[%c0_16, %c0_17] : memref<16x32xbf16, #tpu.memory_space<vmem>>, vector<16x32xbf16>
    %39 = arith.extf %38 : vector<16x32xbf16> to vector<16x32xf32>
    %c0_18 = arith.constant 0 : index
    %c0_19 = arith.constant 0 : index
    %40 = vector.load %arg1[%c0_18, %c0_19] : memref<32x32xbf16, #tpu.memory_space<vmem>>, vector<32x32xbf16>
    %41 = vector.shape_cast %39 : vector<16x32xf32> to vector<16x1x32xf32>
    %42 = arith.extf %40 : vector<32x32xbf16> to vector<32x32xf32>
    %43 = vector.shape_cast %42 : vector<32x32xf32> to vector<1x32x32xf32>
    %44 = vector.broadcast %41 : vector<16x1x32xf32> to vector<16x32x32xf32>
    %45 = vector.broadcast %43 : vector<1x32x32xf32> to vector<16x32x32xf32>
    %46 = arith.addf %44, %45 : vector<16x32x32xf32>
    %47 = arith.addf %46, %14 : vector<16x32x32xf32>
    %cst_20 = arith.constant 0.000000e+00 : f32
    %48 = vector.broadcast %cst_20 : f32 to vector<16x32x32xf32>
    %49 = arith.cmpf ogt, %47, %48 : vector<16x32x32xf32>
    %cst_21 = arith.constant 2.000000e-01 : f32
    %50 = vector.broadcast %cst_21 : f32 to vector<16x32x32xf32>
    %51 = arith.mulf %50, %47 : vector<16x32x32xf32>
    %52 = arith.select %49, %47, %51 : vector<16x32x32xi1>, vector<16x32x32xf32>
    %53 = arith.truncf %52 : vector<16x32x32xf32> to vector<16x32x32xbf16>
    %54 = vector.shape_cast %53 : vector<16x32x32xbf16> to vector<512x32xbf16>
    %c0_22 = arith.constant 0 : index
    %c0_23 = arith.constant 0 : index
    %55 = vector.load %arg10[%c0_22, %c0_23] : memref<32x4xbf16, #tpu.memory_space<vmem>>, vector<32x4xbf16>
    %cst_24 = arith.constant dense<0.000000e+00> : vector<512x4xf32>
    %56 = tpu.matmul %54, %55, %cst_24 {dimension_numbers = #tpu.dot_dimension_numbers<[1], [0], [0], [1], [0, 0, 1, 1], [], []>} : vector<512x32xbf16>, vector<32x4xbf16>, vector<512x4xf32> -> vector<512x4xf32>
    %57 = vector.shape_cast %56 : vector<512x4xf32> to vector<16x32x4xf32>
    %58 = tpu.transpose %57, [0, 2, 1] : vector<16x32x4xf32> -> vector<16x4x32xf32>
    %c0_25 = arith.constant 0 : index
    %c0_26 = arith.constant 0 : index
    %59 = vector.load %arg2[%c0_25, %c0_26] : memref<16x32xbf16, #tpu.memory_space<vmem>>, vector<16x32xbf16>
    %60 = arith.extf %59 : vector<16x32xbf16> to vector<16x32xf32>
    %61 = arith.addf %39, %60 : vector<16x32xf32>
    %62 = arith.addf %61, %37 : vector<16x32xf32>
    %cst_27 = arith.constant 0.000000e+00 : f32
    %63 = vector.broadcast %cst_27 : f32 to vector<16x32xf32>
    %64 = arith.cmpf ogt, %62, %63 : vector<16x32xf32>
    %cst_28 = arith.constant 2.000000e-01 : f32
    %65 = vector.broadcast %cst_28 : f32 to vector<16x32xf32>
    %66 = arith.mulf %65, %62 : vector<16x32xf32>
    %67 = arith.select %64, %62, %66 : vector<16x32xi1>, vector<16x32xf32>
    %68 = arith.truncf %67 : vector<16x32xf32> to vector<16x32xbf16>
    %c0_29 = arith.constant 0 : index
    %c0_30 = arith.constant 0 : index
    %69 = vector.load %arg10[%c0_29, %c0_30] : memref<32x4xbf16, #tpu.memory_space<vmem>>, vector<32x4xbf16>
    %cst_31 = arith.constant dense<0.000000e+00> : vector<16x4xf32>
    %70 = tpu.matmul %68, %69, %cst_31 {dimension_numbers = #tpu.dot_dimension_numbers<[1], [0], [0], [1], [0, 0, 1, 1], [], []>} : vector<16x32xbf16>, vector<32x4xbf16>, vector<16x4xf32> -> vector<16x4xf32>
    %71 = vector.shape_cast %31 : vector<16x32xi1> to vector<16x1x32xi1>
    %72 = vector.shape_cast %70 : vector<16x4xf32> to vector<16x4x1xf32>
    %73 = vector.shape_cast %71 : vector<16x1x32xi1> to vector<16x1x32xi1>
    %74 = vector.broadcast %73 : vector<16x1x32xi1> to vector<16x4x32xi1>
    %75 = vector.shape_cast %72 : vector<16x4x1xf32> to vector<16x4x1xf32>
    %76 = vector.broadcast %75 : vector<16x4x1xf32> to vector<16x4x32xf32>
    %77 = arith.select %74, %76, %58 : vector<16x4x32xi1>, vector<16x4x32xf32>
    %78 = vector.shape_cast %34 : vector<16x32xf32> to vector<16x1x32xf32>
    %cst_32 = arith.constant 0.000000e+00 : f32
    %79 = vector.broadcast %cst_32 : f32 to vector<16x1x32xf32>
    %80 = arith.cmpf ogt, %78, %79 : vector<16x1x32xf32>
    %cst_33 = arith.constant -1.000000e+30 : f32
    %81 = vector.shape_cast %80 : vector<16x1x32xi1> to vector<16x1x32xi1>
    %82 = vector.broadcast %81 : vector<16x1x32xi1> to vector<16x4x32xi1>
    %83 = vector.broadcast %cst_33 : f32 to vector<16x4x32xf32>
    %84 = arith.select %82, %77, %83 : vector<16x4x32xi1>, vector<16x4x32xf32>
    %cst_34 = arith.constant dense<0xFF800000> : vector<16x4xf32>
    %85 = vector.multi_reduction <maximumf>, %84, %cst_34 [2] : vector<16x4x32xf32> to vector<16x4xf32>
    %86 = vector.shape_cast %85 : vector<16x4xf32> to vector<16x4x1xf32>
    %87 = vector.broadcast %86 : vector<16x4x1xf32> to vector<16x4x32xf32>
    %88 = arith.subf %84, %87 : vector<16x4x32xf32>
    %89 = math.exp %88 : vector<16x4x32xf32>
    %90 = vector.broadcast %78 : vector<16x1x32xf32> to vector<16x4x32xf32>
    %91 = arith.mulf %89, %90 : vector<16x4x32xf32>
    %cst_35 = arith.constant dense<0.000000e+00> : vector<16x4xf32>
    %92 = vector.multi_reduction <add>, %91, %cst_35 [2] : vector<16x4x32xf32> to vector<16x4xf32>
    %93 = vector.shape_cast %92 : vector<16x4xf32> to vector<16x4x1xf32>
    %94 = tpu.reciprocal %93 {approx = true} : vector<16x4x1xf32> -> vector<16x4x1xf32>
    %95 = vector.broadcast %94 : vector<16x4x1xf32> to vector<16x4x32xf32>
    %96 = arith.mulf %91, %95 : vector<16x4x32xf32>
    %97 = arith.truncf %96 : vector<16x4x32xf32> to vector<16x4x32xbf16>
    %98 = vector.extract_strided_slice %97 {offsets = [0, 0, 0], sizes = [16, 1, 32], strides = [1, 1, 1]} : vector<16x4x32xbf16> to vector<16x1x32xbf16>
    %99 = vector.shape_cast %98 : vector<16x1x32xbf16> to vector<16x32xbf16>
    %100 = vector.extract_strided_slice %40 {offsets = [0, 0], sizes = [32, 8], strides = [1, 1]} : vector<32x32xbf16> to vector<32x8xbf16>
    %cst_36 = arith.constant dense<0.000000e+00> : vector<16x8xf32>
    %101 = tpu.matmul %99, %100, %cst_36 {dimension_numbers = #tpu.dot_dimension_numbers<[1], [0], [0], [1], [0, 0, 1, 1], [], []>} : vector<16x32xbf16>, vector<32x8xbf16>, vector<16x8xf32> -> vector<16x8xf32>
    %102 = vector.extract_strided_slice %97 {offsets = [0, 1, 0], sizes = [16, 1, 32], strides = [1, 1, 1]} : vector<16x4x32xbf16> to vector<16x1x32xbf16>
    %103 = vector.shape_cast %102 : vector<16x1x32xbf16> to vector<16x32xbf16>
    %104 = vector.extract_strided_slice %40 {offsets = [0, 8], sizes = [32, 8], strides = [1, 1]} : vector<32x32xbf16> to vector<32x8xbf16>
    %cst_37 = arith.constant dense<0.000000e+00> : vector<16x8xf32>
    %105 = tpu.matmul %103, %104, %cst_37 {dimension_numbers = #tpu.dot_dimension_numbers<[1], [0], [0], [1], [0, 0, 1, 1], [], []>} : vector<16x32xbf16>, vector<32x8xbf16>, vector<16x8xf32> -> vector<16x8xf32>
    %106 = vector.extract_strided_slice %97 {offsets = [0, 2, 0], sizes = [16, 1, 32], strides = [1, 1, 1]} : vector<16x4x32xbf16> to vector<16x1x32xbf16>
    %107 = vector.shape_cast %106 : vector<16x1x32xbf16> to vector<16x32xbf16>
    %108 = vector.extract_strided_slice %40 {offsets = [0, 16], sizes = [32, 8], strides = [1, 1]} : vector<32x32xbf16> to vector<32x8xbf16>
    %cst_38 = arith.constant dense<0.000000e+00> : vector<16x8xf32>
    %109 = tpu.matmul %107, %108, %cst_38 {dimension_numbers = #tpu.dot_dimension_numbers<[1], [0], [0], [1], [0, 0, 1, 1], [], []>} : vector<16x32xbf16>, vector<32x8xbf16>, vector<16x8xf32> -> vector<16x8xf32>
    %110 = vector.extract_strided_slice %97 {offsets = [0, 3, 0], sizes = [16, 1, 32], strides = [1, 1, 1]} : vector<16x4x32xbf16> to vector<16x1x32xbf16>
    %111 = vector.shape_cast %110 : vector<16x1x32xbf16> to vector<16x32xbf16>
    %112 = vector.extract_strided_slice %40 {offsets = [0, 24], sizes = [32, 8], strides = [1, 1]} : vector<32x32xbf16> to vector<32x8xbf16>
    %cst_39 = arith.constant dense<0.000000e+00> : vector<16x8xf32>
    %113 = tpu.matmul %111, %112, %cst_39 {dimension_numbers = #tpu.dot_dimension_numbers<[1], [0], [0], [1], [0, 0, 1, 1], [], []>} : vector<16x32xbf16>, vector<32x8xbf16>, vector<16x8xf32> -> vector<16x8xf32>
    %114 = tpu.concatenate %101, %105, %109, %113 in 1 : vector<16x8xf32>, vector<16x8xf32>, vector<16x8xf32>, vector<16x8xf32> -> vector<16x32xf32>
    %c0_40 = arith.constant 0 : index
    %c0_41 = arith.constant 0 : index
    %115 = vector.load %arg11[%c0_40, %c0_41] : memref<1x32xf32, #tpu.memory_space<vmem>>, vector<1x32xf32>
    %116 = vector.broadcast %115 : vector<1x32xf32> to vector<16x32xf32>
    %117 = arith.addf %114, %116 : vector<16x32xf32>
    %c0_42 = arith.constant 0 : index
    %c0_43 = arith.constant 0 : index
    %118 = vector.load %arg12[%c0_42, %c0_43] : memref<16x32xf32, #tpu.memory_space<vmem>>, vector<16x32xf32>
    tpu.vector_store %arg12[%c0_42, %c0_43], %117 {strides = array<i32>} : memref<16x32xf32, #tpu.memory_space<vmem>>, vector<16x32xf32>,
    return
  }
  func.func @transform_0(%arg0: i32) -> (i32, i32) {
    %c0_i32 = arith.constant 0 : i32
    %c0_i32_0 = arith.constant 0 : i32
    %c0_i32_1 = arith.constant 0 : i32
    return %c0_i32, %c0_i32_0 : i32, i32
  }
  func.func @transform_1(%arg0: i32) -> (i32, i32) {
    %c0_i32 = arith.constant 0 : i32
    %c0_i32_0 = arith.constant 0 : i32
    return %arg0, %c0_i32 : i32, i32
  }
  func.func @transform_2(%arg0: i32) -> (i32, i32) {
    %c0_i32 = arith.constant 0 : i32
    %c0_i32_0 = arith.constant 0 : i32
    return %arg0, %c0_i32 : i32, i32
  }
  func.func @transform_3(%arg0: i32) -> (i32, i32) {
    %c0_i32 = arith.constant 0 : i32
    %c0_i32_0 = arith.constant 0 : i32
    return %arg0, %c0_i32 : i32, i32
  }
  func.func @transform_4(%arg0: i32) -> (i32, i32) {
    %c0_i32 = arith.constant 0 : i32
    %c0_i32_0 = arith.constant 0 : i32
    return %arg0, %c0_i32 : i32, i32
  }
  func.func @transform_5(%arg0: i32) -> (i32, i32) {
    %c0_i32 = arith.constant 0 : i32
    %c0_i32_0 = arith.constant 0 : i32
    %c0_i32_1 = arith.constant 0 : i32
    return %c0_i32, %c0_i32_0 : i32, i32
  }
  func.func @transform_6(%arg0: i32) -> (i32, i32) {
    %c0_i32 = arith.constant 0 : i32
    %c0_i32_0 = arith.constant 0 : i32
    %c0_i32_1 = arith.constant 0 : i32
    return %c0_i32, %c0_i32_0 : i32, i32
  }
  func.func @transform_7(%arg0: i32) -> (i32, i32) {
    %c0_i32 = arith.constant 0 : i32
    %c0_i32_0 = arith.constant 0 : i32
    %c0_i32_1 = arith.constant 0 : i32
    return %c0_i32, %c0_i32_0 : i32, i32
  }
  func.func @transform_8(%arg0: i32) -> (i32, i32) {
    %c0_i32 = arith.constant 0 : i32
    %c0_i32_0 = arith.constant 0 : i32
    %c0_i32_1 = arith.constant 0 : i32
    return %c0_i32, %c0_i32_0 : i32, i32
  }
  func.func @transform_9(%arg0: i32) -> (i32, i32) {
    %c0_i32 = arith.constant 0 : i32
    %c0_i32_0 = arith.constant 0 : i32
    %c0_i32_1 = arith.constant 0 : i32
    return %c0_i32, %c0_i32_0 : i32, i32
  }
  func.func @transform_10(%arg0: i32) -> (i32, i32) {
    %c0_i32 = arith.constant 0 : i32
    %c0_i32_0 = arith.constant 0 : i32
    %c0_i32_1 = arith.constant 0 : i32
    return %c0_i32, %c0_i32_0 : i32, i32
  }
  func.func @transform_11(%arg0: i32) -> (i32, i32) {
    %c0_i32 = arith.constant 0 : i32
    %c0_i32_0 = arith.constant 0 : i32
    return %arg0, %c0_i32 : i32, i32
  }
}

</mosaic_0001>

<llo_original>
// kernel: tpu_custom_call.1
$region0: #{tpu_custom_call.1}
  #allocation0 [shape = 'u32[]', space=smem, size = 0x4, offset = 0x4, fixed_abs, tag = 'smem constant byte address 0x4 - core index']
  #allocation1 [shape = 'u32[72,128]{1,0:T(1,128)}', space=vmem, size = 0x9000, scoped, tag = 'internal scratch']
  %s0 = inlined_call_operand.vmem [shape: bf16[32,32], index: 0, kind: input, shape index: {}]
  %s1 = inlined_call_operand.vmem [shape: bf16[32,32], index: 1, kind: input, shape index: {}]
  %s2 = inlined_call_operand.vmem [shape: bf16[32,32], index: 2, kind: input, shape index: {}]
  %s3 = inlined_call_operand.vmem [shape: bf16[1024,8], index: 3, kind: input, shape index: {}]
  %s4 = inlined_call_operand.vmem [shape: bf16[32,32], index: 4, kind: input, shape index: {}]
  %s5 = inlined_call_operand.vmem [shape: bf16[8,8], index: 5, kind: input, shape index: {}]
  %s6 = inlined_call_operand.vmem [shape: f32[1,8], index: 6, kind: input, shape index: {}]
  %s7 = inlined_call_operand.vmem [shape: bf16[8,32], index: 7, kind: input, shape index: {}]
  %s8 = inlined_call_operand.vmem [shape: f32[1,32], index: 8, kind: input, shape index: {}]
  %s9 = inlined_call_operand.vmem [shape: bf16[32,4], index: 9, kind: input, shape index: {}]
  %s10 = inlined_call_operand.vmem [shape: f32[1,32], index: 10, kind: input, shape index: {}]
  %s11 = inlined_call_operand.hbm [shape: f32[32,32], index: 11, kind: output, shape index: {}]
  %s12 = sld [smem:[#allocation0]]
  $region77: #{tpu_custom_call.1} parent=0
    _
  %s14 = ssub.s32 1, %s12
  %s15 = scalar_select 0, %s14, %s12
  $region1: #{tpu_custom_call.1} parent=0
    #allocation2 [shape = 'u8[16384]{0}', space=vmem, size = 0x4000, scoped, tag = 'output window, operand 0']
    #allocation3 [shape = 's32[2]{0}', space=sflag, size = 0x8, scoped, tag = 'scoped memory for tpu_custom_call.1']
    %16 = vsyncpa [#allocation3], 0
    %s17 = scalar_lea.sflag [#allocation3], 1
    %18 = vsyncpa %s17, 0
    loop: start=0, step=1, limit=4
    $region2: #{tpu_custom_call.1} parent=1 // loop_pre_header
      _
    $region3: #{tpu_custom_call.1} parent=1 // loop_header
      %s20 = sphi 0, %s24
      %p21 = scmp.ge.s32.totalorder %s20, 4
      %s28 = sphi 0, %s28
      %s30 = sphi 0, %s28
      %s31 = sphi 0, %s30
      %s45 = sphi 0, %s31
      %s51 = sphi 0, %s53
      %s54 = sphi 0, %s51
      %s55 = sphi 0, %s54
      %s71 = sphi 0, %s55
      %s77 = sphi 0, %s79
      %s80 = sphi 0, %s77
      %s81 = sphi 0, %s80
      %s97 = sphi 0, %s81
      %s103 = sphi 0, %s105
      %s106 = sphi 0, %s103
      %s107 = sphi 0, %s106
      %s123 = sphi 0, %s107
      %s129 = sphi 0, %s131
      %s132 = sphi 0, %s129
      %s133 = sphi 0, %s132
      %s149 = sphi 0, %s133
      %s153 = sphi 0, %s153
      %s155 = sphi 0, %s153
      %s156 = sphi 0, %s155
      %s170 = sphi 0, %s156
      %s174 = sphi 0, %s174
      %s176 = sphi 0, %s174
      %s177 = sphi 0, %s176
      %s191 = sphi 0, %s177
      %s195 = sphi 0, %s195
      %s197 = sphi 0, %s195
      %s198 = sphi 0, %s197
      %s212 = sphi 0, %s198
      %s216 = sphi 0, %s216
      %s218 = sphi 0, %s216
      %s219 = sphi 0, %s218
      %s233 = sphi 0, %s219
      %s237 = sphi 0, %s237
      %s239 = sphi 0, %s237
      %s240 = sphi 0, %s239
      %s254 = sphi 0, %s240
      %s258 = sphi 0, %s258
      %s260 = sphi 0, %s258
      %s261 = sphi 0, %s260
      %s275 = sphi 0, %s261
      %s281 = sphi 0, %s283
      %s284 = sphi 0, %s281
      %s285 = sphi 0, %s284
      %s301 = sphi 0, %s285
    $region4: #{tpu_custom_call.1} parent=1 // loop_header_branch
      %23 = sbr.rel (%p21) target = $region8
    $region5: #{tpu_custom_call.1} parent=1 // loop_body
      %s25 = ssub.s32 %s20, 1
      %s26 = ssub.s32 %s20, 2
      %s27 = sadd.s32 %s20, 1
      %s29 = sadd.s32 %s28, 1
      %p32 = scmp.eq.s32.totalorder %s20, 1
      %p33 = scmp.ne.s32.totalorder %s28, %s30
      %p34 = scmp.eq.s32.totalorder %s20, 0
      %p35 = por %p33, %p34
      %p36 = scmp.ne.s32.totalorder %s28, %s30
      %p37 = scmp.eq.s32.totalorder %s25, 1
      %p38 = por %p36, %p37
      %p39 = scmp.ne.s32.totalorder %s30, %s31
      %p40 = scmp.eq.s32.totalorder %s25, 0
      %p41 = por %p39, %p40
      %p42 = scmp.ne.s32.totalorder %s30, %s31
      %p43 = scmp.eq.s32.totalorder %s26, 1
      %p44 = por %p42, %p43
      %p46 = scmp.ne.s32.totalorder %s31, %s45
      %p47 = scmp.eq.s32.totalorder %s26, 0
      %p48 = por %p46, %p47
      %s49 = ssub.s32 %s20, %s27
      %p50 = scmp.eq.s32.totalorder %s49, 0
      %s52 = sadd.s32 %s51, 1
      %s53 = scalar_select %p50, %s51, %s52
      %p56 = pneg %p50
      %p57 = scmp.eq.s32.totalorder %s20, 1
      %p58 = por %p56, %p57
      %p59 = scmp.ne.s32.totalorder %s51, %s54
      %p60 = scmp.eq.s32.totalorder %s20, 0
      %p61 = por %p59, %p60
      %p62 = scmp.ne.s32.totalorder %s51, %s54
      %p63 = scmp.eq.s32.totalorder %s25, 1
      %p64 = por %p62, %p63
      %p65 = scmp.ne.s32.totalorder %s54, %s55
      %p66 = scmp.eq.s32.totalorder %s25, 0
      %p67 = por %p65, %p66
      %p68 = scmp.ne.s32.totalorder %s54, %s55
      %p69 = scmp.eq.s32.totalorder %s26, 1
      %p70 = por %p68, %p69
      %p72 = scmp.ne.s32.totalorder %s55, %s71
      %p73 = scmp.eq.s32.totalorder %s26, 0
      %p74 = por %p72, %p73
      %s75 = ssub.s32 %s20, %s27
      %p76 = scmp.eq.s32.totalorder %s75, 0
      %s78 = sadd.s32 %s77, 1
      %s79 = scalar_select %p76, %s77, %s78
      %p82 = pneg %p76
      %p83 = scmp.eq.s32.totalorder %s20, 1
      %p84 = por %p82, %p83
      %p85 = scmp.ne.s32.totalorder %s77, %s80
      %p86 = scmp.eq.s32.totalorder %s20, 0
      %p87 = por %p85, %p86
      %p88 = scmp.ne.s32.totalorder %s77, %s80
      %p89 = scmp.eq.s32.totalorder %s25, 1
      %p90 = por %p88, %p89
      %p91 = scmp.ne.s32.totalorder %s80, %s81
      %p92 = scmp.eq.s32.totalorder %s25, 0
      %p93 = por %p91, %p92
      %p94 = scmp.ne.s32.totalorder %s80, %s81
      %p95 = scmp.eq.s32.totalorder %s26, 1
      %p96 = por %p94, %p95
      %p98 = scmp.ne.s32.totalorder %s81, %s97
      %p99 = scmp.eq.s32.totalorder %s26, 0
      %p100 = por %p98, %p99
      %s101 = ssub.s32 %s20, %s27
      %p102 = scmp.eq.s32.totalorder %s101, 0
      %s104 = sadd.s32 %s103, 1
      %s105 = scalar_select %p102, %s103, %s104
      %p108 = pneg %p102
      %p109 = scmp.eq.s32.totalorder %s20, 1
      %p110 = por %p108, %p109
      %p111 = scmp.ne.s32.totalorder %s103, %s106
      %p112 = scmp.eq.s32.totalorder %s20, 0
      %p113 = por %p111, %p112
      %p114 = scmp.ne.s32.totalorder %s103, %s106
      %p115 = scmp.eq.s32.totalorder %s25, 1
      %p116 = por %p114, %p115
      %p117 = scmp.ne.s32.totalorder %s106, %s107
      %p118 = scmp.eq.s32.totalorder %s25, 0
      %p119 = por %p117, %p118
      %p120 = scmp.ne.s32.totalorder %s106, %s107
      %p121 = scmp.eq.s32.totalorder %s26, 1
      %p122 = por %p120, %p121
      %p124 = scmp.ne.s32.totalorder %s107, %s123
      %p125 = scmp.eq.s32.totalorder %s26, 0
      %p126 = por %p124, %p125
      %s127 = ssub.s32 %s20, %s27
      %p128 = scmp.eq.s32.totalorder %s127, 0
      %s130 = sadd.s32 %s129, 1
      %s131 = scalar_select %p128, %s129, %s130
      %p134 = pneg %p128
      %p135 = scmp.eq.s32.totalorder %s20, 1
      %p136 = por %p134, %p135
      %p137 = scmp.ne.s32.totalorder %s129, %s132
      %p138 = scmp.eq.s32.totalorder %s20, 0
      %p139 = por %p137, %p138
      %p140 = scmp.ne.s32.totalorder %s129, %s132
      %p141 = scmp.eq.s32.totalorder %s25, 1
      %p142 = por %p140, %p141
      %p143 = scmp.ne.s32.totalorder %s132, %s133
      %p144 = scmp.eq.s32.totalorder %s25, 0
      %p145 = por %p143, %p144
      %p146 = scmp.ne.s32.totalorder %s132, %s133
      %p147 = scmp.eq.s32.totalorder %s26, 1
      %p148 = por %p146, %p147
      %p150 = scmp.ne.s32.totalorder %s133, %s149
      %p151 = scmp.eq.s32.totalorder %s26, 0
      %p152 = por %p150, %p151
      %s154 = sadd.s32 %s153, 1
      %p157 = scmp.eq.s32.totalorder %s20, 1
      %p158 = scmp.ne.s32.totalorder %s153, %s155
      %p159 = scmp.eq.s32.totalorder %s20, 0
      %p160 = por %p158, %p159
      %p161 = scmp.ne.s32.totalorder %s153, %s155
      %p162 = scmp.eq.s32.totalorder %s25, 1
      %p163 = por %p161, %p162
      %p164 = scmp.ne.s32.totalorder %s155, %s156
      %p165 = scmp.eq.s32.totalorder %s25, 0
      %p166 = por %p164, %p165
      %p167 = scmp.ne.s32.totalorder %s155, %s156
      %p168 = scmp.eq.s32.totalorder %s26, 1
      %p169 = por %p167, %p168
      %p171 = scmp.ne.s32.totalorder %s156, %s170
      %p172 = scmp.eq.s32.totalorder %s26, 0
      %p173 = por %p171, %p172
      %s175 = sadd.s32 %s174, 1
      %p178 = scmp.eq.s32.totalorder %s20, 1
      %p179 = scmp.ne.s32.totalorder %s174, %s176
      %p180 = scmp.eq.s32.totalorder %s20, 0
      %p181 = por %p179, %p180
      %p182 = scmp.ne.s32.totalorder %s174, %s176
      %p183 = scmp.eq.s32.totalorder %s25, 1
      %p184 = por %p182, %p183
      %p185 = scmp.ne.s32.totalorder %s176, %s177
      %p186 = scmp.eq.s32.totalorder %s25, 0
      %p187 = por %p185, %p186
      %p188 = scmp.ne.s32.totalorder %s176, %s177
      %p189 = scmp.eq.s32.totalorder %s26, 1
      %p190 = por %p188, %p189
      %p192 = scmp.ne.s32.totalorder %s177, %s191
      %p193 = scmp.eq.s32.totalorder %s26, 0
      %p194 = por %p192, %p193
      %s196 = sadd.s32 %s195, 1
      %p199 = scmp.eq.s32.totalorder %s20, 1
      %p200 = scmp.ne.s32.totalorder %s195, %s197
      %p201 = scmp.eq.s32.totalorder %s20, 0
      %p202 = por %p200, %p201
      %p203 = scmp.ne.s32.totalorder %s195, %s197
      %p204 = scmp.eq.s32.totalorder %s25, 1
      %p205 = por %p203, %p204
      %p206 = scmp.ne.s32.totalorder %s197, %s198
      %p207 = scmp.eq.s32.totalorder %s25, 0
      %p208 = por %p206, %p207
      %p209 = scmp.ne.s32.totalorder %s197, %s198
      %p210 = scmp.eq.s32.totalorder %s26, 1
      %p211 = por %p209, %p210
      %p213 = scmp.ne.s32.totalorder %s198, %s212
      %p214 = scmp.eq.s32.totalorder %s26, 0
      %p215 = por %p213, %p214
      %s217 = sadd.s32 %s216, 1
      %p220 = scmp.eq.s32.totalorder %s20, 1
      %p221 = scmp.ne.s32.totalorder %s216, %s218
      %p222 = scmp.eq.s32.totalorder %s20, 0
      %p223 = por %p221, %p222
      %p224 = scmp.ne.s32.totalorder %s216, %s218
      %p225 = scmp.eq.s32.totalorder %s25, 1
      %p226 = por %p224, %p225
      %p227 = scmp.ne.s32.totalorder %s218, %s219
      %p228 = scmp.eq.s32.totalorder %s25, 0
      %p229 = por %p227, %p228
      %p230 = scmp.ne.s32.totalorder %s218, %s219
      %p231 = scmp.eq.s32.totalorder %s26, 1
      %p232 = por %p230, %p231
      %p234 = scmp.ne.s32.totalorder %s219, %s233
      %p235 = scmp.eq.s32.totalorder %s26, 0
      %p236 = por %p234, %p235
      %s238 = sadd.s32 %s237, 1
      %p241 = scmp.eq.s32.totalorder %s20, 1
      %p242 = scmp.ne.s32.totalorder %s237, %s239
      %p243 = scmp.eq.s32.totalorder %s20, 0
      %p244 = por %p242, %p243
      %p245 = scmp.ne.s32.totalorder %s237, %s239
      %p246 = scmp.eq.s32.totalorder %s25, 1
      %p247 = por %p245, %p246
      %p248 = scmp.ne.s32.totalorder %s239, %s240
      %p249 = scmp.eq.s32.totalorder %s25, 0
      %p250 = por %p248, %p249
      %p251 = scmp.ne.s32.totalorder %s239, %s240
      %p252 = scmp.eq.s32.totalorder %s26, 1
      %p253 = por %p251, %p252
      %p255 = scmp.ne.s32.totalorder %s240, %s254
      %p256 = scmp.eq.s32.totalorder %s26, 0
      %p257 = por %p255, %p256
      %s259 = sadd.s32 %s258, 1
      %p262 = scmp.eq.s32.totalorder %s20, 1
      %p263 = scmp.ne.s32.totalorder %s258, %s260
      %p264 = scmp.eq.s32.totalorder %s20, 0
      %p265 = por %p263, %p264
      %p266 = scmp.ne.s32.totalorder %s258, %s260
      %p267 = scmp.eq.s32.totalorder %s25, 1
      %p268 = por %p266, %p267
      %p269 = scmp.ne.s32.totalorder %s260, %s261
      %p270 = scmp.eq.s32.totalorder %s25, 0
      %p271 = por %p269, %p270
      %p272 = scmp.ne.s32.totalorder %s260, %s261
      %p273 = scmp.eq.s32.totalorder %s26, 1
      %p274 = por %p272, %p273
      %p276 = scmp.ne.s32.totalorder %s261, %s275
      %p277 = scmp.eq.s32.totalorder %s26, 0
      %p278 = por %p276, %p277
      %s279 = ssub.s32 %s20, %s27
      %p280 = scmp.eq.s32.totalorder %s279, 0
      %s282 = sadd.s32 %s281, 1
      %s283 = scalar_select %p280, %s281, %s282
      %p286 = pneg %p280
      %p287 = scmp.eq.s32.totalorder %s20, 1
      %p288 = por %p286, %p287
      %p289 = scmp.ne.s32.totalorder %s281, %s284
      %p290 = scmp.eq.s32.totalorder %s20, 0
      %p291 = por %p289, %p290
      %p292 = scmp.ne.s32.totalorder %s281, %s284
      %p293 = scmp.eq.s32.totalorder %s25, 1
      %p294 = por %p292, %p293
      %p295 = scmp.ne.s32.totalorder %s284, %s285
      %p296 = scmp.eq.s32.totalorder %s25, 0
      %p297 = por %p295, %p296
      %p298 = scmp.ne.s32.totalorder %s284, %s285
      %p299 = scmp.eq.s32.totalorder %s26, 1
      %p300 = por %p298, %p299
      %p302 = scmp.ne.s32.totalorder %s285, %s301
      %p303 = scmp.eq.s32.totalorder %s26, 0
      %p304 = por %p302, %p303
      %p305 = scmp.le.s32.totalorder 1, %s20
      %p306 = scmp.lt.s32.totalorder %s20, 3
      %p307 = pnand %p305, %p306
      %p308 = pneg %p307
      // Predicated region
      $region9: #{tpu_custom_call.1} parent=5 // pred_check
        _
      $region10: #{tpu_custom_call.1} parent=5 // pred_check_branch
        %310 = sbr.rel (%p307) target = $region12
      $region11: #{tpu_custom_call.1} parent=5 // pred_region
        %s311 = ssub.s32 %s20, 1
        // Predicated region
        $region13: #{tpu_custom_call.1} parent=11 // pred_check
          %p312 = pneg %p41
        $region14: #{tpu_custom_call.1} parent=11 // pred_check_branch
          %314 = sbr.rel (%p312) target = $region16
        $region15: #{tpu_custom_call.1} parent=11 // pred_region
          _
        $region16: #{tpu_custom_call.1} parent=11 // pred_fallthru
          _
        // Predicated region
        $region17: #{tpu_custom_call.1} parent=11 // pred_check
          %p315 = pneg %p166
        $region18: #{tpu_custom_call.1} parent=11 // pred_check_branch
          %317 = sbr.rel (%p315) target = $region20
        $region19: #{tpu_custom_call.1} parent=11 // pred_region
          _
        $region20: #{tpu_custom_call.1} parent=11 // pred_fallthru
          _
        // Predicated region
        $region21: #{tpu_custom_call.1} parent=11 // pred_check
          %p318 = pneg %p187
        $region22: #{tpu_custom_call.1} parent=11 // pred_check_branch
          %320 = sbr.rel (%p318) target = $region24
        $region23: #{tpu_custom_call.1} parent=11 // pred_region
          _
        $region24: #{tpu_custom_call.1} parent=11 // pred_fallthru
          _
        // Predicated region
        $region25: #{tpu_custom_call.1} parent=11 // pred_check
          %p321 = pneg %p208
        $region26: #{tpu_custom_call.1} parent=11 // pred_check_branch
          %323 = sbr.rel (%p321) target = $region28
        $region27: #{tpu_custom_call.1} parent=11 // pred_region
          _
        $region28: #{tpu_custom_call.1} parent=11 // pred_fallthru
          _
        // Predicated region
        $region29: #{tpu_custom_call.1} parent=11 // pred_check
          %p324 = pneg %p229
        $region30: #{tpu_custom_call.1} parent=11 // pred_check_branch
          %326 = sbr.rel (%p324) target = $region32
        $region31: #{tpu_custom_call.1} parent=11 // pred_region
          _
        $region32: #{tpu_custom_call.1} parent=11 // pred_fallthru
          _
        // Predicated region
        $region33: #{tpu_custom_call.1} parent=11 // pred_check
          %p327 = pneg %p250
        $region34: #{tpu_custom_call.1} parent=11 // pred_check_branch
          %329 = sbr.rel (%p327) target = $region36
        $region35: #{tpu_custom_call.1} parent=11 // pred_region
          _
        $region36: #{tpu_custom_call.1} parent=11 // pred_fallthru
          _
        // Predicated region
        $region37: #{tpu_custom_call.1} parent=11 // pred_check
          %p330 = pneg %p271
        $region38: #{tpu_custom_call.1} parent=11 // pred_check_branch
          %332 = sbr.rel (%p330) target = $region40
        $region39: #{tpu_custom_call.1} parent=11 // pred_region
          _
        $region40: #{tpu_custom_call.1} parent=11 // pred_fallthru
          _
      $region12: #{tpu_custom_call.1} parent=5 // pred_fallthru
        _
      %p333 = scmp.lt.s32.totalorder %s20, 2
      // Predicated region
      $region41: #{tpu_custom_call.1} parent=5 // pred_check
        %p334 = pneg %p333
      $region42: #{tpu_custom_call.1} parent=5 // pred_check_branch
        %336 = sbr.rel (%p334) target = $region44
      $region43: #{tpu_custom_call.1} parent=5 // pred_region
        // Predicated region
        $region45: #{tpu_custom_call.1} parent=43 // pred_check
          %p337 = pneg %p61
        $region46: #{tpu_custom_call.1} parent=43 // pred_check_branch
          %339 = sbr.rel (%p337) target = $region48
        $region47: #{tpu_custom_call.1} parent=43 // pred_region
          %s340 = smul.u32 2, %s20
          %p341 = scmp.lt.s32.totalorder %s340, 3
          %s342 = scalar_select %p341, %s340, 3
          %s343 = smul.addr %s342, 4
          %s344 = scalar_lea.vmem %s1, %s343
          %s345 = smul.u32 2, %s20
        $region48: #{tpu_custom_call.1} parent=43 // pred_fallthru
          _
        // Predicated region
        $region49: #{tpu_custom_call.1} parent=43 // pred_check
          %p346 = pneg %p87
        $region50: #{tpu_custom_call.1} parent=43 // pred_check_branch
          %348 = sbr.rel (%p346) target = $region52
        $region51: #{tpu_custom_call.1} parent=43 // pred_region
          %s349 = smul.u32 2, %s20
          %p350 = scmp.lt.s32.totalorder %s349, 3
          %s351 = scalar_select %p350, %s349, 3
          %s352 = smul.addr %s351, 4
          %s353 = scalar_lea.vmem %s2, %s352
          %s354 = smul.u32 2, %s20
        $region52: #{tpu_custom_call.1} parent=43 // pred_fallthru
          _
        // Predicated region
        $region53: #{tpu_custom_call.1} parent=43 // pred_check
          %p355 = pneg %p113
        $region54: #{tpu_custom_call.1} parent=43 // pred_check_branch
          %357 = sbr.rel (%p355) target = $region56
        $region55: #{tpu_custom_call.1} parent=43 // pred_region
          %s358 = smul.u32 64, %s20
          %p359 = scmp.lt.s32.totalorder %s358, 127
          %s360 = scalar_select %p359, %s358, 127
          %s361 = smul.addr %s360, 4
          %s362 = scalar_lea.vmem %s3, %s361
          %s363 = smul.u32 64, %s20
        $region56: #{tpu_custom_call.1} parent=43 // pred_fallthru
          _
        // Predicated region
        $region57: #{tpu_custom_call.1} parent=43 // pred_check
          %p364 = pneg %p139
        $region58: #{tpu_custom_call.1} parent=43 // pred_check_branch
          %366 = sbr.rel (%p364) target = $region60
        $region59: #{tpu_custom_call.1} parent=43 // pred_region
          %s367 = smul.u32 2, %s20
          %p368 = scmp.lt.s32.totalorder %s367, 3
          %s369 = scalar_select %p368, %s367, 3
          %s370 = smul.addr %s369, 4
          %s371 = scalar_lea.vmem %s4, %s370
          %s372 = smul.u32 2, %s20
        $region60: #{tpu_custom_call.1} parent=43 // pred_fallthru
          _
      $region44: #{tpu_custom_call.1} parent=5 // pred_fallthru
        _
      %p373 = scmp.le.s32.totalorder 1, %s20
      %p374 = scmp.lt.s32.totalorder %s20, 3
      %p375 = pnand %p373, %p374
      %p376 = pneg %p375
      // Predicated region
      $region61: #{tpu_custom_call.1} parent=5 // pred_check
        _
      $region62: #{tpu_custom_call.1} parent=5 // pred_check_branch
        %378 = sbr.rel (%p375) target = $region64
      $region63: #{tpu_custom_call.1} parent=5 // pred_region
        %s379 = ssub.s32 %s20, 1
        %p380 = pneg %p41
        %p381 = pneg %p38
        %s382 = smul.u32 2, %s25
        %p383 = scmp.lt.s32.totalorder %s382, 3
        %s384 = scalar_select %p383, %s382, 3
        %s385 = smul.addr %s384, 4
        %s386 = scalar_lea.vmem %s1, %s385
        %p387 = pneg %p67
        %p388 = pneg %p64
        %s389 = smul.u32 2, %s25
        %p390 = scmp.lt.s32.totalorder %s389, 3
        %s391 = scalar_select %p390, %s389, 3
        %s392 = smul.addr %s391, 4
        %s393 = scalar_lea.vmem %s2, %s392
        %p394 = pneg %p93
        %p395 = pneg %p90
        %s396 = smul.u32 64, %s25
        %p397 = scmp.lt.s32.totalorder %s396, 127
        %s398 = scalar_select %p397, %s396, 127
        %s399 = smul.addr %s398, 4
        %s400 = scalar_lea.vmem %s3, %s399
        %p401 = pneg %p119
        %p402 = pneg %p116
        %s403 = smul.u32 2, %s25
        %p404 = scmp.lt.s32.totalorder %s403, 3
        %s405 = scalar_select %p404, %s403, 3
        %s406 = smul.addr %s405, 4
        %s407 = scalar_lea.vmem %s4, %s406
        %p408 = pneg %p145
        %p409 = pneg %p142
        %p410 = pneg %p166
        %p411 = pneg %p163
        %p412 = pneg %p187
        %p413 = pneg %p184
        %p414 = pneg %p208
        %p415 = pneg %p205
        %p416 = pneg %p229
        %p417 = pneg %p226
        %p418 = pneg %p250
        %p419 = pneg %p247
        %p420 = pneg %p271
        %p421 = pneg %p268
        %p422 = pneg %p297
        %p423 = pneg %p294
        %s424 = sand.u32 %s284, 1
        %s425 = scalar_lea.sflag [#allocation3], %s424
        %s426 = sand.u32 %s284, 1
        %s427 = smul.addr %s426, 16
        %s428 = scalar_lea.vmem [#allocation2], %s427
        %s429 = smul.u32 2, %s25
        %p430 = scmp.lt.s32.totalorder %s429, 3
        %s431 = scalar_select %p430, %s429, 3
        %s432 = smul.addr %s431, 4
        %s433 = scalar_lea.vmem %s1, %s432
        %s434 = smul.u32 2, %s25
        %s435 = smul.u32 2, %s25
        %p436 = scmp.lt.s32.totalorder %s435, 3
        %s437 = scalar_select %p436, %s435, 3
        %s438 = smul.addr %s437, 4
        %s439 = scalar_lea.vmem %s2, %s438
        %s440 = smul.u32 2, %s25
        %s441 = smul.u32 64, %s25
        %p442 = scmp.lt.s32.totalorder %s441, 127
        %s443 = scalar_select %p442, %s441, 127
        %s444 = smul.addr %s443, 4
        %s445 = scalar_lea.vmem %s3, %s444
        %s446 = smul.u32 64, %s25
        %s447 = smul.u32 2, %s25
        %p448 = scmp.lt.s32.totalorder %s447, 3
        %s449 = scalar_select %p448, %s447, 3
        %s450 = smul.addr %s449, 4
        %s451 = scalar_lea.vmem %s4, %s450
        %s452 = smul.u32 2, %s25
        %s453 = smul.u32 2, %s25
        %v455 = vld [vmem:[%s445] sm:$0xf]
        %v456 = vld [vmem:[%s445 + $0x4] sm:$0xf]
        %v457 = vld [vmem:[%s445 + $0x8] sm:$0xf]
        %v458 = vld [vmem:[%s445 + $0xc] sm:$0xf]
        %v459 = vld [vmem:[%s445 + $0x10] sm:$0xf]
        %v460 = vld [vmem:[%s445 + $0x14] sm:$0xf]
        %v461 = vld [vmem:[%s445 + $0x18] sm:$0xf]
        %v462 = vld [vmem:[%s445 + $0x1c] sm:$0xf]
        %v463 = vld [vmem:[%s445 + $0x20] sm:$0xf]
        %v464 = vld [vmem:[%s445 + $0x24] sm:$0xf]
        %v465 = vld [vmem:[%s445 + $0x28] sm:$0xf]
        %v466 = vld [vmem:[%s445 + $0x2c] sm:$0xf]
        %v467 = vld [vmem:[%s445 + $0x30] sm:$0xf]
        %v468 = vld [vmem:[%s445 + $0x34] sm:$0xf]
        %v469 = vld [vmem:[%s445 + $0x38] sm:$0xf]
        %v470 = vld [vmem:[%s445 + $0x3c] sm:$0xf]
        %v471 = vld [vmem:[%s445 + $0x40] sm:$0xf]
        %v472 = vld [vmem:[%s445 + $0x44] sm:$0xf]
        %v473 = vld [vmem:[%s445 + $0x48] sm:$0xf]
        %v474 = vld [vmem:[%s445 + $0x4c] sm:$0xf]
        %v475 = vld [vmem:[%s445 + $0x50] sm:$0xf]
        %v476 = vld [vmem:[%s445 + $0x54] sm:$0xf]
        %v477 = vld [vmem:[%s445 + $0x58] sm:$0xf]
        %v478 = vld [vmem:[%s445 + $0x5c] sm:$0xf]
        %v479 = vld [vmem:[%s445 + $0x60] sm:$0xf]
        %v480 = vld [vmem:[%s445 + $0x64] sm:$0xf]
        %v481 = vld [vmem:[%s445 + $0x68] sm:$0xf]
        %v482 = vld [vmem:[%s445 + $0x6c] sm:$0xf]
        %v483 = vld [vmem:[%s445 + $0x70] sm:$0xf]
        %v484 = vld [vmem:[%s445 + $0x74] sm:$0xf]
        %v485 = vld [vmem:[%s445 + $0x78] sm:$0xf]
        %v486 = vld [vmem:[%s445 + $0x7c] sm:$0xf]
        %v487 = vld [vmem:[%s445 + $0x80] sm:$0xf]
        %v488 = vld [vmem:[%s445 + $0x84] sm:$0xf]
        %v489 = vld [vmem:[%s445 + $0x88] sm:$0xf]
        %v490 = vld [vmem:[%s445 + $0x8c] sm:$0xf]
        %v491 = vld [vmem:[%s445 + $0x90] sm:$0xf]
        %v492 = vld [vmem:[%s445 + $0x94] sm:$0xf]
        %v493 = vld [vmem:[%s445 + $0x98] sm:$0xf]
        %v494 = vld [vmem:[%s445 + $0x9c] sm:$0xf]
        %v495 = vld [vmem:[%s445 + $0xa0] sm:$0xf]
        %v496 = vld [vmem:[%s445 + $0xa4] sm:$0xf]
        %v497 = vld [vmem:[%s445 + $0xa8] sm:$0xf]
        %v498 = vld [vmem:[%s445 + $0xac] sm:$0xf]
        %v499 = vld [vmem:[%s445 + $0xb0] sm:$0xf]
        %v500 = vld [vmem:[%s445 + $0xb4] sm:$0xf]
        %v501 = vld [vmem:[%s445 + $0xb8] sm:$0xf]
        %v502 = vld [vmem:[%s445 + $0xbc] sm:$0xf]
        %v503 = vld [vmem:[%s445 + $0xc0] sm:$0xf]
        %v504 = vld [vmem:[%s445 + $0xc4] sm:$0xf]
        %v505 = vld [vmem:[%s445 + $0xc8] sm:$0xf]
        %v506 = vld [vmem:[%s445 + $0xcc] sm:$0xf]
        %v507 = vld [vmem:[%s445 + $0xd0] sm:$0xf]
        %v508 = vld [vmem:[%s445 + $0xd4] sm:$0xf]
        %v509 = vld [vmem:[%s445 + $0xd8] sm:$0xf]
        %v510 = vld [vmem:[%s445 + $0xdc] sm:$0xf]
        %v511 = vld [vmem:[%s445 + $0xe0] sm:$0xf]
        %v512 = vld [vmem:[%s445 + $0xe4] sm:$0xf]
        %v513 = vld [vmem:[%s445 + $0xe8] sm:$0xf]
        %v514 = vld [vmem:[%s445 + $0xec] sm:$0xf]
        %v515 = vld [vmem:[%s445 + $0xf0] sm:$0xf]
        %v516 = vld [vmem:[%s445 + $0xf4] sm:$0xf]
        %v517 = vld [vmem:[%s445 + $0xf8] sm:$0xf]
        %v518 = vld [vmem:[%s445 + $0xfc] sm:$0xf]
        %v519 = vld [vmem:[%s5] sm:$0xf]
        %v520 = vld [vmem:[%s6] sm:$0x1]
        %v522 = vperm.slane %v520, 0
        %v588 = vunpack.c.l.b16 %v455
        %v589 = vunpack.c.l.b16 %v456
        %v590 = vunpack.c.l.b16 %v457
        %v591 = vunpack.c.l.b16 %v458
        %v592 = vunpack.c.l.b16 %v459
        %v593 = vunpack.c.l.b16 %v460
        %v594 = vunpack.c.l.b16 %v461
        %v595 = vunpack.c.l.b16 %v462
        %v596 = vunpack.c.l.b16 %v463
        %v597 = vunpack.c.l.b16 %v464
        %v598 = vunpack.c.l.b16 %v465
        %v599 = vunpack.c.l.b16 %v466
        %v600 = vunpack.c.l.b16 %v467
        %v601 = vunpack.c.l.b16 %v468
        %v602 = vunpack.c.l.b16 %v469
        %v603 = vunpack.c.l.b16 %v470
        %v604 = vunpack.c.l.b16 %v471
        %v605 = vunpack.c.l.b16 %v472
        %v606 = vunpack.c.l.b16 %v473
        %v607 = vunpack.c.l.b16 %v474
        %v608 = vunpack.c.l.b16 %v475
        %v609 = vunpack.c.l.b16 %v476
        %v610 = vunpack.c.l.b16 %v477
        %v611 = vunpack.c.l.b16 %v478
        %v612 = vunpack.c.l.b16 %v479
        %v613 = vunpack.c.l.b16 %v480
        %v614 = vunpack.c.l.b16 %v481
        %v615 = vunpack.c.l.b16 %v482
        %v616 = vunpack.c.l.b16 %v483
        %v617 = vunpack.c.l.b16 %v484
        %v618 = vunpack.c.l.b16 %v485
        %v619 = vunpack.c.l.b16 %v486
        %v620 = vunpack.c.l.b16 %v487
        %v621 = vunpack.c.l.b16 %v488
        %v622 = vunpack.c.l.b16 %v489
        %v623 = vunpack.c.l.b16 %v490
        %v624 = vunpack.c.l.b16 %v491
        %v625 = vunpack.c.l.b16 %v492
        %v626 = vunpack.c.l.b16 %v493
        %v627 = vunpack.c.l.b16 %v494
        %v628 = vunpack.c.l.b16 %v495
        %v629 = vunpack.c.l.b16 %v496
        %v630 = vunpack.c.l.b16 %v497
        %v631 = vunpack.c.l.b16 %v498
        %v632 = vunpack.c.l.b16 %v499
        %v633 = vunpack.c.l.b16 %v500
        %v634 = vunpack.c.l.b16 %v501
        %v635 = vunpack.c.l.b16 %v502
        %v636 = vunpack.c.l.b16 %v503
        %v637 = vunpack.c.l.b16 %v504
        %v638 = vunpack.c.l.b16 %v505
        %v639 = vunpack.c.l.b16 %v506
        %v640 = vunpack.c.l.b16 %v507
        %v641 = vunpack.c.l.b16 %v508
        %v642 = vunpack.c.l.b16 %v509
        %v643 = vunpack.c.l.b16 %v510
        %v644 = vunpack.c.l.b16 %v511
        %v645 = vunpack.c.l.b16 %v512
        %v646 = vunpack.c.l.b16 %v513
        %v647 = vunpack.c.l.b16 %v514
        %v648 = vunpack.c.l.b16 %v515
        %v649 = vunpack.c.l.b16 %v516
        %v650 = vunpack.c.l.b16 %v517
        %v651 = vunpack.c.l.b16 %v518
        %v652 = vpack.c.b16 %v589, %v588
        %v653 = vpack.c.b16 %v591, %v590
        %v654 = vpack.c.b16 %v593, %v592
        %v655 = vpack.c.b16 %v595, %v594
        %v656 = vpack.c.b16 %v597, %v596
        %v657 = vpack.c.b16 %v599, %v598
        %v658 = vpack.c.b16 %v601, %v600
        %v659 = vpack.c.b16 %v603, %v602
        %v660 = vpack.c.b16 %v605, %v604
        %v661 = vpack.c.b16 %v607, %v606
        %v662 = vpack.c.b16 %v609, %v608
        %v663 = vpack.c.b16 %v611, %v610
        %v664 = vpack.c.b16 %v613, %v612
        %v665 = vpack.c.b16 %v615, %v614
        %v666 = vpack.c.b16 %v617, %v616
        %v667 = vpack.c.b16 %v619, %v618
        %v668 = vpack.c.b16 %v621, %v620
        %v669 = vpack.c.b16 %v623, %v622
        %v670 = vpack.c.b16 %v625, %v624
        %v671 = vpack.c.b16 %v627, %v626
        %v672 = vpack.c.b16 %v629, %v628
        %v673 = vpack.c.b16 %v631, %v630
        %v674 = vpack.c.b16 %v633, %v632
        %v675 = vpack.c.b16 %v635, %v634
        %v676 = vpack.c.b16 %v637, %v636
        %v677 = vpack.c.b16 %v639, %v638
        %v678 = vpack.c.b16 %v641, %v640
        %v679 = vpack.c.b16 %v643, %v642
        %v680 = vpack.c.b16 %v645, %v644
        %v681 = vpack.c.b16 %v647, %v646
        %v682 = vpack.c.b16 %v649, %v648
        %v683 = vpack.c.b16 %v651, %v650
        %vm684 = vcmask 64512
        %v686 = vsel %vm684, %v652, 0
        %v689 = vsel %vm684, %v653, 0
        %v692 = vsel %vm684, %v654, 0
        %v695 = vsel %vm684, %v655, 0
        %v698 = vsel %vm684, %v656, 0
        %v701 = vsel %vm684, %v657, 0
        %v704 = vsel %vm684, %v658, 0
        %v707 = vsel %vm684, %v659, 0
        %v710 = vsel %vm684, %v660, 0
        %v713 = vsel %vm684, %v661, 0
        %v716 = vsel %vm684, %v662, 0
        %v719 = vsel %vm684, %v663, 0
        %v722 = vsel %vm684, %v664, 0
        %v725 = vsel %vm684, %v665, 0
        %v728 = vsel %vm684, %v666, 0
        %v731 = vsel %vm684, %v667, 0
        %v734 = vsel %vm684, %v668, 0
        %v737 = vsel %vm684, %v669, 0
        %v740 = vsel %vm684, %v670, 0
        %v743 = vsel %vm684, %v671, 0
        %v746 = vsel %vm684, %v672, 0
        %v749 = vsel %vm684, %v673, 0
        %v752 = vsel %vm684, %v674, 0
        %v755 = vsel %vm684, %v675, 0
        %v758 = vsel %vm684, %v676, 0
        %v761 = vsel %vm684, %v677, 0
        %v764 = vsel %vm684, %v678, 0
        %v767 = vsel %vm684, %v679, 0
        %v770 = vsel %vm684, %v680, 0
        %v773 = vsel %vm684, %v681, 0
        %v776 = vsel %vm684, %v682, 0
        %v779 = vsel %vm684, %v683, 0
        %vm781 = vcmask 1043456
        %v783 = vsel %vm781, %v519, 0
        %785 = vmatpush.bf16.msra.mxu0 0
        %786 = vmatpush.bf16.msra.mxu0 0
        %787 = vmatpush.bf16.msra.mxu0 0
        %788 = vmatpush.bf16.msra.mxu0 0
        %789 = vmatpush.bf16.msra.mxu0 0
        %790 = vmatpush.bf16.msra.mxu0 0
        %791 = vmatpush.bf16.msra.mxu0 0
        %792 = vmatpush.bf16.msra.mxu0 %v783
        %793 = vmatmul.bf16.gmra.mxu0 %v686
        %v794 = vpop.f32.mrf.mxu0
        %v795 = vadd.f32 %v522, %v794
        %v796 = vpop.f32.mrf.mxu0
        %v797 = vadd.f32 %v522, %v796
        %798 = vmatmul.bf16.gmra.mxu0 %v689
        %v799 = vpop.f32.mrf.mxu0
        %v800 = vadd.f32 %v522, %v799
        %v801 = vpop.f32.mrf.mxu0
        %v802 = vadd.f32 %v522, %v801
        %803 = vmatmul.bf16.gmra.mxu0 %v692
        %v804 = vpop.f32.mrf.mxu0
        %v805 = vadd.f32 %v522, %v804
        %v806 = vpop.f32.mrf.mxu0
        %v807 = vadd.f32 %v522, %v806
        %808 = vmatmul.bf16.gmra.mxu0 %v695
        %v809 = vpop.f32.mrf.mxu0
        %v810 = vadd.f32 %v522, %v809
        %v811 = vpop.f32.mrf.mxu0
        %v812 = vadd.f32 %v522, %v811
        %813 = vmatmul.bf16.gmra.mxu0 %v698
        %v814 = vpop.f32.mrf.mxu0
        %v815 = vadd.f32 %v522, %v814
        %v816 = vpop.f32.mrf.mxu0
        %v817 = vadd.f32 %v522, %v816
        %818 = vmatmul.bf16.gmra.mxu0 %v701
        %v819 = vpop.f32.mrf.mxu0
        %v820 = vadd.f32 %v522, %v819
        %v821 = vpop.f32.mrf.mxu0
        %v822 = vadd.f32 %v522, %v821
        %823 = vmatmul.bf16.gmra.mxu0 %v704
        %v824 = vpop.f32.mrf.mxu0
        %v825 = vadd.f32 %v522, %v824
        %v826 = vpop.f32.mrf.mxu0
        %v827 = vadd.f32 %v522, %v826
        %828 = vmatmul.bf16.gmra.mxu0 %v707
        %v829 = vpop.f32.mrf.mxu0
        %v830 = vadd.f32 %v522, %v829
        %v831 = vpop.f32.mrf.mxu0
        %v832 = vadd.f32 %v522, %v831
        %833 = vmatmul.bf16.gmra.mxu0 %v710
        %v834 = vpop.f32.mrf.mxu0
        %v835 = vadd.f32 %v522, %v834
        %v836 = vpop.f32.mrf.mxu0
        %v837 = vadd.f32 %v522, %v836
        %838 = vmatmul.bf16.gmra.mxu0 %v713
        %v839 = vpop.f32.mrf.mxu0
        %v840 = vadd.f32 %v522, %v839
        %v841 = vpop.f32.mrf.mxu0
        %v842 = vadd.f32 %v522, %v841
        %843 = vmatmul.bf16.gmra.mxu0 %v716
        %v844 = vpop.f32.mrf.mxu0
        %v845 = vadd.f32 %v522, %v844
        %v846 = vpop.f32.mrf.mxu0
        %v847 = vadd.f32 %v522, %v846
        %848 = vmatmul.bf16.gmra.mxu0 %v719
        %v849 = vpop.f32.mrf.mxu0
        %v850 = vadd.f32 %v522, %v849
        %v851 = vpop.f32.mrf.mxu0
        %v852 = vadd.f32 %v522, %v851
        %853 = vmatmul.bf16.gmra.mxu0 %v722
        %v854 = vpop.f32.mrf.mxu0
        %v855 = vadd.f32 %v522, %v854
        %v856 = vpop.f32.mrf.mxu0
        %v857 = vadd.f32 %v522, %v856
        %858 = vmatmul.bf16.gmra.mxu0 %v725
        %v859 = vpop.f32.mrf.mxu0
        %v860 = vadd.f32 %v522, %v859
        %v861 = vpop.f32.mrf.mxu0
        %v862 = vadd.f32 %v522, %v861
        %863 = vmatmul.bf16.gmra.mxu0 %v728
        %v864 = vpop.f32.mrf.mxu0
        %v865 = vadd.f32 %v522, %v864
        %v866 = vpop.f32.mrf.mxu0
        %v867 = vadd.f32 %v522, %v866
        %868 = vmatmul.bf16.gmra.mxu0 %v731
        %v869 = vpop.f32.mrf.mxu0
        %v870 = vadd.f32 %v522, %v869
        %v871 = vpop.f32.mrf.mxu0
        %v872 = vadd.f32 %v522, %v871
        %873 = vmatmul.bf16.gmra.mxu0 %v734
        %v874 = vpop.f32.mrf.mxu0
        %v875 = vadd.f32 %v522, %v874
        %v876 = vpop.f32.mrf.mxu0
        %v877 = vadd.f32 %v522, %v876
        %878 = vmatmul.bf16.gmra.mxu0 %v737
        %v879 = vpop.f32.mrf.mxu0
        %v880 = vadd.f32 %v522, %v879
        %v881 = vpop.f32.mrf.mxu0
        %v882 = vadd.f32 %v522, %v881
        %883 = vmatmul.bf16.gmra.mxu0 %v740
        %v884 = vpop.f32.mrf.mxu0
        %v885 = vadd.f32 %v522, %v884
        %v886 = vpop.f32.mrf.mxu0
        %v887 = vadd.f32 %v522, %v886
        %888 = vmatmul.bf16.gmra.mxu0 %v743
        %v889 = vpop.f32.mrf.mxu0
        %v890 = vadd.f32 %v522, %v889
        %v891 = vpop.f32.mrf.mxu0
        %v892 = vadd.f32 %v522, %v891
        %893 = vmatmul.bf16.gmra.mxu0 %v746
        %v894 = vpop.f32.mrf.mxu0
        %v895 = vadd.f32 %v522, %v894
        %v896 = vpop.f32.mrf.mxu0
        %v897 = vadd.f32 %v522, %v896
        %898 = vmatmul.bf16.gmra.mxu0 %v749
        %v899 = vpop.f32.mrf.mxu0
        %v900 = vadd.f32 %v522, %v899
        %v901 = vpop.f32.mrf.mxu0
        %v902 = vadd.f32 %v522, %v901
        %903 = vmatmul.bf16.gmra.mxu0 %v752
        %v904 = vpop.f32.mrf.mxu0
        %v905 = vadd.f32 %v522, %v904
        %v906 = vpop.f32.mrf.mxu0
        %v907 = vadd.f32 %v522, %v906
        %908 = vmatmul.bf16.gmra.mxu0 %v755
        %v909 = vpop.f32.mrf.mxu0
        %v910 = vadd.f32 %v522, %v909
        %v911 = vpop.f32.mrf.mxu0
        %v912 = vadd.f32 %v522, %v911
        %913 = vmatmul.bf16.gmra.mxu0 %v758
        %v914 = vpop.f32.mrf.mxu0
        %v915 = vadd.f32 %v522, %v914
        %v916 = vpop.f32.mrf.mxu0
        %v917 = vadd.f32 %v522, %v916
        %918 = vmatmul.bf16.gmra.mxu0 %v761
        %v919 = vpop.f32.mrf.mxu0
        %v920 = vadd.f32 %v522, %v919
        %v921 = vpop.f32.mrf.mxu0
        %v922 = vadd.f32 %v522, %v921
        %923 = vmatmul.bf16.gmra.mxu0 %v764
        %v924 = vpop.f32.mrf.mxu0
        %v925 = vadd.f32 %v522, %v924
        %v926 = vpop.f32.mrf.mxu0
        %v927 = vadd.f32 %v522, %v926
        %928 = vmatmul.bf16.gmra.mxu0 %v767
        %v929 = vpop.f32.mrf.mxu0
        %v930 = vadd.f32 %v522, %v929
        %v931 = vpop.f32.mrf.mxu0
        %v932 = vadd.f32 %v522, %v931
        %933 = vmatmul.bf16.gmra.mxu0 %v770
        %v934 = vpop.f32.mrf.mxu0
        %v935 = vadd.f32 %v522, %v934
        %v936 = vpop.f32.mrf.mxu0
        %v937 = vadd.f32 %v522, %v936
        %938 = vmatmul.bf16.gmra.mxu0 %v773
        %v939 = vpop.f32.mrf.mxu0
        %v940 = vadd.f32 %v522, %v939
        %v941 = vpop.f32.mrf.mxu0
        %v942 = vadd.f32 %v522, %v941
        %943 = vmatmul.bf16.gmra.mxu0 %v776
        %v944 = vpop.f32.mrf.mxu0
        %v945 = vadd.f32 %v522, %v944
        %v946 = vpop.f32.mrf.mxu0
        %v947 = vadd.f32 %v522, %v946
        %948 = vmatmul.bf16.gmra.mxu0 %v779
        %v949 = vpop.f32.mrf.mxu0
        %v950 = vadd.f32 %v522, %v949
        %v951 = vpop.f32.mrf.mxu0
        %v952 = vadd.f32 %v522, %v951
        %953 = vdwg.mxu0
        %v954 = vmax.f32 %v795, 0.0
        %v955 = vmax.f32 %v797, 0.0
        %v956 = vmax.f32 %v800, 0.0
        %v957 = vmax.f32 %v802, 0.0
        %v958 = vmax.f32 %v805, 0.0
        %v959 = vmax.f32 %v807, 0.0
        %v960 = vmax.f32 %v810, 0.0
        %v961 = vmax.f32 %v812, 0.0
        %v962 = vmax.f32 %v815, 0.0
        %v963 = vmax.f32 %v817, 0.0
        %v964 = vmax.f32 %v820, 0.0
        %v965 = vmax.f32 %v822, 0.0
        %v966 = vmax.f32 %v825, 0.0
        %v967 = vmax.f32 %v827, 0.0
        %v968 = vmax.f32 %v830, 0.0
        %v969 = vmax.f32 %v832, 0.0
        %v970 = vmax.f32 %v835, 0.0
        %v971 = vmax.f32 %v837, 0.0
        %v972 = vmax.f32 %v840, 0.0
        %v973 = vmax.f32 %v842, 0.0
        %v974 = vmax.f32 %v845, 0.0
        %v975 = vmax.f32 %v847, 0.0
        %v976 = vmax.f32 %v850, 0.0
        %v977 = vmax.f32 %v852, 0.0
        %v978 = vmax.f32 %v855, 0.0
        %v979 = vmax.f32 %v857, 0.0
        %v980 = vmax.f32 %v860, 0.0
        %v981 = vmax.f32 %v862, 0.0
        %v982 = vmax.f32 %v865, 0.0
        %v983 = vmax.f32 %v867, 0.0
        %v984 = vmax.f32 %v870, 0.0
        %v985 = vmax.f32 %v872, 0.0
        %v986 = vmax.f32 %v875, 0.0
        %v987 = vmax.f32 %v877, 0.0
        %v988 = vmax.f32 %v880, 0.0
        %v989 = vmax.f32 %v882, 0.0
        %v990 = vmax.f32 %v885, 0.0
        %v991 = vmax.f32 %v887, 0.0
        %v992 = vmax.f32 %v890, 0.0
        %v993 = vmax.f32 %v892, 0.0
        %v994 = vmax.f32 %v895, 0.0
        %v995 = vmax.f32 %v897, 0.0
        %v996 = vmax.f32 %v900, 0.0
        %v997 = vmax.f32 %v902, 0.0
        %v998 = vmax.f32 %v905, 0.0
        %v999 = vmax.f32 %v907, 0.0
        %v1000 = vmax.f32 %v910, 0.0
        %v1001 = vmax.f32 %v912, 0.0
        %v1002 = vmax.f32 %v915, 0.0
        %v1003 = vmax.f32 %v917, 0.0
        %v1004 = vmax.f32 %v920, 0.0
        %v1005 = vmax.f32 %v922, 0.0
        %v1006 = vmax.f32 %v925, 0.0
        %v1007 = vmax.f32 %v927, 0.0
        %v1008 = vmax.f32 %v930, 0.0
        %v1009 = vmax.f32 %v932, 0.0
        %v1010 = vmax.f32 %v935, 0.0
        %v1011 = vmax.f32 %v937, 0.0
        %v1012 = vmax.f32 %v940, 0.0
        %v1013 = vmax.f32 %v942, 0.0
        %v1014 = vmax.f32 %v945, 0.0
        %v1015 = vmax.f32 %v947, 0.0
        %v1016 = vmax.f32 %v950, 0.0
        %v1017 = vmax.f32 %v952, 0.0
        %v1018 = vpack.c.bf16 %v955, %v954
        %v1019 = vpack.c.bf16 %v957, %v956
        %v1020 = vpack.c.bf16 %v959, %v958
        %v1021 = vpack.c.bf16 %v961, %v960
        %v1022 = vpack.c.bf16 %v963, %v962
        %v1023 = vpack.c.bf16 %v965, %v964
        %v1024 = vpack.c.bf16 %v967, %v966
        %v1025 = vpack.c.bf16 %v969, %v968
        %v1026 = vpack.c.bf16 %v971, %v970
        %v1027 = vpack.c.bf16 %v973, %v972
        %v1028 = vpack.c.bf16 %v975, %v974
        %v1029 = vpack.c.bf16 %v977, %v976
        %v1030 = vpack.c.bf16 %v979, %v978
        %v1031 = vpack.c.bf16 %v981, %v980
        %v1032 = vpack.c.bf16 %v983, %v982
        %v1033 = vpack.c.bf16 %v985, %v984
        %v1034 = vpack.c.bf16 %v987, %v986
        %v1035 = vpack.c.bf16 %v989, %v988
        %v1036 = vpack.c.bf16 %v991, %v990
        %v1037 = vpack.c.bf16 %v993, %v992
        %v1038 = vpack.c.bf16 %v995, %v994
        %v1039 = vpack.c.bf16 %v997, %v996
        %v1040 = vpack.c.bf16 %v999, %v998
        %v1041 = vpack.c.bf16 %v1001, %v1000
        %v1042 = vpack.c.bf16 %v1003, %v1002
        %v1043 = vpack.c.bf16 %v1005, %v1004
        %v1044 = vpack.c.bf16 %v1007, %v1006
        %v1045 = vpack.c.bf16 %v1009, %v1008
        %v1046 = vpack.c.bf16 %v1011, %v1010
        %v1047 = vpack.c.bf16 %v1013, %v1012
        %v1048 = vpack.c.bf16 %v1015, %v1014
        %v1049 = vpack.c.bf16 %v1017, %v1016
        %v1050 = vld [vmem:[%s7] sm:$0xf]
        %v1051 = vld [vmem:[%s8] sm:$0x1]
        %v1053 = vperm.slane %v1051, 0
        %v1056 = vsel %vm684, %v1018, 0
        %v1059 = vsel %vm684, %v1019, 0
        %v1062 = vsel %vm684, %v1020, 0
        %v1065 = vsel %vm684, %v1021, 0
        %v1068 = vsel %vm684, %v1022, 0
        %v1071 = vsel %vm684, %v1023, 0
        %v1074 = vsel %vm684, %v1024, 0
        %v1077 = vsel %vm684, %v1025, 0
        %v1080 = vsel %vm684, %v1026, 0
        %v1083 = vsel %vm684, %v1027, 0
        %v1086 = vsel %vm684, %v1028, 0
        %v1089 = vsel %vm684, %v1029, 0
        %v1092 = vsel %vm684, %v1030, 0
        %v1095 = vsel %vm684, %v1031, 0
        %v1098 = vsel %vm684, %v1032, 0
        %v1101 = vsel %vm684, %v1033, 0
        %v1104 = vsel %vm684, %v1034, 0
        %v1107 = vsel %vm684, %v1035, 0
        %v1110 = vsel %vm684, %v1036, 0
        %v1113 = vsel %vm684, %v1037, 0
        %v1116 = vsel %vm684, %v1038, 0
        %v1119 = vsel %vm684, %v1039, 0
        %v1122 = vsel %vm684, %v1040, 0
        %v1125 = vsel %vm684, %v1041, 0
        %v1128 = vsel %vm684, %v1042, 0
        %v1131 = vsel %vm684, %v1043, 0
        %v1134 = vsel %vm684, %v1044, 0
        %v1137 = vsel %vm684, %v1045, 0
        %v1140 = vsel %vm684, %v1046, 0
        %v1143 = vsel %vm684, %v1047, 0
        %v1146 = vsel %vm684, %v1048, 0
        %v1149 = vsel %vm684, %v1049, 0
        %v1152 = vsel %vm781, %v1050, 0
        %1154 = vmatpush.bf16.msra.mxu0 0
        %1155 = vmatpush.bf16.msra.mxu0 0
        %1156 = vmatpush.bf16.msra.mxu0 0
        %1157 = vmatpush.bf16.msra.mxu0 0
        %1158 = vmatpush.bf16.msra.mxu0 0
        %1159 = vmatpush.bf16.msra.mxu0 0
        %1160 = vmatpush.bf16.msra.mxu0 0
        %1161 = vmatpush.bf16.msra.mxu0 %v1152
        %1162 = vmatmul.bf16.gmra.mxu0 %v1056
        %v1163 = vpop.f32.mrf.mxu0
        %v1164 = vadd.f32 %v1053, %v1163
        %v1165 = vpop.f32.mrf.mxu0
        %v1166 = vadd.f32 %v1053, %v1165
        %1167 = vmatmul.bf16.gmra.mxu0 %v1059
        %v1168 = vpop.f32.mrf.mxu0
        %v1169 = vadd.f32 %v1053, %v1168
        %v1170 = vpop.f32.mrf.mxu0
        %v1171 = vadd.f32 %v1053, %v1170
        %1172 = vmatmul.bf16.gmra.mxu0 %v1062
        %v1173 = vpop.f32.mrf.mxu0
        %v1174 = vadd.f32 %v1053, %v1173
        %v1175 = vpop.f32.mrf.mxu0
        %v1176 = vadd.f32 %v1053, %v1175
        %1177 = vmatmul.bf16.gmra.mxu0 %v1065
        %v1178 = vpop.f32.mrf.mxu0
        %v1179 = vadd.f32 %v1053, %v1178
        %v1180 = vpop.f32.mrf.mxu0
        %v1181 = vadd.f32 %v1053, %v1180
        %1182 = vmatmul.bf16.gmra.mxu0 %v1068
        %v1183 = vpop.f32.mrf.mxu0
        %v1184 = vadd.f32 %v1053, %v1183
        %v1185 = vpop.f32.mrf.mxu0
        %v1186 = vadd.f32 %v1053, %v1185
        %1187 = vmatmul.bf16.gmra.mxu0 %v1071
        %v1188 = vpop.f32.mrf.mxu0
        %v1189 = vadd.f32 %v1053, %v1188
        %v1190 = vpop.f32.mrf.mxu0
        %v1191 = vadd.f32 %v1053, %v1190
        %1192 = vmatmul.bf16.gmra.mxu0 %v1074
        %v1193 = vpop.f32.mrf.mxu0
        %v1194 = vadd.f32 %v1053, %v1193
        %v1195 = vpop.f32.mrf.mxu0
        %v1196 = vadd.f32 %v1053, %v1195
        %1197 = vmatmul.bf16.gmra.mxu0 %v1077
        %v1198 = vpop.f32.mrf.mxu0
        %v1199 = vadd.f32 %v1053, %v1198
        %v1200 = vpop.f32.mrf.mxu0
        %v1201 = vadd.f32 %v1053, %v1200
        %1202 = vmatmul.bf16.gmra.mxu0 %v1080
        %v1203 = vpop.f32.mrf.mxu0
        %v1204 = vadd.f32 %v1053, %v1203
        %v1205 = vpop.f32.mrf.mxu0
        %v1206 = vadd.f32 %v1053, %v1205
        %1207 = vmatmul.bf16.gmra.mxu0 %v1083
        %v1208 = vpop.f32.mrf.mxu0
        %v1209 = vadd.f32 %v1053, %v1208
        %v1210 = vpop.f32.mrf.mxu0
        %v1211 = vadd.f32 %v1053, %v1210
        %1212 = vmatmul.bf16.gmra.mxu0 %v1086
        %v1213 = vpop.f32.mrf.mxu0
        %v1214 = vadd.f32 %v1053, %v1213
        %v1215 = vpop.f32.mrf.mxu0
        %v1216 = vadd.f32 %v1053, %v1215
        %1217 = vmatmul.bf16.gmra.mxu0 %v1089
        %v1218 = vpop.f32.mrf.mxu0
        %v1219 = vadd.f32 %v1053, %v1218
        %v1220 = vpop.f32.mrf.mxu0
        %v1221 = vadd.f32 %v1053, %v1220
        %1222 = vmatmul.bf16.gmra.mxu0 %v1092
        %v1223 = vpop.f32.mrf.mxu0
        %v1224 = vadd.f32 %v1053, %v1223
        %v1225 = vpop.f32.mrf.mxu0
        %v1226 = vadd.f32 %v1053, %v1225
        %1227 = vmatmul.bf16.gmra.mxu0 %v1095
        %v1228 = vpop.f32.mrf.mxu0
        %v1229 = vadd.f32 %v1053, %v1228
        %v1230 = vpop.f32.mrf.mxu0
        %v1231 = vadd.f32 %v1053, %v1230
        %1232 = vmatmul.bf16.gmra.mxu0 %v1098
        %v1233 = vpop.f32.mrf.mxu0
        %v1234 = vadd.f32 %v1053, %v1233
        %v1235 = vpop.f32.mrf.mxu0
        %v1236 = vadd.f32 %v1053, %v1235
        %1237 = vmatmul.bf16.gmra.mxu0 %v1101
        %v1238 = vpop.f32.mrf.mxu0
        %v1239 = vadd.f32 %v1053, %v1238
        %v1240 = vpop.f32.mrf.mxu0
        %v1241 = vadd.f32 %v1053, %v1240
        %1242 = vmatmul.bf16.gmra.mxu0 %v1104
        %v1243 = vpop.f32.mrf.mxu0
        %v1244 = vadd.f32 %v1053, %v1243
        %v1245 = vpop.f32.mrf.mxu0
        %v1246 = vadd.f32 %v1053, %v1245
        %1247 = vmatmul.bf16.gmra.mxu0 %v1107
        %v1248 = vpop.f32.mrf.mxu0
        %v1249 = vadd.f32 %v1053, %v1248
        %v1250 = vpop.f32.mrf.mxu0
        %v1251 = vadd.f32 %v1053, %v1250
        %1252 = vmatmul.bf16.gmra.mxu0 %v1110
        %v1253 = vpop.f32.mrf.mxu0
        %v1254 = vadd.f32 %v1053, %v1253
        %v1255 = vpop.f32.mrf.mxu0
        %v1256 = vadd.f32 %v1053, %v1255
        %1257 = vmatmul.bf16.gmra.mxu0 %v1113
        %v1258 = vpop.f32.mrf.mxu0
        %v1259 = vadd.f32 %v1053, %v1258
        %v1260 = vpop.f32.mrf.mxu0
        %v1261 = vadd.f32 %v1053, %v1260
        %1262 = vmatmul.bf16.gmra.mxu0 %v1116
        %v1263 = vpop.f32.mrf.mxu0
        %v1264 = vadd.f32 %v1053, %v1263
        %v1265 = vpop.f32.mrf.mxu0
        %v1266 = vadd.f32 %v1053, %v1265
        %1267 = vmatmul.bf16.gmra.mxu0 %v1119
        %v1268 = vpop.f32.mrf.mxu0
        %v1269 = vadd.f32 %v1053, %v1268
        %v1270 = vpop.f32.mrf.mxu0
        %v1271 = vadd.f32 %v1053, %v1270
        %1272 = vmatmul.bf16.gmra.mxu0 %v1122
        %v1273 = vpop.f32.mrf.mxu0
        %v1274 = vadd.f32 %v1053, %v1273
        %v1275 = vpop.f32.mrf.mxu0
        %v1276 = vadd.f32 %v1053, %v1275
        %1277 = vmatmul.bf16.gmra.mxu0 %v1125
        %v1278 = vpop.f32.mrf.mxu0
        %v1279 = vadd.f32 %v1053, %v1278
        %v1280 = vpop.f32.mrf.mxu0
        %v1281 = vadd.f32 %v1053, %v1280
        %1282 = vmatmul.bf16.gmra.mxu0 %v1128
        %v1283 = vpop.f32.mrf.mxu0
        %v1284 = vadd.f32 %v1053, %v1283
        %v1285 = vpop.f32.mrf.mxu0
        %v1286 = vadd.f32 %v1053, %v1285
        %1287 = vmatmul.bf16.gmra.mxu0 %v1131
        %v1288 = vpop.f32.mrf.mxu0
        %v1289 = vadd.f32 %v1053, %v1288
        %v1290 = vpop.f32.mrf.mxu0
        %v1291 = vadd.f32 %v1053, %v1290
        %1292 = vmatmul.bf16.gmra.mxu0 %v1134
        %v1293 = vpop.f32.mrf.mxu0
        %v1294 = vadd.f32 %v1053, %v1293
        %v1295 = vpop.f32.mrf.mxu0
        %v1296 = vadd.f32 %v1053, %v1295
        %1297 = vmatmul.bf16.gmra.mxu0 %v1137
        %v1298 = vpop.f32.mrf.mxu0
        %v1299 = vadd.f32 %v1053, %v1298
        %v1300 = vpop.f32.mrf.mxu0
        %v1301 = vadd.f32 %v1053, %v1300
        %1302 = vmatmul.bf16.gmra.mxu0 %v1140
        %v1303 = vpop.f32.mrf.mxu0
        %v1304 = vadd.f32 %v1053, %v1303
        %v1305 = vpop.f32.mrf.mxu0
        %v1306 = vadd.f32 %v1053, %v1305
        %1307 = vmatmul.bf16.gmra.mxu0 %v1143
        %v1308 = vpop.f32.mrf.mxu0
        %v1309 = vadd.f32 %v1053, %v1308
        %v1310 = vpop.f32.mrf.mxu0
        %v1311 = vadd.f32 %v1053, %v1310
        %1312 = vmatmul.bf16.gmra.mxu0 %v1146
        %v1313 = vpop.f32.mrf.mxu0
        %v1314 = vadd.f32 %v1053, %v1313
        %v1315 = vpop.f32.mrf.mxu0
        %v1316 = vadd.f32 %v1053, %v1315
        %1317 = vmatmul.bf16.gmra.mxu0 %v1149
        %v1318 = vpop.f32.mrf.mxu0
        %v1319 = vadd.f32 %v1053, %v1318
        %v1320 = vpop.f32.mrf.mxu0
        %v1321 = vadd.f32 %v1053, %v1320
        %1322 = vdwg.mxu0
        %v1323 = vpack.c.bf16 %v1164, %v1164
        %v1324 = vpack.c.bf16 %v1166, %v1166
        %v1325 = vpack.c.bf16 %v1169, %v1169
        %v1326 = vpack.c.bf16 %v1171, %v1171
        %v1327 = vpack.c.bf16 %v1174, %v1174
        %v1328 = vpack.c.bf16 %v1176, %v1176
        %v1329 = vpack.c.bf16 %v1179, %v1179
        %v1330 = vpack.c.bf16 %v1181, %v1181
        %v1331 = vpack.c.bf16 %v1184, %v1184
        %v1332 = vpack.c.bf16 %v1186, %v1186
        %v1333 = vpack.c.bf16 %v1189, %v1189
        %v1334 = vpack.c.bf16 %v1191, %v1191
        %v1335 = vpack.c.bf16 %v1194, %v1194
        %v1336 = vpack.c.bf16 %v1196, %v1196
        %v1337 = vpack.c.bf16 %v1199, %v1199
        %v1338 = vpack.c.bf16 %v1201, %v1201
        %v1339 = vpack.c.bf16 %v1204, %v1204
        %v1340 = vpack.c.bf16 %v1206, %v1206
        %v1341 = vpack.c.bf16 %v1209, %v1209
        %v1342 = vpack.c.bf16 %v1211, %v1211
        %v1343 = vpack.c.bf16 %v1214, %v1214
        %v1344 = vpack.c.bf16 %v1216, %v1216
        %v1345 = vpack.c.bf16 %v1219, %v1219
        %v1346 = vpack.c.bf16 %v1221, %v1221
        %v1347 = vpack.c.bf16 %v1224, %v1224
        %v1348 = vpack.c.bf16 %v1226, %v1226
        %v1349 = vpack.c.bf16 %v1229, %v1229
        %v1350 = vpack.c.bf16 %v1231, %v1231
        %v1351 = vpack.c.bf16 %v1234, %v1234
        %v1352 = vpack.c.bf16 %v1236, %v1236
        %v1353 = vpack.c.bf16 %v1239, %v1239
        %v1354 = vpack.c.bf16 %v1241, %v1241
        %v1355 = vpack.c.bf16 %v1244, %v1244
        %v1356 = vpack.c.bf16 %v1246, %v1246
        %v1357 = vpack.c.bf16 %v1249, %v1249
        %v1358 = vpack.c.bf16 %v1251, %v1251
        %v1359 = vpack.c.bf16 %v1254, %v1254
        %v1360 = vpack.c.bf16 %v1256, %v1256
        %v1361 = vpack.c.bf16 %v1259, %v1259
        %v1362 = vpack.c.bf16 %v1261, %v1261
        %v1363 = vpack.c.bf16 %v1264, %v1264
        %v1364 = vpack.c.bf16 %v1266, %v1266
        %v1365 = vpack.c.bf16 %v1269, %v1269
        %v1366 = vpack.c.bf16 %v1271, %v1271
        %v1367 = vpack.c.bf16 %v1274, %v1274
        %v1368 = vpack.c.bf16 %v1276, %v1276
        %v1369 = vpack.c.bf16 %v1279, %v1279
        %v1370 = vpack.c.bf16 %v1281, %v1281
        %v1371 = vpack.c.bf16 %v1284, %v1284
        %v1372 = vpack.c.bf16 %v1286, %v1286
        %v1373 = vpack.c.bf16 %v1289, %v1289
        %v1374 = vpack.c.bf16 %v1291, %v1291
        %v1375 = vpack.c.bf16 %v1294, %v1294
        %v1376 = vpack.c.bf16 %v1296, %v1296
        %v1377 = vpack.c.bf16 %v1299, %v1299
        %v1378 = vpack.c.bf16 %v1301, %v1301
        %v1379 = vpack.c.bf16 %v1304, %v1304
        %v1380 = vpack.c.bf16 %v1306, %v1306
        %v1381 = vpack.c.bf16 %v1309, %v1309
        %v1382 = vpack.c.bf16 %v1311, %v1311
        %v1383 = vpack.c.bf16 %v1314, %v1314
        %v1384 = vpack.c.bf16 %v1316, %v1316
        %v1385 = vpack.c.bf16 %v1319, %v1319
        %v1386 = vpack.c.bf16 %v1321, %v1321
        %v1387 = vld [vmem:[%s451] sm:$0xf]
        %v1388 = vld [vmem:[%s451 + $0x4] sm:$0xf]
        %v1389 = vunpack.c.l.bf16 %v1387
        %v1390 = vunpack.c.l.bf16 %v1388
        %vm1391 = vcmask 261120
        %v1392 = vsel %vm1391, %v1389, 0.0
        %1393 = vadd.xlane.f32.xlu0 %v1392
        %v1394 = vpop.xlane.xlu0 %1393
        %v1395 = vsel %vm1391, %v1390, 0.0
        %1396 = vadd.xlane.f32.xlu0 %v1395
        %v1397 = vpop.xlane.xlu0 %1396
        %v1398 = vmax.f32 %v1394, 1.0
        %v1399 = vmax.f32 %v1397, 1.0
        %v1400 = vrcp.pop %v1398
        %v1401 = vrcp.pop %v1399
        %v1402 = vmul.f32 %v1389, %v1400
        %v1403 = vmul.f32 %v1390, %v1401
        %v1404 = vpack.c.bf16 %v1402, %v1402
        %v1405 = vpack.c.bf16 %v1403, %v1403
        %s1406 = smul.u32 %s25, 16
        %v1407 = vlaneseq
        %v1408 = vshrl.u32 %v1407, 7
        %v1409 = vadd.s32 %v1408, 8
        %v1410 = vstv %s1406
        %v1411 = vadd.s32 %v1410, %v1408
        %v1412 = vadd.s32 %v1410, %v1409
        %v1413 = vlaneseq
        %v1414 = vand.u32 %v1413, 127
        %vm1415 = vcmp.eq.s32.totalorder %v1411, %v1414
        %vm1416 = vcmp.eq.s32.totalorder %v1412, %v1414
        %v1417 = vsel %vm1415, 1, 0
        %v1418 = vsel %vm1416, 1, 0
        %v1419 = vcvt.s32.f32 %v1417
        %v1420 = vcvt.s32.f32 %v1418
        %v1421 = vmax.f32 %v1389, %v1419
        %v1422 = vmax.f32 %v1390, %v1420
        %v1425 = vrot.slane %v1404, 3
        %v1426 = vrot.slane %v1405, 3
        %vm1427 = vcmask 1040384
        %v1430 = vsel %vm1427, %v1404, %v1425
        %vm1432 = vcmask 1041409
        %v1433 = vsel %vm1432, %v1404, %v1425
        %v1435 = vrot.slane %v1433, 1
        %vm1436 = vcmask 1042434
        %v1437 = vsel %vm1436, %v1404, %v1425
        %v1439 = vrot.slane %v1437, 2
        %vm1440 = vcmask 1043459
        %v1441 = vsel %vm1440, %v1404, %v1425
        %v1443 = vrot.slane %v1441, 3
        %v1446 = vsel %vm1427, %v1405, %v1426
        %v1448 = vsel %vm1432, %v1405, %v1426
        %v1450 = vrot.slane %v1448, 1
        %v1451 = vsel %vm1436, %v1405, %v1426
        %v1453 = vrot.slane %v1451, 2
        %v1454 = vsel %vm1440, %v1405, %v1426
        %v1456 = vrot.slane %v1454, 3
        %v1457 = vunpack.i.l.s16 %v1430
        %v1458 = vunpack.i.h.s16 %v1430
        %v1459 = vunpack.i.l.s16 %v1435
        %v1460 = vunpack.i.h.s16 %v1435
        %v1461 = vunpack.i.l.s16 %v1439
        %v1462 = vunpack.i.h.s16 %v1439
        %v1463 = vunpack.i.l.s16 %v1443
        %v1464 = vunpack.i.h.s16 %v1443
        %v1465 = vunpack.i.l.s16 %v1446
        %v1466 = vunpack.i.h.s16 %v1446
        %v1467 = vunpack.i.l.s16 %v1450
        %v1468 = vunpack.i.h.s16 %v1450
        %v1469 = vunpack.i.l.s16 %v1453
        %v1470 = vunpack.i.h.s16 %v1453
        %v1471 = vunpack.i.l.s16 %v1456
        %v1472 = vunpack.i.h.s16 %v1456
        %v1473 = vpack.i.b16 %v1457, %v1457
        %v1474 = vperm.slane %v1473, 0
        %v1479 = vunpack.c.l.b16 %v1323
        %v1480 = vunpack.c.l.b16 %v1324
        %v1481 = vunpack.c.l.b16 %v1325
        %v1482 = vunpack.c.l.b16 %v1326
        %v1483 = vpack.c.b16 %v1480, %v1479
        %v1484 = vpack.c.b16 %v1482, %v1481
        %v1488 = vsel %vm1391, %v1474, 0
        %1490 = vmatpush.bf16.msra.mxu0 0
        %1491 = vmatpush.bf16.msra.mxu0 0
        %1492 = vmatpush.bf16.msra.mxu0 0
        %1493 = vmatpush.bf16.msra.mxu0 0
        %1494 = vmatpush.bf16.msra.mxu0 0
        %1495 = vmatpush.bf16.msra.mxu0 0
        %1496 = vmatpush.bf16.msra.mxu0 %v1484
        %1497 = vmatpush.bf16.msra.mxu0 %v1483
        %1498 = vmatmul.bf16.gmra.mxu0 %v1488
        %v1499 = vpop.f32.mrf.mxu0
        %v1500 = vadd.f32 0.0, %v1499
        %v1501 = vpop.f32.mrf.mxu0
        %1502 = vdwg.mxu0
        %v1503 = vpack.i.b16 %v1458, %v1458
        %v1504 = vperm.slane %v1503, 0
        %v1509 = vunpack.c.l.b16 %v1327
        %v1510 = vunpack.c.l.b16 %v1328
        %v1511 = vunpack.c.l.b16 %v1329
        %v1512 = vunpack.c.l.b16 %v1330
        %v1513 = vpack.c.b16 %v1510, %v1509
        %v1514 = vpack.c.b16 %v1512, %v1511
        %v1518 = vsel %vm1391, %v1504, 0
        %1520 = vmatpush.bf16.msra.mxu0 0
        %1521 = vmatpush.bf16.msra.mxu0 0
        %1522 = vmatpush.bf16.msra.mxu0 0
        %1523 = vmatpush.bf16.msra.mxu0 0
        %1524 = vmatpush.bf16.msra.mxu0 0
        %1525 = vmatpush.bf16.msra.mxu0 0
        %1526 = vmatpush.bf16.msra.mxu0 %v1514
        %1527 = vmatpush.bf16.msra.mxu0 %v1513
        %1528 = vmatmul.bf16.gmra.mxu0 %v1518
        %v1529 = vpop.f32.mrf.mxu0
        %v1530 = vadd.f32 0.0, %v1529
        %v1531 = vpop.f32.mrf.mxu0
        %1532 = vdwg.mxu0
        %v1533 = vpack.i.b16 %v1459, %v1459
        %v1534 = vperm.slane %v1533, 0
        %v1539 = vunpack.c.l.b16 %v1331
        %v1540 = vunpack.c.l.b16 %v1332
        %v1541 = vunpack.c.l.b16 %v1333
        %v1542 = vunpack.c.l.b16 %v1334
        %v1543 = vpack.c.b16 %v1540, %v1539
        %v1544 = vpack.c.b16 %v1542, %v1541
        %v1548 = vsel %vm1391, %v1534, 0
        %1550 = vmatpush.bf16.msra.mxu0 0
        %1551 = vmatpush.bf16.msra.mxu0 0
        %1552 = vmatpush.bf16.msra.mxu0 0
        %1553 = vmatpush.bf16.msra.mxu0 0
        %1554 = vmatpush.bf16.msra.mxu0 0
        %1555 = vmatpush.bf16.msra.mxu0 0
        %1556 = vmatpush.bf16.msra.mxu0 %v1544
        %1557 = vmatpush.bf16.msra.mxu0 %v1543
        %1558 = vmatmul.bf16.gmra.mxu0 %v1548
        %v1559 = vpop.f32.mrf.mxu0
        %v1560 = vadd.f32 0.0, %v1559
        %v1561 = vpop.f32.mrf.mxu0
        %1562 = vdwg.mxu0
        %v1563 = vpack.i.b16 %v1460, %v1460
        %v1564 = vperm.slane %v1563, 0
        %v1569 = vunpack.c.l.b16 %v1335
        %v1570 = vunpack.c.l.b16 %v1336
        %v1571 = vunpack.c.l.b16 %v1337
        %v1572 = vunpack.c.l.b16 %v1338
        %v1573 = vpack.c.b16 %v1570, %v1569
        %v1574 = vpack.c.b16 %v1572, %v1571
        %v1578 = vsel %vm1391, %v1564, 0
        %1580 = vmatpush.bf16.msra.mxu0 0
        %1581 = vmatpush.bf16.msra.mxu0 0
        %1582 = vmatpush.bf16.msra.mxu0 0
        %1583 = vmatpush.bf16.msra.mxu0 0
        %1584 = vmatpush.bf16.msra.mxu0 0
        %1585 = vmatpush.bf16.msra.mxu0 0
        %1586 = vmatpush.bf16.msra.mxu0 %v1574
        %1587 = vmatpush.bf16.msra.mxu0 %v1573
        %1588 = vmatmul.bf16.gmra.mxu0 %v1578
        %v1589 = vpop.f32.mrf.mxu0
        %v1590 = vadd.f32 0.0, %v1589
        %v1591 = vpop.f32.mrf.mxu0
        %1592 = vdwg.mxu0
        %v1593 = vpack.i.b16 %v1461, %v1461
        %v1594 = vperm.slane %v1593, 0
        %v1599 = vunpack.c.l.b16 %v1339
        %v1600 = vunpack.c.l.b16 %v1340
        %v1601 = vunpack.c.l.b16 %v1341
        %v1602 = vunpack.c.l.b16 %v1342
        %v1603 = vpack.c.b16 %v1600, %v1599
        %v1604 = vpack.c.b16 %v1602, %v1601
        %v1608 = vsel %vm1391, %v1594, 0
        %1610 = vmatpush.bf16.msra.mxu0 0
        %1611 = vmatpush.bf16.msra.mxu0 0
        %1612 = vmatpush.bf16.msra.mxu0 0
        %1613 = vmatpush.bf16.msra.mxu0 0
        %1614 = vmatpush.bf16.msra.mxu0 0
        %1615 = vmatpush.bf16.msra.mxu0 0
        %1616 = vmatpush.bf16.msra.mxu0 %v1604
        %1617 = vmatpush.bf16.msra.mxu0 %v1603
        %1618 = vmatmul.bf16.gmra.mxu0 %v1608
        %v1619 = vpop.f32.mrf.mxu0
        %v1620 = vadd.f32 0.0, %v1619
        %v1621 = vpop.f32.mrf.mxu0
        %1622 = vdwg.mxu0
        %v1623 = vpack.i.b16 %v1462, %v1462
        %v1624 = vperm.slane %v1623, 0
        %v1629 = vunpack.c.l.b16 %v1343
        %v1630 = vunpack.c.l.b16 %v1344
        %v1631 = vunpack.c.l.b16 %v1345
        %v1632 = vunpack.c.l.b16 %v1346
        %v1633 = vpack.c.b16 %v1630, %v1629
        %v1634 = vpack.c.b16 %v1632, %v1631
        %v1638 = vsel %vm1391, %v1624, 0
        %1640 = vmatpush.bf16.msra.mxu0 0
        %1641 = vmatpush.bf16.msra.mxu0 0
        %1642 = vmatpush.bf16.msra.mxu0 0
        %1643 = vmatpush.bf16.msra.mxu0 0
        %1644 = vmatpush.bf16.msra.mxu0 0
        %1645 = vmatpush.bf16.msra.mxu0 0
        %1646 = vmatpush.bf16.msra.mxu0 %v1634
        %1647 = vmatpush.bf16.msra.mxu0 %v1633
        %1648 = vmatmul.bf16.gmra.mxu0 %v1638
        %v1649 = vpop.f32.mrf.mxu0
        %v1650 = vadd.f32 0.0, %v1649
        %v1651 = vpop.f32.mrf.mxu0
        %1652 = vdwg.mxu0
        %v1653 = vpack.i.b16 %v1463, %v1463
        %v1654 = vperm.slane %v1653, 0
        %v1659 = vunpack.c.l.b16 %v1347
        %v1660 = vunpack.c.l.b16 %v1348
        %v1661 = vunpack.c.l.b16 %v1349
        %v1662 = vunpack.c.l.b16 %v1350
        %v1663 = vpack.c.b16 %v1660, %v1659
        %v1664 = vpack.c.b16 %v1662, %v1661
        %v1668 = vsel %vm1391, %v1654, 0
        %1670 = vmatpush.bf16.msra.mxu0 0
        %1671 = vmatpush.bf16.msra.mxu0 0
        %1672 = vmatpush.bf16.msra.mxu0 0
        %1673 = vmatpush.bf16.msra.mxu0 0
        %1674 = vmatpush.bf16.msra.mxu0 0
        %1675 = vmatpush.bf16.msra.mxu0 0
        %1676 = vmatpush.bf16.msra.mxu0 %v1664
        %1677 = vmatpush.bf16.msra.mxu0 %v1663
        %1678 = vmatmul.bf16.gmra.mxu0 %v1668
        %v1679 = vpop.f32.mrf.mxu0
        %v1680 = vadd.f32 0.0, %v1679
        %v1681 = vpop.f32.mrf.mxu0
        %1682 = vdwg.mxu0
        %v1683 = vpack.i.b16 %v1464, %v1464
        %v1684 = vperm.slane %v1683, 0
        %v1689 = vunpack.c.l.b16 %v1351
        %v1690 = vunpack.c.l.b16 %v1352
        %v1691 = vunpack.c.l.b16 %v1353
        %v1692 = vunpack.c.l.b16 %v1354
        %v1693 = vpack.c.b16 %v1690, %v1689
        %v1694 = vpack.c.b16 %v1692, %v1691
        %v1698 = vsel %vm1391, %v1684, 0
        %1700 = vmatpush.bf16.msra.mxu0 0
        %1701 = vmatpush.bf16.msra.mxu0 0
        %1702 = vmatpush.bf16.msra.mxu0 0
        %1703 = vmatpush.bf16.msra.mxu0 0
        %1704 = vmatpush.bf16.msra.mxu0 0
        %1705 = vmatpush.bf16.msra.mxu0 0
        %1706 = vmatpush.bf16.msra.mxu0 %v1694
        %1707 = vmatpush.bf16.msra.mxu0 %v1693
        %1708 = vmatmul.bf16.gmra.mxu0 %v1698
        %v1709 = vpop.f32.mrf.mxu0
        %v1710 = vadd.f32 0.0, %v1709
        %v1711 = vpop.f32.mrf.mxu0
        %1712 = vdwg.mxu0
        %v1713 = vpack.i.b16 %v1465, %v1465
        %v1714 = vperm.slane %v1713, 0
        %v1719 = vunpack.c.l.b16 %v1355
        %v1720 = vunpack.c.l.b16 %v1356
        %v1721 = vunpack.c.l.b16 %v1357
        %v1722 = vunpack.c.l.b16 %v1358
        %v1723 = vpack.c.b16 %v1720, %v1719
        %v1724 = vpack.c.b16 %v1722, %v1721
        %v1728 = vsel %vm1391, %v1714, 0
        %1730 = vmatpush.bf16.msra.mxu0 0
        %1731 = vmatpush.bf16.msra.mxu0 0
        %1732 = vmatpush.bf16.msra.mxu0 0
        %1733 = vmatpush.bf16.msra.mxu0 0
        %1734 = vmatpush.bf16.msra.mxu0 0
        %1735 = vmatpush.bf16.msra.mxu0 0
        %1736 = vmatpush.bf16.msra.mxu0 %v1724
        %1737 = vmatpush.bf16.msra.mxu0 %v1723
        %1738 = vmatmul.bf16.gmra.mxu0 %v1728
        %v1739 = vpop.f32.mrf.mxu0
        %v1740 = vadd.f32 0.0, %v1739
        %v1741 = vpop.f32.mrf.mxu0
        %1742 = vdwg.mxu0
        %v1743 = vpack.i.b16 %v1466, %v1466
        %v1744 = vperm.slane %v1743, 0
        %v1749 = vunpack.c.l.b16 %v1359
        %v1750 = vunpack.c.l.b16 %v1360
        %v1751 = vunpack.c.l.b16 %v1361
        %v1752 = vunpack.c.l.b16 %v1362
        %v1753 = vpack.c.b16 %v1750, %v1749
        %v1754 = vpack.c.b16 %v1752, %v1751
        %v1758 = vsel %vm1391, %v1744, 0
        %1760 = vmatpush.bf16.msra.mxu0 0
        %1761 = vmatpush.bf16.msra.mxu0 0
        %1762 = vmatpush.bf16.msra.mxu0 0
        %1763 = vmatpush.bf16.msra.mxu0 0
        %1764 = vmatpush.bf16.msra.mxu0 0
        %1765 = vmatpush.bf16.msra.mxu0 0
        %1766 = vmatpush.bf16.msra.mxu0 %v1754
        %1767 = vmatpush.bf16.msra.mxu0 %v1753
        %1768 = vmatmul.bf16.gmra.mxu0 %v1758
        %v1769 = vpop.f32.mrf.mxu0
        %v1770 = vadd.f32 0.0, %v1769
        %v1771 = vpop.f32.mrf.mxu0
        %1772 = vdwg.mxu0
        %v1773 = vpack.i.b16 %v1467, %v1467
        %v1774 = vperm.slane %v1773, 0
        %v1779 = vunpack.c.l.b16 %v1363
        %v1780 = vunpack.c.l.b16 %v1364
        %v1781 = vunpack.c.l.b16 %v1365
        %v1782 = vunpack.c.l.b16 %v1366
        %v1783 = vpack.c.b16 %v1780, %v1779
        %v1784 = vpack.c.b16 %v1782, %v1781
        %v1788 = vsel %vm1391, %v1774, 0
        %1790 = vmatpush.bf16.msra.mxu0 0
        %1791 = vmatpush.bf16.msra.mxu0 0
        %1792 = vmatpush.bf16.msra.mxu0 0
        %1793 = vmatpush.bf16.msra.mxu0 0
        %1794 = vmatpush.bf16.msra.mxu0 0
        %1795 = vmatpush.bf16.msra.mxu0 0
        %1796 = vmatpush.bf16.msra.mxu0 %v1784
        %1797 = vmatpush.bf16.msra.mxu0 %v1783
        %1798 = vmatmul.bf16.gmra.mxu0 %v1788
        %v1799 = vpop.f32.mrf.mxu0
        %v1800 = vadd.f32 0.0, %v1799
        %v1801 = vpop.f32.mrf.mxu0
        %1802 = vdwg.mxu0
        %v1803 = vpack.i.b16 %v1468, %v1468
        %v1804 = vperm.slane %v1803, 0
        %v1809 = vunpack.c.l.b16 %v1367
        %v1810 = vunpack.c.l.b16 %v1368
        %v1811 = vunpack.c.l.b16 %v1369
        %v1812 = vunpack.c.l.b16 %v1370
        %v1813 = vpack.c.b16 %v1810, %v1809
        %v1814 = vpack.c.b16 %v1812, %v1811
        %v1818 = vsel %vm1391, %v1804, 0
        %1820 = vmatpush.bf16.msra.mxu0 0
        %1821 = vmatpush.bf16.msra.mxu0 0
        %1822 = vmatpush.bf16.msra.mxu0 0
        %1823 = vmatpush.bf16.msra.mxu0 0
        %1824 = vmatpush.bf16.msra.mxu0 0
        %1825 = vmatpush.bf16.msra.mxu0 0
        %1826 = vmatpush.bf16.msra.mxu0 %v1814
        %1827 = vmatpush.bf16.msra.mxu0 %v1813
        %1828 = vmatmul.bf16.gmra.mxu0 %v1818
        %v1829 = vpop.f32.mrf.mxu0
        %v1830 = vadd.f32 0.0, %v1829
        %v1831 = vpop.f32.mrf.mxu0
        %1832 = vdwg.mxu0
        %v1833 = vpack.i.b16 %v1469, %v1469
        %v1834 = vperm.slane %v1833, 0
        %v1839 = vunpack.c.l.b16 %v1371
        %v1840 = vunpack.c.l.b16 %v1372
        %v1841 = vunpack.c.l.b16 %v1373
        %v1842 = vunpack.c.l.b16 %v1374
        %v1843 = vpack.c.b16 %v1840, %v1839
        %v1844 = vpack.c.b16 %v1842, %v1841
        %v1848 = vsel %vm1391, %v1834, 0
        %1850 = vmatpush.bf16.msra.mxu0 0
        %1851 = vmatpush.bf16.msra.mxu0 0
        %1852 = vmatpush.bf16.msra.mxu0 0
        %1853 = vmatpush.bf16.msra.mxu0 0
        %1854 = vmatpush.bf16.msra.mxu0 0
        %1855 = vmatpush.bf16.msra.mxu0 0
        %1856 = vmatpush.bf16.msra.mxu0 %v1844
        %1857 = vmatpush.bf16.msra.mxu0 %v1843
        %1858 = vmatmul.bf16.gmra.mxu0 %v1848
        %v1859 = vpop.f32.mrf.mxu0
        %v1860 = vadd.f32 0.0, %v1859
        %v1861 = vpop.f32.mrf.mxu0
        %1862 = vdwg.mxu0
        %v1863 = vpack.i.b16 %v1470, %v1470
        %v1864 = vperm.slane %v1863, 0
        %v1869 = vunpack.c.l.b16 %v1375
        %v1870 = vunpack.c.l.b16 %v1376
        %v1871 = vunpack.c.l.b16 %v1377
        %v1872 = vunpack.c.l.b16 %v1378
        %v1873 = vpack.c.b16 %v1870, %v1869
        %v1874 = vpack.c.b16 %v1872, %v1871
        %v1878 = vsel %vm1391, %v1864, 0
        %1880 = vmatpush.bf16.msra.mxu0 0
        %1881 = vmatpush.bf16.msra.mxu0 0
        %1882 = vmatpush.bf16.msra.mxu0 0
        %1883 = vmatpush.bf16.msra.mxu0 0
        %1884 = vmatpush.bf16.msra.mxu0 0
        %1885 = vmatpush.bf16.msra.mxu0 0
        %1886 = vmatpush.bf16.msra.mxu0 %v1874
        %1887 = vmatpush.bf16.msra.mxu0 %v1873
        %1888 = vmatmul.bf16.gmra.mxu0 %v1878
        %v1889 = vpop.f32.mrf.mxu0
        %v1890 = vadd.f32 0.0, %v1889
        %v1891 = vpop.f32.mrf.mxu0
        %1892 = vdwg.mxu0
        %v1893 = vpack.i.b16 %v1471, %v1471
        %v1894 = vperm.slane %v1893, 0
        %v1899 = vunpack.c.l.b16 %v1379
        %v1900 = vunpack.c.l.b16 %v1380
        %v1901 = vunpack.c.l.b16 %v1381
        %v1902 = vunpack.c.l.b16 %v1382
        %v1903 = vpack.c.b16 %v1900, %v1899
        %v1904 = vpack.c.b16 %v1902, %v1901
        %v1908 = vsel %vm1391, %v1894, 0
        %1910 = vmatpush.bf16.msra.mxu0 0
        %1911 = vmatpush.bf16.msra.mxu0 0
        %1912 = vmatpush.bf16.msra.mxu0 0
        %1913 = vmatpush.bf16.msra.mxu0 0
        %1914 = vmatpush.bf16.msra.mxu0 0
        %1915 = vmatpush.bf16.msra.mxu0 0
        %1916 = vmatpush.bf16.msra.mxu0 %v1904
        %1917 = vmatpush.bf16.msra.mxu0 %v1903
        %1918 = vmatmul.bf16.gmra.mxu0 %v1908
        %v1919 = vpop.f32.mrf.mxu0
        %v1920 = vadd.f32 0.0, %v1919
        %v1921 = vpop.f32.mrf.mxu0
        %1922 = vdwg.mxu0
        %v1923 = vpack.i.b16 %v1472, %v1472
        %v1924 = vperm.slane %v1923, 0
        %v1929 = vunpack.c.l.b16 %v1383
        %v1930 = vunpack.c.l.b16 %v1384
        %v1931 = vunpack.c.l.b16 %v1385
        %v1932 = vunpack.c.l.b16 %v1386
        %v1933 = vpack.c.b16 %v1930, %v1929
        %v1934 = vpack.c.b16 %v1932, %v1931
        %v1938 = vsel %vm1391, %v1924, 0
        %1940 = vmatpush.bf16.msra.mxu0 0
        %1941 = vmatpush.bf16.msra.mxu0 0
        %1942 = vmatpush.bf16.msra.mxu0 0
        %1943 = vmatpush.bf16.msra.mxu0 0
        %1944 = vmatpush.bf16.msra.mxu0 0
        %1945 = vmatpush.bf16.msra.mxu0 0
        %1946 = vmatpush.bf16.msra.mxu0 %v1934
        %1947 = vmatpush.bf16.msra.mxu0 %v1933
        %1948 = vmatmul.bf16.gmra.mxu0 %v1938
        %v1949 = vpop.f32.mrf.mxu0
        %v1950 = vadd.f32 0.0, %v1949
        %v1951 = vpop.f32.mrf.mxu0
        %1952 = vdwg.mxu0
        %v1953 = vld [vmem:[%s439] sm:$0xf]
        %v1954 = vld [vmem:[%s439 + $0x4] sm:$0xf]
        %v1955 = vunpack.c.l.bf16 %v1953
        %v1956 = vunpack.c.l.bf16 %v1954
        %v1957 = vld [vmem:[%s0] sm:$0xf]
        %v1958 = vld [vmem:[%s0 + $0x4] sm:$0xf]
        %v1959 = vld [vmem:[%s0 + $0x8] sm:$0xf]
        %v1960 = vld [vmem:[%s0 + $0xc] sm:$0xf]
        %v1963 = vrot.slane %v1955, 1
        %v1964 = vrot.slane %v1955, 2
        %v1965 = vrot.slane %v1955, 3
        %v1966 = vrot.slane %v1955, 4
        %v1967 = vrot.slane %v1955, 5
        %v1968 = vrot.slane %v1955, 6
        %v1969 = vrot.slane %v1955, 7
        %v1970 = vrot.slane %v1956, 1
        %v1971 = vrot.slane %v1956, 2
        %v1972 = vrot.slane %v1956, 3
        %v1973 = vrot.slane %v1956, 4
        %v1974 = vrot.slane %v1956, 5
        %v1975 = vrot.slane %v1956, 6
        %v1976 = vrot.slane %v1956, 7
        %v1977 = vunpack.c.l.bf16 %v1957
        %v1978 = vunpack.c.l.bf16 %v1958
        %v1979 = vunpack.c.l.bf16 %v1959
        %v1980 = vunpack.c.l.bf16 %v1960
        %v1981 = vperm.slane %v1955, 0
        %v1982 = vperm.slane %v1963, 0
        %v1983 = vperm.slane %v1964, 0
        %v1984 = vperm.slane %v1965, 0
        %v1985 = vperm.slane %v1966, 0
        %v1986 = vperm.slane %v1967, 0
        %v1987 = vperm.slane %v1968, 0
        %v1988 = vperm.slane %v1969, 0
        %v1989 = vperm.slane %v1956, 0
        %v1990 = vperm.slane %v1970, 0
        %v1991 = vperm.slane %v1971, 0
        %v1992 = vperm.slane %v1972, 0
        %v1993 = vperm.slane %v1973, 0
        %v1994 = vperm.slane %v1974, 0
        %v1995 = vperm.slane %v1975, 0
        %v1996 = vperm.slane %v1976, 0
        %v2013 = vadd.f32 %v1981, %v1977
        %v2014 = vadd.f32 %v1981, %v1978
        %v2015 = vadd.f32 %v1981, %v1979
        %v2016 = vadd.f32 %v1981, %v1980
        %v2017 = vadd.f32 %v1982, %v1977
        %v2018 = vadd.f32 %v1982, %v1978
        %v2019 = vadd.f32 %v1982, %v1979
        %v2020 = vadd.f32 %v1982, %v1980
        %v2021 = vadd.f32 %v1983, %v1977
        %v2022 = vadd.f32 %v1983, %v1978
        %v2023 = vadd.f32 %v1983, %v1979
        %v2024 = vadd.f32 %v1983, %v1980
        %v2025 = vadd.f32 %v1984, %v1977
        %v2026 = vadd.f32 %v1984, %v1978
        %v2027 = vadd.f32 %v1984, %v1979
        %v2028 = vadd.f32 %v1984, %v1980
        %v2029 = vadd.f32 %v1985, %v1977
        %v2030 = vadd.f32 %v1985, %v1978
        %v2031 = vadd.f32 %v1985, %v1979
        %v2032 = vadd.f32 %v1985, %v1980
        %v2033 = vadd.f32 %v1986, %v1977
        %v2034 = vadd.f32 %v1986, %v1978
        %v2035 = vadd.f32 %v1986, %v1979
        %v2036 = vadd.f32 %v1986, %v1980
        %v2037 = vadd.f32 %v1987, %v1977
        %v2038 = vadd.f32 %v1987, %v1978
        %v2039 = vadd.f32 %v1987, %v1979
        %v2040 = vadd.f32 %v1987, %v1980
        %v2041 = vadd.f32 %v1988, %v1977
        %v2042 = vadd.f32 %v1988, %v1978
        %v2043 = vadd.f32 %v1988, %v1979
        %v2044 = vadd.f32 %v1988, %v1980
        %v2045 = vadd.f32 %v1989, %v1977
        %v2046 = vadd.f32 %v1989, %v1978
        %v2047 = vadd.f32 %v1989, %v1979
        %v2048 = vadd.f32 %v1989, %v1980
        %v2049 = vadd.f32 %v1990, %v1977
        %v2050 = vadd.f32 %v1990, %v1978
        %v2051 = vadd.f32 %v1990, %v1979
        %v2052 = vadd.f32 %v1990, %v1980
        %v2053 = vadd.f32 %v1991, %v1977
        %v2054 = vadd.f32 %v1991, %v1978
        %v2055 = vadd.f32 %v1991, %v1979
        %v2056 = vadd.f32 %v1991, %v1980
        %v2057 = vadd.f32 %v1992, %v1977
        %v2058 = vadd.f32 %v1992, %v1978
        %v2059 = vadd.f32 %v1992, %v1979
        %v2060 = vadd.f32 %v1992, %v1980
        %v2061 = vadd.f32 %v1993, %v1977
        %v2062 = vadd.f32 %v1993, %v1978
        %v2063 = vadd.f32 %v1993, %v1979
        %v2064 = vadd.f32 %v1993, %v1980
        %v2065 = vadd.f32 %v1994, %v1977
        %v2066 = vadd.f32 %v1994, %v1978
        %v2067 = vadd.f32 %v1994, %v1979
        %v2068 = vadd.f32 %v1994, %v1980
        %v2069 = vadd.f32 %v1995, %v1977
        %v2070 = vadd.f32 %v1995, %v1978
        %v2071 = vadd.f32 %v1995, %v1979
        %v2072 = vadd.f32 %v1995, %v1980
        %v2073 = vadd.f32 %v1996, %v1977
        %v2074 = vadd.f32 %v1996, %v1978
        %v2075 = vadd.f32 %v1996, %v1979
        %v2076 = vadd.f32 %v1996, %v1980
        %v2077 = vadd.f32 %v2013, %v1164
        %v2078 = vadd.f32 %v2014, %v1166
        %v2079 = vadd.f32 %v2015, %v1169
        %v2080 = vadd.f32 %v2016, %v1171
        %v2081 = vadd.f32 %v2017, %v1174
        %v2082 = vadd.f32 %v2018, %v1176
        %v2083 = vadd.f32 %v2019, %v1179
        %v2084 = vadd.f32 %v2020, %v1181
        %v2085 = vadd.f32 %v2021, %v1184
        %v2086 = vadd.f32 %v2022, %v1186
        %v2087 = vadd.f32 %v2023, %v1189
        %v2088 = vadd.f32 %v2024, %v1191
        %v2089 = vadd.f32 %v2025, %v1194
        %v2090 = vadd.f32 %v2026, %v1196
        %v2091 = vadd.f32 %v2027, %v1199
        %v2092 = vadd.f32 %v2028, %v1201
        %v2093 = vadd.f32 %v2029, %v1204
        %v2094 = vadd.f32 %v2030, %v1206
        %v2095 = vadd.f32 %v2031, %v1209
        %v2096 = vadd.f32 %v2032, %v1211
        %v2097 = vadd.f32 %v2033, %v1214
        %v2098 = vadd.f32 %v2034, %v1216
        %v2099 = vadd.f32 %v2035, %v1219
        %v2100 = vadd.f32 %v2036, %v1221
        %v2101 = vadd.f32 %v2037, %v1224
        %v2102 = vadd.f32 %v2038, %v1226
        %v2103 = vadd.f32 %v2039, %v1229
        %v2104 = vadd.f32 %v2040, %v1231
        %v2105 = vadd.f32 %v2041, %v1234
        %v2106 = vadd.f32 %v2042, %v1236
        %v2107 = vadd.f32 %v2043, %v1239
        %v2108 = vadd.f32 %v2044, %v1241
        %v2109 = vadd.f32 %v2045, %v1244
        %v2110 = vadd.f32 %v2046, %v1246
        %v2111 = vadd.f32 %v2047, %v1249
        %v2112 = vadd.f32 %v2048, %v1251
        %v2113 = vadd.f32 %v2049, %v1254
        %v2114 = vadd.f32 %v2050, %v1256
        %v2115 = vadd.f32 %v2051, %v1259
        %v2116 = vadd.f32 %v2052, %v1261
        %v2117 = vadd.f32 %v2053, %v1264
        %v2118 = vadd.f32 %v2054, %v1266
        %v2119 = vadd.f32 %v2055, %v1269
        %v2120 = vadd.f32 %v2056, %v1271
        %v2121 = vadd.f32 %v2057, %v1274
        %v2122 = vadd.f32 %v2058, %v1276
        %v2123 = vadd.f32 %v2059, %v1279
        %v2124 = vadd.f32 %v2060, %v1281
        %v2125 = vadd.f32 %v2061, %v1284
        %v2126 = vadd.f32 %v2062, %v1286
        %v2127 = vadd.f32 %v2063, %v1289
        %v2128 = vadd.f32 %v2064, %v1291
        %v2129 = vadd.f32 %v2065, %v1294
        %v2130 = vadd.f32 %v2066, %v1296
        %v2131 = vadd.f32 %v2067, %v1299
        %v2132 = vadd.f32 %v2068, %v1301
        %v2133 = vadd.f32 %v2069, %v1304
        %v2134 = vadd.f32 %v2070, %v1306
        %v2135 = vadd.f32 %v2071, %v1309
        %v2136 = vadd.f32 %v2072, %v1311
        %v2137 = vadd.f32 %v2073, %v1314
        %v2138 = vadd.f32 %v2074, %v1316
        %v2139 = vadd.f32 %v2075, %v1319
        %v2140 = vadd.f32 %v2076, %v1321
        %vm2141 = vcmp.gt.f32.partialorder %v2077, 0.0
        %vm2142 = vcmp.gt.f32.partialorder %v2078, 0.0
        %vm2143 = vcmp.gt.f32.partialorder %v2079, 0.0
        %vm2144 = vcmp.gt.f32.partialorder %v2080, 0.0
        %vm2145 = vcmp.gt.f32.partialorder %v2081, 0.0
        %vm2146 = vcmp.gt.f32.partialorder %v2082, 0.0
        %vm2147 = vcmp.gt.f32.partialorder %v2083, 0.0
        %vm2148 = vcmp.gt.f32.partialorder %v2084, 0.0
        %vm2149 = vcmp.gt.f32.partialorder %v2085, 0.0
        %vm2150 = vcmp.gt.f32.partialorder %v2086, 0.0
        %vm2151 = vcmp.gt.f32.partialorder %v2087, 0.0
        %vm2152 = vcmp.gt.f32.partialorder %v2088, 0.0
        %vm2153 = vcmp.gt.f32.partialorder %v2089, 0.0
        %vm2154 = vcmp.gt.f32.partialorder %v2090, 0.0
        %vm2155 = vcmp.gt.f32.partialorder %v2091, 0.0
        %vm2156 = vcmp.gt.f32.partialorder %v2092, 0.0
        %vm2157 = vcmp.gt.f32.partialorder %v2093, 0.0
        %vm2158 = vcmp.gt.f32.partialorder %v2094, 0.0
        %vm2159 = vcmp.gt.f32.partialorder %v2095, 0.0
        %vm2160 = vcmp.gt.f32.partialorder %v2096, 0.0
        %vm2161 = vcmp.gt.f32.partialorder %v2097, 0.0
        %vm2162 = vcmp.gt.f32.partialorder %v2098, 0.0
        %vm2163 = vcmp.gt.f32.partialorder %v2099, 0.0
        %vm2164 = vcmp.gt.f32.partialorder %v2100, 0.0
        %vm2165 = vcmp.gt.f32.partialorder %v2101, 0.0
        %vm2166 = vcmp.gt.f32.partialorder %v2102, 0.0
        %vm2167 = vcmp.gt.f32.partialorder %v2103, 0.0
        %vm2168 = vcmp.gt.f32.partialorder %v2104, 0.0
        %vm2169 = vcmp.gt.f32.partialorder %v2105, 0.0
        %vm2170 = vcmp.gt.f32.partialorder %v2106, 0.0
        %vm2171 = vcmp.gt.f32.partialorder %v2107, 0.0
        %vm2172 = vcmp.gt.f32.partialorder %v2108, 0.0
        %vm2173 = vcmp.gt.f32.partialorder %v2109, 0.0
        %vm2174 = vcmp.gt.f32.partialorder %v2110, 0.0
        %vm2175 = vcmp.gt.f32.partialorder %v2111, 0.0
        %vm2176 = vcmp.gt.f32.partialorder %v2112, 0.0
        %vm2177 = vcmp.gt.f32.partialorder %v2113, 0.0
        %vm2178 = vcmp.gt.f32.partialorder %v2114, 0.0
        %vm2179 = vcmp.gt.f32.partialorder %v2115, 0.0
        %vm2180 = vcmp.gt.f32.partialorder %v2116, 0.0
        %vm2181 = vcmp.gt.f32.partialorder %v2117, 0.0
        %vm2182 = vcmp.gt.f32.partialorder %v2118, 0.0
        %vm2183 = vcmp.gt.f32.partialorder %v2119, 0.0
        %vm2184 = vcmp.gt.f32.partialorder %v2120, 0.0
        %vm2185 = vcmp.gt.f32.partialorder %v2121, 0.0
        %vm2186 = vcmp.gt.f32.partialorder %v2122, 0.0
        %vm2187 = vcmp.gt.f32.partialorder %v2123, 0.0
        %vm2188 = vcmp.gt.f32.partialorder %v2124, 0.0
        %vm2189 = vcmp.gt.f32.partialorder %v2125, 0.0
        %vm2190 = vcmp.gt.f32.partialorder %v2126, 0.0
        %vm2191 = vcmp.gt.f32.partialorder %v2127, 0.0
        %vm2192 = vcmp.gt.f32.partialorder %v2128, 0.0
        %vm2193 = vcmp.gt.f32.partialorder %v2129, 0.0
        %vm2194 = vcmp.gt.f32.partialorder %v2130, 0.0
        %vm2195 = vcmp.gt.f32.partialorder %v2131, 0.0
        %vm2196 = vcmp.gt.f32.partialorder %v2132, 0.0
        %vm2197 = vcmp.gt.f32.partialorder %v2133, 0.0
        %vm2198 = vcmp.gt.f32.partialorder %v2134, 0.0
        %vm2199 = vcmp.gt.f32.partialorder %v2135, 0.0
        %vm2200 = vcmp.gt.f32.partialorder %v2136, 0.0
        %vm2201 = vcmp.gt.f32.partialorder %v2137, 0.0
        %vm2202 = vcmp.gt.f32.partialorder %v2138, 0.0
        %vm2203 = vcmp.gt.f32.partialorder %v2139, 0.0
        %vm2204 = vcmp.gt.f32.partialorder %v2140, 0.0
        %v2205 = vmul.f32 %v2077, 0.2
        %v2206 = vmul.f32 %v2078, 0.2
        %v2207 = vmul.f32 %v2079, 0.2
        %v2208 = vmul.f32 %v2080, 0.2
        %v2209 = vmul.f32 %v2081, 0.2
        %v2210 = vmul.f32 %v2082, 0.2
        %v2211 = vmul.f32 %v2083, 0.2
        %v2212 = vmul.f32 %v2084, 0.2
        %v2213 = vmul.f32 %v2085, 0.2
        %v2214 = vmul.f32 %v2086, 0.2
        %v2215 = vmul.f32 %v2087, 0.2
        %v2216 = vmul.f32 %v2088, 0.2
        %v2217 = vmul.f32 %v2089, 0.2
        %v2218 = vmul.f32 %v2090, 0.2
        %v2219 = vmul.f32 %v2091, 0.2
        %v2220 = vmul.f32 %v2092, 0.2
        %v2221 = vmul.f32 %v2093, 0.2
        %v2222 = vmul.f32 %v2094, 0.2
        %v2223 = vmul.f32 %v2095, 0.2
        %v2224 = vmul.f32 %v2096, 0.2
        %v2225 = vmul.f32 %v2097, 0.2
        %v2226 = vmul.f32 %v2098, 0.2
        %v2227 = vmul.f32 %v2099, 0.2
        %v2228 = vmul.f32 %v2100, 0.2
        %v2229 = vmul.f32 %v2101, 0.2
        %v2230 = vmul.f32 %v2102, 0.2
        %v2231 = vmul.f32 %v2103, 0.2
        %v2232 = vmul.f32 %v2104, 0.2
        %v2233 = vmul.f32 %v2105, 0.2
        %v2234 = vmul.f32 %v2106, 0.2
        %v2235 = vmul.f32 %v2107, 0.2
        %v2236 = vmul.f32 %v2108, 0.2
        %v2237 = vmul.f32 %v2109, 0.2
        %v2238 = vmul.f32 %v2110, 0.2
        %v2239 = vmul.f32 %v2111, 0.2
        %v2240 = vmul.f32 %v2112, 0.2
        %v2241 = vmul.f32 %v2113, 0.2
        %v2242 = vmul.f32 %v2114, 0.2
        %v2243 = vmul.f32 %v2115, 0.2
        %v2244 = vmul.f32 %v2116, 0.2
        %v2245 = vmul.f32 %v2117, 0.2
        %v2246 = vmul.f32 %v2118, 0.2
        %v2247 = vmul.f32 %v2119, 0.2
        %v2248 = vmul.f32 %v2120, 0.2
        %v2249 = vmul.f32 %v2121, 0.2
        %v2250 = vmul.f32 %v2122, 0.2
        %v2251 = vmul.f32 %v2123, 0.2
        %v2252 = vmul.f32 %v2124, 0.2
        %v2253 = vmul.f32 %v2125, 0.2
        %v2254 = vmul.f32 %v2126, 0.2
        %v2255 = vmul.f32 %v2127, 0.2
        %v2256 = vmul.f32 %v2128, 0.2
        %v2257 = vmul.f32 %v2129, 0.2
        %v2258 = vmul.f32 %v2130, 0.2
        %v2259 = vmul.f32 %v2131, 0.2
        %v2260 = vmul.f32 %v2132, 0.2
        %v2261 = vmul.f32 %v2133, 0.2
        %v2262 = vmul.f32 %v2134, 0.2
        %v2263 = vmul.f32 %v2135, 0.2
        %v2264 = vmul.f32 %v2136, 0.2
        %v2265 = vmul.f32 %v2137, 0.2
        %v2266 = vmul.f32 %v2138, 0.2
        %v2267 = vmul.f32 %v2139, 0.2
        %v2268 = vmul.f32 %v2140, 0.2
        %v2269 = vsel %vm2141, %v2077, %v2205
        %v2270 = vsel %vm2142, %v2078, %v2206
        %v2271 = vsel %vm2143, %v2079, %v2207
        %v2272 = vsel %vm2144, %v2080, %v2208
        %v2273 = vsel %vm2145, %v2081, %v2209
        %v2274 = vsel %vm2146, %v2082, %v2210
        %v2275 = vsel %vm2147, %v2083, %v2211
        %v2276 = vsel %vm2148, %v2084, %v2212
        %v2277 = vsel %vm2149, %v2085, %v2213
        %v2278 = vsel %vm2150, %v2086, %v2214
        %v2279 = vsel %vm2151, %v2087, %v2215
        %v2280 = vsel %vm2152, %v2088, %v2216
        %v2281 = vsel %vm2153, %v2089, %v2217
        %v2282 = vsel %vm2154, %v2090, %v2218
        %v2283 = vsel %vm2155, %v2091, %v2219
        %v2284 = vsel %vm2156, %v2092, %v2220
        %v2285 = vsel %vm2157, %v2093, %v2221
        %v2286 = vsel %vm2158, %v2094, %v2222
        %v2287 = vsel %vm2159, %v2095, %v2223
        %v2288 = vsel %vm2160, %v2096, %v2224
        %v2289 = vsel %vm2161, %v2097, %v2225
        %v2290 = vsel %vm2162, %v2098, %v2226
        %v2291 = vsel %vm2163, %v2099, %v2227
        %v2292 = vsel %vm2164, %v2100, %v2228
        %v2293 = vsel %vm2165, %v2101, %v2229
        %v2294 = vsel %vm2166, %v2102, %v2230
        %v2295 = vsel %vm2167, %v2103, %v2231
        %v2296 = vsel %vm2168, %v2104, %v2232
        %v2297 = vsel %vm2169, %v2105, %v2233
        %v2298 = vsel %vm2170, %v2106, %v2234
        %v2299 = vsel %vm2171, %v2107, %v2235
        %v2300 = vsel %vm2172, %v2108, %v2236
        %v2301 = vsel %vm2173, %v2109, %v2237
        %v2302 = vsel %vm2174, %v2110, %v2238
        %v2303 = vsel %vm2175, %v2111, %v2239
        %v2304 = vsel %vm2176, %v2112, %v2240
        %v2305 = vsel %vm2177, %v2113, %v2241
        %v2306 = vsel %vm2178, %v2114, %v2242
        %v2307 = vsel %vm2179, %v2115, %v2243
        %v2308 = vsel %vm2180, %v2116, %v2244
        %v2309 = vsel %vm2181, %v2117, %v2245
        %v2310 = vsel %vm2182, %v2118, %v2246
        %v2311 = vsel %vm2183, %v2119, %v2247
        %v2312 = vsel %vm2184, %v2120, %v2248
        %v2313 = vsel %vm2185, %v2121, %v2249
        %v2314 = vsel %vm2186, %v2122, %v2250
        %v2315 = vsel %vm2187, %v2123, %v2251
        %v2316 = vsel %vm2188, %v2124, %v2252
        %v2317 = vsel %vm2189, %v2125, %v2253
        %v2318 = vsel %vm2190, %v2126, %v2254
        %v2319 = vsel %vm2191, %v2127, %v2255
        %v2320 = vsel %vm2192, %v2128, %v2256
        %v2321 = vsel %vm2193, %v2129, %v2257
        %v2322 = vsel %vm2194, %v2130, %v2258
        %v2323 = vsel %vm2195, %v2131, %v2259
        %v2324 = vsel %vm2196, %v2132, %v2260
        %v2325 = vsel %vm2197, %v2133, %v2261
        %v2326 = vsel %vm2198, %v2134, %v2262
        %v2327 = vsel %vm2199, %v2135, %v2263
        %v2328 = vsel %vm2200, %v2136, %v2264
        %v2329 = vsel %vm2201, %v2137, %v2265
        %v2330 = vsel %vm2202, %v2138, %v2266
        %v2331 = vsel %vm2203, %v2139, %v2267
        %v2332 = vsel %vm2204, %v2140, %v2268
        %v2333 = vpack.c.bf16 %v2269, %v2269
        %v2334 = vpack.c.bf16 %v2270, %v2270
        %v2335 = vpack.c.bf16 %v2271, %v2271
        %v2336 = vpack.c.bf16 %v2272, %v2272
        %v2337 = vpack.c.bf16 %v2273, %v2273
        %v2338 = vpack.c.bf16 %v2274, %v2274
        %v2339 = vpack.c.bf16 %v2275, %v2275
        %v2340 = vpack.c.bf16 %v2276, %v2276
        %v2341 = vpack.c.bf16 %v2277, %v2277
        %v2342 = vpack.c.bf16 %v2278, %v2278
        %v2343 = vpack.c.bf16 %v2279, %v2279
        %v2344 = vpack.c.bf16 %v2280, %v2280
        %v2345 = vpack.c.bf16 %v2281, %v2281
        %v2346 = vpack.c.bf16 %v2282, %v2282
        %v2347 = vpack.c.bf16 %v2283, %v2283
        %v2348 = vpack.c.bf16 %v2284, %v2284
        %v2349 = vpack.c.bf16 %v2285, %v2285
        %v2350 = vpack.c.bf16 %v2286, %v2286
        %v2351 = vpack.c.bf16 %v2287, %v2287
        %v2352 = vpack.c.bf16 %v2288, %v2288
        %v2353 = vpack.c.bf16 %v2289, %v2289
        %v2354 = vpack.c.bf16 %v2290, %v2290
        %v2355 = vpack.c.bf16 %v2291, %v2291
        %v2356 = vpack.c.bf16 %v2292, %v2292
        %v2357 = vpack.c.bf16 %v2293, %v2293
        %v2358 = vpack.c.bf16 %v2294, %v2294
        %v2359 = vpack.c.bf16 %v2295, %v2295
        %v2360 = vpack.c.bf16 %v2296, %v2296
        %v2361 = vpack.c.bf16 %v2297, %v2297
        %v2362 = vpack.c.bf16 %v2298, %v2298
        %v2363 = vpack.c.bf16 %v2299, %v2299
        %v2364 = vpack.c.bf16 %v2300, %v2300
        %v2365 = vpack.c.bf16 %v2301, %v2301
        %v2366 = vpack.c.bf16 %v2302, %v2302
        %v2367 = vpack.c.bf16 %v2303, %v2303
        %v2368 = vpack.c.bf16 %v2304, %v2304
        %v2369 = vpack.c.bf16 %v2305, %v2305
        %v2370 = vpack.c.bf16 %v2306, %v2306
        %v2371 = vpack.c.bf16 %v2307, %v2307
        %v2372 = vpack.c.bf16 %v2308, %v2308
        %v2373 = vpack.c.bf16 %v2309, %v2309
        %v2374 = vpack.c.bf16 %v2310, %v2310
        %v2375 = vpack.c.bf16 %v2311, %v2311
        %v2376 = vpack.c.bf16 %v2312, %v2312
        %v2377 = vpack.c.bf16 %v2313, %v2313
        %v2378 = vpack.c.bf16 %v2314, %v2314
        %v2379 = vpack.c.bf16 %v2315, %v2315
        %v2380 = vpack.c.bf16 %v2316, %v2316
        %v2381 = vpack.c.bf16 %v2317, %v2317
        %v2382 = vpack.c.bf16 %v2318, %v2318
        %v2383 = vpack.c.bf16 %v2319, %v2319
        %v2384 = vpack.c.bf16 %v2320, %v2320
        %v2385 = vpack.c.bf16 %v2321, %v2321
        %v2386 = vpack.c.bf16 %v2322, %v2322
        %v2387 = vpack.c.bf16 %v2323, %v2323
        %v2388 = vpack.c.bf16 %v2324, %v2324
        %v2389 = vpack.c.bf16 %v2325, %v2325
        %v2390 = vpack.c.bf16 %v2326, %v2326
        %v2391 = vpack.c.bf16 %v2327, %v2327
        %v2392 = vpack.c.bf16 %v2328, %v2328
        %v2393 = vpack.c.bf16 %v2329, %v2329
        %v2394 = vpack.c.bf16 %v2330, %v2330
        %v2395 = vpack.c.bf16 %v2331, %v2331
        %v2396 = vpack.c.bf16 %v2332, %v2332
        %v2397 = vld [vmem:[%s9] sm:$0xf]
        %v2398 = vld [vmem:[%s9 + $0x4] sm:$0xf]
        %v2399 = vld [vmem:[%s9 + $0x8] sm:$0xf]
        %v2400 = vld [vmem:[%s9 + $0xc] sm:$0xf]
        %v2465 = vunpack.c.l.b16 %v2333
        %v2466 = vunpack.c.l.b16 %v2334
        %v2467 = vunpack.c.l.b16 %v2335
        %v2468 = vunpack.c.l.b16 %v2336
        %v2469 = vunpack.c.l.b16 %v2337
        %v2470 = vunpack.c.l.b16 %v2338
        %v2471 = vunpack.c.l.b16 %v2339
        %v2472 = vunpack.c.l.b16 %v2340
        %v2473 = vunpack.c.l.b16 %v2341
        %v2474 = vunpack.c.l.b16 %v2342
        %v2475 = vunpack.c.l.b16 %v2343
        %v2476 = vunpack.c.l.b16 %v2344
        %v2477 = vunpack.c.l.b16 %v2345
        %v2478 = vunpack.c.l.b16 %v2346
        %v2479 = vunpack.c.l.b16 %v2347
        %v2480 = vunpack.c.l.b16 %v2348
        %v2481 = vunpack.c.l.b16 %v2349
        %v2482 = vunpack.c.l.b16 %v2350
        %v2483 = vunpack.c.l.b16 %v2351
        %v2484 = vunpack.c.l.b16 %v2352
        %v2485 = vunpack.c.l.b16 %v2353
        %v2486 = vunpack.c.l.b16 %v2354
        %v2487 = vunpack.c.l.b16 %v2355
        %v2488 = vunpack.c.l.b16 %v2356
        %v2489 = vunpack.c.l.b16 %v2357
        %v2490 = vunpack.c.l.b16 %v2358
        %v2491 = vunpack.c.l.b16 %v2359
        %v2492 = vunpack.c.l.b16 %v2360
        %v2493 = vunpack.c.l.b16 %v2361
        %v2494 = vunpack.c.l.b16 %v2362
        %v2495 = vunpack.c.l.b16 %v2363
        %v2496 = vunpack.c.l.b16 %v2364
        %v2497 = vunpack.c.l.b16 %v2365
        %v2498 = vunpack.c.l.b16 %v2366
        %v2499 = vunpack.c.l.b16 %v2367
        %v2500 = vunpack.c.l.b16 %v2368
        %v2501 = vunpack.c.l.b16 %v2369
        %v2502 = vunpack.c.l.b16 %v2370
        %v2503 = vunpack.c.l.b16 %v2371
        %v2504 = vunpack.c.l.b16 %v2372
        %v2505 = vunpack.c.l.b16 %v2373
        %v2506 = vunpack.c.l.b16 %v2374
        %v2507 = vunpack.c.l.b16 %v2375
        %v2508 = vunpack.c.l.b16 %v2376
        %v2509 = vunpack.c.l.b16 %v2377
        %v2510 = vunpack.c.l.b16 %v2378
        %v2511 = vunpack.c.l.b16 %v2379
        %v2512 = vunpack.c.l.b16 %v2380
        %v2513 = vunpack.c.l.b16 %v2381
        %v2514 = vunpack.c.l.b16 %v2382
        %v2515 = vunpack.c.l.b16 %v2383
        %v2516 = vunpack.c.l.b16 %v2384
        %v2517 = vunpack.c.l.b16 %v2385
        %v2518 = vunpack.c.l.b16 %v2386
        %v2519 = vunpack.c.l.b16 %v2387
        %v2520 = vunpack.c.l.b16 %v2388
        %v2521 = vunpack.c.l.b16 %v2389
        %v2522 = vunpack.c.l.b16 %v2390
        %v2523 = vunpack.c.l.b16 %v2391
        %v2524 = vunpack.c.l.b16 %v2392
        %v2525 = vunpack.c.l.b16 %v2393
        %v2526 = vunpack.c.l.b16 %v2394
        %v2527 = vunpack.c.l.b16 %v2395
        %v2528 = vunpack.c.l.b16 %v2396
        %v2529 = vpack.c.b16 %v2466, %v2465
        %v2530 = vpack.c.b16 %v2468, %v2467
        %v2531 = vpack.c.b16 %v2470, %v2469
        %v2532 = vpack.c.b16 %v2472, %v2471
        %v2533 = vpack.c.b16 %v2474, %v2473
        %v2534 = vpack.c.b16 %v2476, %v2475
        %v2535 = vpack.c.b16 %v2478, %v2477
        %v2536 = vpack.c.b16 %v2480, %v2479
        %v2537 = vpack.c.b16 %v2482, %v2481
        %v2538 = vpack.c.b16 %v2484, %v2483
        %v2539 = vpack.c.b16 %v2486, %v2485
        %v2540 = vpack.c.b16 %v2488, %v2487
        %v2541 = vpack.c.b16 %v2490, %v2489
        %v2542 = vpack.c.b16 %v2492, %v2491
        %v2543 = vpack.c.b16 %v2494, %v2493
        %v2544 = vpack.c.b16 %v2496, %v2495
        %v2545 = vpack.c.b16 %v2498, %v2497
        %v2546 = vpack.c.b16 %v2500, %v2499
        %v2547 = vpack.c.b16 %v2502, %v2501
        %v2548 = vpack.c.b16 %v2504, %v2503
        %v2549 = vpack.c.b16 %v2506, %v2505
        %v2550 = vpack.c.b16 %v2508, %v2507
        %v2551 = vpack.c.b16 %v2510, %v2509
        %v2552 = vpack.c.b16 %v2512, %v2511
        %v2553 = vpack.c.b16 %v2514, %v2513
        %v2554 = vpack.c.b16 %v2516, %v2515
        %v2555 = vpack.c.b16 %v2518, %v2517
        %v2556 = vpack.c.b16 %v2520, %v2519
        %v2557 = vpack.c.b16 %v2522, %v2521
        %v2558 = vpack.c.b16 %v2524, %v2523
        %v2559 = vpack.c.b16 %v2526, %v2525
        %v2560 = vpack.c.b16 %v2528, %v2527
        %v2565 = vunpack.c.l.b16 %v2397
        %v2566 = vunpack.c.l.b16 %v2398
        %v2567 = vunpack.c.l.b16 %v2399
        %v2568 = vunpack.c.l.b16 %v2400
        %v2569 = vpack.c.b16 %v2566, %v2565
        %v2570 = vpack.c.b16 %v2568, %v2567
        %v2574 = vsel %vm1391, %v2529, 0
        %v2577 = vsel %vm1391, %v2530, 0
        %v2580 = vsel %vm1391, %v2531, 0
        %v2583 = vsel %vm1391, %v2532, 0
        %v2586 = vsel %vm1391, %v2533, 0
        %v2589 = vsel %vm1391, %v2534, 0
        %v2592 = vsel %vm1391, %v2535, 0
        %v2595 = vsel %vm1391, %v2536, 0
        %v2598 = vsel %vm1391, %v2537, 0
        %v2601 = vsel %vm1391, %v2538, 0
        %v2604 = vsel %vm1391, %v2539, 0
        %v2607 = vsel %vm1391, %v2540, 0
        %v2610 = vsel %vm1391, %v2541, 0
        %v2613 = vsel %vm1391, %v2542, 0
        %v2616 = vsel %vm1391, %v2543, 0
        %v2619 = vsel %vm1391, %v2544, 0
        %v2622 = vsel %vm1391, %v2545, 0
        %v2625 = vsel %vm1391, %v2546, 0
        %v2628 = vsel %vm1391, %v2547, 0
        %v2631 = vsel %vm1391, %v2548, 0
        %v2634 = vsel %vm1391, %v2549, 0
        %v2637 = vsel %vm1391, %v2550, 0
        %v2640 = vsel %vm1391, %v2551, 0
        %v2643 = vsel %vm1391, %v2552, 0
        %v2646 = vsel %vm1391, %v2553, 0
        %v2649 = vsel %vm1391, %v2554, 0
        %v2652 = vsel %vm1391, %v2555, 0
        %v2655 = vsel %vm1391, %v2556, 0
        %v2658 = vsel %vm1391, %v2557, 0
        %v2661 = vsel %vm1391, %v2558, 0
        %v2664 = vsel %vm1391, %v2559, 0
        %v2667 = vsel %vm1391, %v2560, 0
        %2669 = vmatpush.bf16.msra.mxu0 0
        %2670 = vmatpush.bf16.msra.mxu0 0
        %2671 = vmatpush.bf16.msra.mxu0 0
        %2672 = vmatpush.bf16.msra.mxu0 0
        %2673 = vmatpush.bf16.msra.mxu0 0
        %2674 = vmatpush.bf16.msra.mxu0 0
        %2675 = vmatpush.bf16.msra.mxu0 %v2570
        %2676 = vmatpush.bf16.msra.mxu0 %v2569
        %2677 = vmatmul.bf16.gmra.mxu0 %v2574
        %v2678 = vpop.f32.mrf.mxu0
        %v2679 = vadd.f32 0.0, %v2678
        %v2680 = vpop.f32.mrf.mxu0
        %v2681 = vadd.f32 0.0, %v2680
        %2682 = vmatmul.bf16.gmra.mxu0 %v2577
        %v2683 = vpop.f32.mrf.mxu0
        %v2684 = vadd.f32 0.0, %v2683
        %v2685 = vpop.f32.mrf.mxu0
        %v2686 = vadd.f32 0.0, %v2685
        %2687 = vmatmul.bf16.gmra.mxu0 %v2580
        %v2688 = vpop.f32.mrf.mxu0
        %v2689 = vadd.f32 0.0, %v2688
        %v2690 = vpop.f32.mrf.mxu0
        %v2691 = vadd.f32 0.0, %v2690
        %2692 = vmatmul.bf16.gmra.mxu0 %v2583
        %v2693 = vpop.f32.mrf.mxu0
        %v2694 = vadd.f32 0.0, %v2693
        %v2695 = vpop.f32.mrf.mxu0
        %v2696 = vadd.f32 0.0, %v2695
        %2697 = vmatmul.bf16.gmra.mxu0 %v2586
        %v2698 = vpop.f32.mrf.mxu0
        %v2699 = vadd.f32 0.0, %v2698
        %v2700 = vpop.f32.mrf.mxu0
        %v2701 = vadd.f32 0.0, %v2700
        %2702 = vmatmul.bf16.gmra.mxu0 %v2589
        %v2703 = vpop.f32.mrf.mxu0
        %v2704 = vadd.f32 0.0, %v2703
        %v2705 = vpop.f32.mrf.mxu0
        %v2706 = vadd.f32 0.0, %v2705
        %2707 = vmatmul.bf16.gmra.mxu0 %v2592
        %v2708 = vpop.f32.mrf.mxu0
        %v2709 = vadd.f32 0.0, %v2708
        %v2710 = vpop.f32.mrf.mxu0
        %v2711 = vadd.f32 0.0, %v2710
        %2712 = vmatmul.bf16.gmra.mxu0 %v2595
        %v2713 = vpop.f32.mrf.mxu0
        %v2714 = vadd.f32 0.0, %v2713
        %v2715 = vpop.f32.mrf.mxu0
        %v2716 = vadd.f32 0.0, %v2715
        %2717 = vmatmul.bf16.gmra.mxu0 %v2598
        %v2718 = vpop.f32.mrf.mxu0
        %v2719 = vadd.f32 0.0, %v2718
        %v2720 = vpop.f32.mrf.mxu0
        %v2721 = vadd.f32 0.0, %v2720
        %2722 = vmatmul.bf16.gmra.mxu0 %v2601
        %v2723 = vpop.f32.mrf.mxu0
        %v2724 = vadd.f32 0.0, %v2723
        %v2725 = vpop.f32.mrf.mxu0
        %v2726 = vadd.f32 0.0, %v2725
        %2727 = vmatmul.bf16.gmra.mxu0 %v2604
        %v2728 = vpop.f32.mrf.mxu0
        %v2729 = vadd.f32 0.0, %v2728
        %v2730 = vpop.f32.mrf.mxu0
        %v2731 = vadd.f32 0.0, %v2730
        %2732 = vmatmul.bf16.gmra.mxu0 %v2607
        %v2733 = vpop.f32.mrf.mxu0
        %v2734 = vadd.f32 0.0, %v2733
        %v2735 = vpop.f32.mrf.mxu0
        %v2736 = vadd.f32 0.0, %v2735
        %2737 = vmatmul.bf16.gmra.mxu0 %v2610
        %v2738 = vpop.f32.mrf.mxu0
        %v2739 = vadd.f32 0.0, %v2738
        %v2740 = vpop.f32.mrf.mxu0
        %v2741 = vadd.f32 0.0, %v2740
        %2742 = vmatmul.bf16.gmra.mxu0 %v2613
        %v2743 = vpop.f32.mrf.mxu0
        %v2744 = vadd.f32 0.0, %v2743
        %v2745 = vpop.f32.mrf.mxu0
        %v2746 = vadd.f32 0.0, %v2745
        %2747 = vmatmul.bf16.gmra.mxu0 %v2616
        %v2748 = vpop.f32.mrf.mxu0
        %v2749 = vadd.f32 0.0, %v2748
        %v2750 = vpop.f32.mrf.mxu0
        %v2751 = vadd.f32 0.0, %v2750
        %2752 = vmatmul.bf16.gmra.mxu0 %v2619
        %v2753 = vpop.f32.mrf.mxu0
        %v2754 = vadd.f32 0.0, %v2753
        %v2755 = vpop.f32.mrf.mxu0
        %v2756 = vadd.f32 0.0, %v2755
        %2757 = vmatmul.bf16.gmra.mxu0 %v2622
        %v2758 = vpop.f32.mrf.mxu0
        %v2759 = vadd.f32 0.0, %v2758
        %v2760 = vpop.f32.mrf.mxu0
        %v2761 = vadd.f32 0.0, %v2760
        %2762 = vmatmul.bf16.gmra.mxu0 %v2625
        %v2763 = vpop.f32.mrf.mxu0
        %v2764 = vadd.f32 0.0, %v2763
        %v2765 = vpop.f32.mrf.mxu0
        %v2766 = vadd.f32 0.0, %v2765
        %2767 = vmatmul.bf16.gmra.mxu0 %v2628
        %v2768 = vpop.f32.mrf.mxu0
        %v2769 = vadd.f32 0.0, %v2768
        %v2770 = vpop.f32.mrf.mxu0
        %v2771 = vadd.f32 0.0, %v2770
        %2772 = vmatmul.bf16.gmra.mxu0 %v2631
        %v2773 = vpop.f32.mrf.mxu0
        %v2774 = vadd.f32 0.0, %v2773
        %v2775 = vpop.f32.mrf.mxu0
        %v2776 = vadd.f32 0.0, %v2775
        %2777 = vmatmul.bf16.gmra.mxu0 %v2634
        %v2778 = vpop.f32.mrf.mxu0
        %v2779 = vadd.f32 0.0, %v2778
        %v2780 = vpop.f32.mrf.mxu0
        %v2781 = vadd.f32 0.0, %v2780
        %2782 = vmatmul.bf16.gmra.mxu0 %v2637
        %v2783 = vpop.f32.mrf.mxu0
        %v2784 = vadd.f32 0.0, %v2783
        %v2785 = vpop.f32.mrf.mxu0
        %v2786 = vadd.f32 0.0, %v2785
        %2787 = vmatmul.bf16.gmra.mxu0 %v2640
        %v2788 = vpop.f32.mrf.mxu0
        %v2789 = vadd.f32 0.0, %v2788
        %v2790 = vpop.f32.mrf.mxu0
        %v2791 = vadd.f32 0.0, %v2790
        %2792 = vmatmul.bf16.gmra.mxu0 %v2643
        %v2793 = vpop.f32.mrf.mxu0
        %v2794 = vadd.f32 0.0, %v2793
        %v2795 = vpop.f32.mrf.mxu0
        %v2796 = vadd.f32 0.0, %v2795
        %2797 = vmatmul.bf16.gmra.mxu0 %v2646
        %v2798 = vpop.f32.mrf.mxu0
        %v2799 = vadd.f32 0.0, %v2798
        %v2800 = vpop.f32.mrf.mxu0
        %v2801 = vadd.f32 0.0, %v2800
        %2802 = vmatmul.bf16.gmra.mxu0 %v2649
        %v2803 = vpop.f32.mrf.mxu0
        %v2804 = vadd.f32 0.0, %v2803
        %v2805 = vpop.f32.mrf.mxu0
        %v2806 = vadd.f32 0.0, %v2805
        %2807 = vmatmul.bf16.gmra.mxu0 %v2652
        %v2808 = vpop.f32.mrf.mxu0
        %v2809 = vadd.f32 0.0, %v2808
        %v2810 = vpop.f32.mrf.mxu0
        %v2811 = vadd.f32 0.0, %v2810
        %2812 = vmatmul.bf16.gmra.mxu0 %v2655
        %v2813 = vpop.f32.mrf.mxu0
        %v2814 = vadd.f32 0.0, %v2813
        %v2815 = vpop.f32.mrf.mxu0
        %v2816 = vadd.f32 0.0, %v2815
        %2817 = vmatmul.bf16.gmra.mxu0 %v2658
        %v2818 = vpop.f32.mrf.mxu0
        %v2819 = vadd.f32 0.0, %v2818
        %v2820 = vpop.f32.mrf.mxu0
        %v2821 = vadd.f32 0.0, %v2820
        %2822 = vmatmul.bf16.gmra.mxu0 %v2661
        %v2823 = vpop.f32.mrf.mxu0
        %v2824 = vadd.f32 0.0, %v2823
        %v2825 = vpop.f32.mrf.mxu0
        %v2826 = vadd.f32 0.0, %v2825
        %2827 = vmatmul.bf16.gmra.mxu0 %v2664
        %v2828 = vpop.f32.mrf.mxu0
        %v2829 = vadd.f32 0.0, %v2828
        %v2830 = vpop.f32.mrf.mxu0
        %v2831 = vadd.f32 0.0, %v2830
        %2832 = vmatmul.bf16.gmra.mxu0 %v2667
        %v2833 = vpop.f32.mrf.mxu0
        %v2834 = vadd.f32 0.0, %v2833
        %v2835 = vpop.f32.mrf.mxu0
        %v2836 = vadd.f32 0.0, %v2835
        %2837 = vdwg.mxu0
        %2838 = vxpose.xlu0.b32.start [1/16] %v2679, 128
        %2839 = vxpose.xlu0.b32.cont [2/16] %v2681, 128
        %2840 = vxpose.xlu0.b32.cont [3/16] %v2684, 128
        %2841 = vxpose.xlu0.b32.cont [4/16] %v2686, 128
        %2842 = vxpose.xlu0.b32.cont [5/16] 0.0, 128
        %2843 = vxpose.xlu0.b32.cont [6/16] 0.0, 128
        %2844 = vxpose.xlu0.b32.cont [7/16] 0.0, 128
        %2845 = vxpose.xlu0.b32.cont [8/16] 0.0, 128
        %2846 = vxpose.xlu0.b32.cont [9/16] 0.0, 128
        %2847 = vxpose.xlu0.b32.cont [10/16] 0.0, 128
        %2848 = vxpose.xlu0.b32.cont [11/16] 0.0, 128
        %2849 = vxpose.xlu0.b32.cont [12/16] 0.0, 128
        %2850 = vxpose.xlu0.b32.cont [13/16] 0.0, 128
        %2851 = vxpose.xlu0.b32.cont [14/16] 0.0, 128
        %2852 = vxpose.xlu0.b32.cont [15/16] 0.0, 128
        %2853 = vxpose.xlu0.b32.end [16/16] 0.0, 128
        %v2854 = vpop.trf.xlu0
        %v2855 = vpop.trf.xlu0
        %v2856 = vpop.trf.xlu0
        %v2857 = vpop.trf.xlu0
        %v2858 = vpop.trf.xlu0
        %v2859 = vpop.trf.xlu0
        %v2860 = vpop.trf.xlu0
        %v2861 = vpop.trf.xlu0
        %v2862 = vpop.trf.xlu0
        %v2863 = vpop.trf.xlu0
        %v2864 = vpop.trf.xlu0
        %v2865 = vpop.trf.xlu0
        %v2866 = vpop.trf.xlu0
        %v2867 = vpop.trf.xlu0
        %v2868 = vpop.trf.xlu0
        %v2869 = vpop.trf.xlu0
        %2870 = vxpose.xlu0.b32.start [1/16] %v2689, 128
        %2871 = vxpose.xlu0.b32.cont [2/16] %v2691, 128
        %2872 = vxpose.xlu0.b32.cont [3/16] %v2694, 128
        %2873 = vxpose.xlu0.b32.cont [4/16] %v2696, 128
        %2874 = vxpose.xlu0.b32.cont [5/16] 0.0, 128
        %2875 = vxpose.xlu0.b32.cont [6/16] 0.0, 128
        %2876 = vxpose.xlu0.b32.cont [7/16] 0.0, 128
        %2877 = vxpose.xlu0.b32.cont [8/16] 0.0, 128
        %2878 = vxpose.xlu0.b32.cont [9/16] 0.0, 128
        %2879 = vxpose.xlu0.b32.cont [10/16] 0.0, 128
        %2880 = vxpose.xlu0.b32.cont [11/16] 0.0, 128
        %2881 = vxpose.xlu0.b32.cont [12/16] 0.0, 128
        %2882 = vxpose.xlu0.b32.cont [13/16] 0.0, 128
        %2883 = vxpose.xlu0.b32.cont [14/16] 0.0, 128
        %2884 = vxpose.xlu0.b32.cont [15/16] 0.0, 128
        %2885 = vxpose.xlu0.b32.end [16/16] 0.0, 128
        %v2886 = vpop.trf.xlu0
        %v2887 = vpop.trf.xlu0
        %v2888 = vpop.trf.xlu0
        %v2889 = vpop.trf.xlu0
        %v2890 = vpop.trf.xlu0
        %v2891 = vpop.trf.xlu0
        %v2892 = vpop.trf.xlu0
        %v2893 = vpop.trf.xlu0
        %v2894 = vpop.trf.xlu0
        %v2895 = vpop.trf.xlu0
        %v2896 = vpop.trf.xlu0
        %v2897 = vpop.trf.xlu0
        %v2898 = vpop.trf.xlu0
        %v2899 = vpop.trf.xlu0
        %v2900 = vpop.trf.xlu0
        %v2901 = vpop.trf.xlu0
        %2902 = vxpose.xlu0.b32.start [1/16] %v2699, 128
        %2903 = vxpose.xlu0.b32.cont [2/16] %v2701, 128
        %2904 = vxpose.xlu0.b32.cont [3/16] %v2704, 128
        %2905 = vxpose.xlu0.b32.cont [4/16] %v2706, 128
        %2906 = vxpose.xlu0.b32.cont [5/16] 0.0, 128
        %2907 = vxpose.xlu0.b32.cont [6/16] 0.0, 128
        %2908 = vxpose.xlu0.b32.cont [7/16] 0.0, 128
        %2909 = vxpose.xlu0.b32.cont [8/16] 0.0, 128
        %2910 = vxpose.xlu0.b32.cont [9/16] 0.0, 128
        %2911 = vxpose.xlu0.b32.cont [10/16] 0.0, 128
        %2912 = vxpose.xlu0.b32.cont [11/16] 0.0, 128
        %2913 = vxpose.xlu0.b32.cont [12/16] 0.0, 128
        %2914 = vxpose.xlu0.b32.cont [13/16] 0.0, 128
        %2915 = vxpose.xlu0.b32.cont [14/16] 0.0, 128
        %2916 = vxpose.xlu0.b32.cont [15/16] 0.0, 128
        %2917 = vxpose.xlu0.b32.end [16/16] 0.0, 128
        %v2918 = vpop.trf.xlu0
        %v2919 = vpop.trf.xlu0
        %v2920 = vpop.trf.xlu0
        %v2921 = vpop.trf.xlu0
        %v2922 = vpop.trf.xlu0
        %v2923 = vpop.trf.xlu0
        %v2924 = vpop.trf.xlu0
        %v2925 = vpop.trf.xlu0
        %v2926 = vpop.trf.xlu0
        %v2927 = vpop.trf.xlu0
        %v2928 = vpop.trf.xlu0
        %v2929 = vpop.trf.xlu0
        %v2930 = vpop.trf.xlu0
        %v2931 = vpop.trf.xlu0
        %v2932 = vpop.trf.xlu0
        %v2933 = vpop.trf.xlu0
        %2934 = vxpose.xlu0.b32.start [1/16] %v2709, 128
        %2935 = vxpose.xlu0.b32.cont [2/16] %v2711, 128
        %2936 = vxpose.xlu0.b32.cont [3/16] %v2714, 128
        %2937 = vxpose.xlu0.b32.cont [4/16] %v2716, 128
        %2938 = vxpose.xlu0.b32.cont [5/16] 0.0, 128
        %2939 = vxpose.xlu0.b32.cont [6/16] 0.0, 128
        %2940 = vxpose.xlu0.b32.cont [7/16] 0.0, 128
        %2941 = vxpose.xlu0.b32.cont [8/16] 0.0, 128
        %2942 = vxpose.xlu0.b32.cont [9/16] 0.0, 128
        %2943 = vxpose.xlu0.b32.cont [10/16] 0.0, 128
        %2944 = vxpose.xlu0.b32.cont [11/16] 0.0, 128
        %2945 = vxpose.xlu0.b32.cont [12/16] 0.0, 128
        %2946 = vxpose.xlu0.b32.cont [13/16] 0.0, 128
        %2947 = vxpose.xlu0.b32.cont [14/16] 0.0, 128
        %2948 = vxpose.xlu0.b32.cont [15/16] 0.0, 128
        %2949 = vxpose.xlu0.b32.end [16/16] 0.0, 128
        %v2950 = vpop.trf.xlu0
        %v2951 = vpop.trf.xlu0
        %v2952 = vpop.trf.xlu0
        %v2953 = vpop.trf.xlu0
        %v2954 = vpop.trf.xlu0
        %v2955 = vpop.trf.xlu0
        %v2956 = vpop.trf.xlu0
        %v2957 = vpop.trf.xlu0
        %v2958 = vpop.trf.xlu0
        %v2959 = vpop.trf.xlu0
        %v2960 = vpop.trf.xlu0
        %v2961 = vpop.trf.xlu0
        %v2962 = vpop.trf.xlu0
        %v2963 = vpop.trf.xlu0
        %v2964 = vpop.trf.xlu0
        %v2965 = vpop.trf.xlu0
        %2966 = vxpose.xlu0.b32.start [1/16] %v2719, 128
        %2967 = vxpose.xlu0.b32.cont [2/16] %v2721, 128
        %2968 = vxpose.xlu0.b32.cont [3/16] %v2724, 128
        %2969 = vxpose.xlu0.b32.cont [4/16] %v2726, 128
        %2970 = vxpose.xlu0.b32.cont [5/16] 0.0, 128
        %2971 = vxpose.xlu0.b32.cont [6/16] 0.0, 128
        %2972 = vxpose.xlu0.b32.cont [7/16] 0.0, 128
        %2973 = vxpose.xlu0.b32.cont [8/16] 0.0, 128
        %2974 = vxpose.xlu0.b32.cont [9/16] 0.0, 128
        %2975 = vxpose.xlu0.b32.cont [10/16] 0.0, 128
        %2976 = vxpose.xlu0.b32.cont [11/16] 0.0, 128
        %2977 = vxpose.xlu0.b32.cont [12/16] 0.0, 128
        %2978 = vxpose.xlu0.b32.cont [13/16] 0.0, 128
        %2979 = vxpose.xlu0.b32.cont [14/16] 0.0, 128
        %2980 = vxpose.xlu0.b32.cont [15/16] 0.0, 128
        %2981 = vxpose.xlu0.b32.end [16/16] 0.0, 128
        %v2982 = vpop.trf.xlu0
        %v2983 = vpop.trf.xlu0
        %v2984 = vpop.trf.xlu0
        %v2985 = vpop.trf.xlu0
        %v2986 = vpop.trf.xlu0
        %v2987 = vpop.trf.xlu0
        %v2988 = vpop.trf.xlu0
        %v2989 = vpop.trf.xlu0
        %v2990 = vpop.trf.xlu0
        %v2991 = vpop.trf.xlu0
        %v2992 = vpop.trf.xlu0
        %v2993 = vpop.trf.xlu0
        %v2994 = vpop.trf.xlu0
        %v2995 = vpop.trf.xlu0
        %v2996 = vpop.trf.xlu0
        %v2997 = vpop.trf.xlu0
        %2998 = vxpose.xlu0.b32.start [1/16] %v2729, 128
        %2999 = vxpose.xlu0.b32.cont [2/16] %v2731, 128
        %3000 = vxpose.xlu0.b32.cont [3/16] %v2734, 128
        %3001 = vxpose.xlu0.b32.cont [4/16] %v2736, 128
        %3002 = vxpose.xlu0.b32.cont [5/16] 0.0, 128
        %3003 = vxpose.xlu0.b32.cont [6/16] 0.0, 128
        %3004 = vxpose.xlu0.b32.cont [7/16] 0.0, 128
        %3005 = vxpose.xlu0.b32.cont [8/16] 0.0, 128
        %3006 = vxpose.xlu0.b32.cont [9/16] 0.0, 128
        %3007 = vxpose.xlu0.b32.cont [10/16] 0.0, 128
        %3008 = vxpose.xlu0.b32.cont [11/16] 0.0, 128
        %3009 = vxpose.xlu0.b32.cont [12/16] 0.0, 128
        %3010 = vxpose.xlu0.b32.cont [13/16] 0.0, 128
        %3011 = vxpose.xlu0.b32.cont [14/16] 0.0, 128
        %3012 = vxpose.xlu0.b32.cont [15/16] 0.0, 128
        %3013 = vxpose.xlu0.b32.end [16/16] 0.0, 128
        %v3014 = vpop.trf.xlu0
        %v3015 = vpop.trf.xlu0
        %v3016 = vpop.trf.xlu0
        %v3017 = vpop.trf.xlu0
        %v3018 = vpop.trf.xlu0
        %v3019 = vpop.trf.xlu0
        %v3020 = vpop.trf.xlu0
        %v3021 = vpop.trf.xlu0
        %v3022 = vpop.trf.xlu0
        %v3023 = vpop.trf.xlu0
        %v3024 = vpop.trf.xlu0
        %v3025 = vpop.trf.xlu0
        %v3026 = vpop.trf.xlu0
        %v3027 = vpop.trf.xlu0
        %v3028 = vpop.trf.xlu0
        %v3029 = vpop.trf.xlu0
        %3030 = vxpose.xlu0.b32.start [1/16] %v2739, 128
        %3031 = vxpose.xlu0.b32.cont [2/16] %v2741, 128
        %3032 = vxpose.xlu0.b32.cont [3/16] %v2744, 128
        %3033 = vxpose.xlu0.b32.cont [4/16] %v2746, 128
        %3034 = vxpose.xlu0.b32.cont [5/16] 0.0, 128
        %3035 = vxpose.xlu0.b32.cont [6/16] 0.0, 128
        %3036 = vxpose.xlu0.b32.cont [7/16] 0.0, 128
        %3037 = vxpose.xlu0.b32.cont [8/16] 0.0, 128
        %3038 = vxpose.xlu0.b32.cont [9/16] 0.0, 128
        %3039 = vxpose.xlu0.b32.cont [10/16] 0.0, 128
        %3040 = vxpose.xlu0.b32.cont [11/16] 0.0, 128
        %3041 = vxpose.xlu0.b32.cont [12/16] 0.0, 128
        %3042 = vxpose.xlu0.b32.cont [13/16] 0.0, 128
        %3043 = vxpose.xlu0.b32.cont [14/16] 0.0, 128
        %3044 = vxpose.xlu0.b32.cont [15/16] 0.0, 128
        %3045 = vxpose.xlu0.b32.end [16/16] 0.0, 128
        %v3046 = vpop.trf.xlu0
        %v3047 = vpop.trf.xlu0
        %v3048 = vpop.trf.xlu0
        %v3049 = vpop.trf.xlu0
        %v3050 = vpop.trf.xlu0
        %v3051 = vpop.trf.xlu0
        %v3052 = vpop.trf.xlu0
        %v3053 = vpop.trf.xlu0
        %v3054 = vpop.trf.xlu0
        %v3055 = vpop.trf.xlu0
        %v3056 = vpop.trf.xlu0
        %v3057 = vpop.trf.xlu0
        %v3058 = vpop.trf.xlu0
        %v3059 = vpop.trf.xlu0
        %v3060 = vpop.trf.xlu0
        %v3061 = vpop.trf.xlu0
        %3062 = vxpose.xlu0.b32.start [1/16] %v2749, 128
        %3063 = vxpose.xlu0.b32.cont [2/16] %v2751, 128
        %3064 = vxpose.xlu0.b32.cont [3/16] %v2754, 128
        %3065 = vxpose.xlu0.b32.cont [4/16] %v2756, 128
        %3066 = vxpose.xlu0.b32.cont [5/16] 0.0, 128
        %3067 = vxpose.xlu0.b32.cont [6/16] 0.0, 128
        %3068 = vxpose.xlu0.b32.cont [7/16] 0.0, 128
        %3069 = vxpose.xlu0.b32.cont [8/16] 0.0, 128
        %3070 = vxpose.xlu0.b32.cont [9/16] 0.0, 128
        %3071 = vxpose.xlu0.b32.cont [10/16] 0.0, 128
        %3072 = vxpose.xlu0.b32.cont [11/16] 0.0, 128
        %3073 = vxpose.xlu0.b32.cont [12/16] 0.0, 128
        %3074 = vxpose.xlu0.b32.cont [13/16] 0.0, 128
        %3075 = vxpose.xlu0.b32.cont [14/16] 0.0, 128
        %3076 = vxpose.xlu0.b32.cont [15/16] 0.0, 128
        %3077 = vxpose.xlu0.b32.end [16/16] 0.0, 128
        %v3078 = vpop.trf.xlu0
        %v3079 = vpop.trf.xlu0
        %v3080 = vpop.trf.xlu0
        %v3081 = vpop.trf.xlu0
        %v3082 = vpop.trf.xlu0
        %v3083 = vpop.trf.xlu0
        %v3084 = vpop.trf.xlu0
        %v3085 = vpop.trf.xlu0
        %v3086 = vpop.trf.xlu0
        %v3087 = vpop.trf.xlu0
        %v3088 = vpop.trf.xlu0
        %v3089 = vpop.trf.xlu0
        %v3090 = vpop.trf.xlu0
        %v3091 = vpop.trf.xlu0
        %v3092 = vpop.trf.xlu0
        %v3093 = vpop.trf.xlu0
        %3094 = vxpose.xlu0.b32.start [1/16] %v2759, 128
        %3095 = vxpose.xlu0.b32.cont [2/16] %v2761, 128
        %3096 = vxpose.xlu0.b32.cont [3/16] %v2764, 128
        %3097 = vxpose.xlu0.b32.cont [4/16] %v2766, 128
        %3098 = vxpose.xlu0.b32.cont [5/16] 0.0, 128
        %3099 = vxpose.xlu0.b32.cont [6/16] 0.0, 128
        %3100 = vxpose.xlu0.b32.cont [7/16] 0.0, 128
        %3101 = vxpose.xlu0.b32.cont [8/16] 0.0, 128
        %3102 = vxpose.xlu0.b32.cont [9/16] 0.0, 128
        %3103 = vxpose.xlu0.b32.cont [10/16] 0.0, 128
        %3104 = vxpose.xlu0.b32.cont [11/16] 0.0, 128
        %3105 = vxpose.xlu0.b32.cont [12/16] 0.0, 128
        %3106 = vxpose.xlu0.b32.cont [13/16] 0.0, 128
        %3107 = vxpose.xlu0.b32.cont [14/16] 0.0, 128
        %3108 = vxpose.xlu0.b32.cont [15/16] 0.0, 128
        %3109 = vxpose.xlu0.b32.end [16/16] 0.0, 128
        %v3110 = vpop.trf.xlu0
        %v3111 = vpop.trf.xlu0
        %v3112 = vpop.trf.xlu0
        %v3113 = vpop.trf.xlu0
        %v3114 = vpop.trf.xlu0
        %v3115 = vpop.trf.xlu0
        %v3116 = vpop.trf.xlu0
        %v3117 = vpop.trf.xlu0
        %v3118 = vpop.trf.xlu0
        %v3119 = vpop.trf.xlu0
        %v3120 = vpop.trf.xlu0
        %v3121 = vpop.trf.xlu0
        %v3122 = vpop.trf.xlu0
        %v3123 = vpop.trf.xlu0
        %v3124 = vpop.trf.xlu0
        %v3125 = vpop.trf.xlu0
        %3126 = vxpose.xlu0.b32.start [1/16] %v2769, 128
        %3127 = vxpose.xlu0.b32.cont [2/16] %v2771, 128
        %3128 = vxpose.xlu0.b32.cont [3/16] %v2774, 128
        %3129 = vxpose.xlu0.b32.cont [4/16] %v2776, 128
        %3130 = vxpose.xlu0.b32.cont [5/16] 0.0, 128
        %3131 = vxpose.xlu0.b32.cont [6/16] 0.0, 128
        %3132 = vxpose.xlu0.b32.cont [7/16] 0.0, 128
        %3133 = vxpose.xlu0.b32.cont [8/16] 0.0, 128
        %3134 = vxpose.xlu0.b32.cont [9/16] 0.0, 128
        %3135 = vxpose.xlu0.b32.cont [10/16] 0.0, 128
        %3136 = vxpose.xlu0.b32.cont [11/16] 0.0, 128
        %3137 = vxpose.xlu0.b32.cont [12/16] 0.0, 128
        %3138 = vxpose.xlu0.b32.cont [13/16] 0.0, 128
        %3139 = vxpose.xlu0.b32.cont [14/16] 0.0, 128
        %3140 = vxpose.xlu0.b32.cont [15/16] 0.0, 128
        %3141 = vxpose.xlu0.b32.end [16/16] 0.0, 128
        %v3142 = vpop.trf.xlu0
        %v3143 = vpop.trf.xlu0
        %v3144 = vpop.trf.xlu0
        %v3145 = vpop.trf.xlu0
        %v3146 = vpop.trf.xlu0
        %v3147 = vpop.trf.xlu0
        %v3148 = vpop.trf.xlu0
        %v3149 = vpop.trf.xlu0
        %v3150 = vpop.trf.xlu0
        %v3151 = vpop.trf.xlu0
        %v3152 = vpop.trf.xlu0
        %v3153 = vpop.trf.xlu0
        %v3154 = vpop.trf.xlu0
        %v3155 = vpop.trf.xlu0
        %v3156 = vpop.trf.xlu0
        %v3157 = vpop.trf.xlu0
        %3158 = vxpose.xlu0.b32.start [1/16] %v2779, 128
        %3159 = vxpose.xlu0.b32.cont [2/16] %v2781, 128
        %3160 = vxpose.xlu0.b32.cont [3/16] %v2784, 128
        %3161 = vxpose.xlu0.b32.cont [4/16] %v2786, 128
        %3162 = vxpose.xlu0.b32.cont [5/16] 0.0, 128
        %3163 = vxpose.xlu0.b32.cont [6/16] 0.0, 128
        %3164 = vxpose.xlu0.b32.cont [7/16] 0.0, 128
        %3165 = vxpose.xlu0.b32.cont [8/16] 0.0, 128
        %3166 = vxpose.xlu0.b32.cont [9/16] 0.0, 128
        %3167 = vxpose.xlu0.b32.cont [10/16] 0.0, 128
        %3168 = vxpose.xlu0.b32.cont [11/16] 0.0, 128
        %3169 = vxpose.xlu0.b32.cont [12/16] 0.0, 128
        %3170 = vxpose.xlu0.b32.cont [13/16] 0.0, 128
        %3171 = vxpose.xlu0.b32.cont [14/16] 0.0, 128
        %3172 = vxpose.xlu0.b32.cont [15/16] 0.0, 128
        %3173 = vxpose.xlu0.b32.end [16/16] 0.0, 128
        %v3174 = vpop.trf.xlu0
        %v3175 = vpop.trf.xlu0
        %v3176 = vpop.trf.xlu0
        %v3177 = vpop.trf.xlu0
        %v3178 = vpop.trf.xlu0
        %v3179 = vpop.trf.xlu0
        %v3180 = vpop.trf.xlu0
        %v3181 = vpop.trf.xlu0
        %v3182 = vpop.trf.xlu0
        %v3183 = vpop.trf.xlu0
        %v3184 = vpop.trf.xlu0
        %v3185 = vpop.trf.xlu0
        %v3186 = vpop.trf.xlu0
        %v3187 = vpop.trf.xlu0
        %v3188 = vpop.trf.xlu0
        %v3189 = vpop.trf.xlu0
        %3190 = vxpose.xlu0.b32.start [1/16] %v2789, 128
        %3191 = vxpose.xlu0.b32.cont [2/16] %v2791, 128
        %3192 = vxpose.xlu0.b32.cont [3/16] %v2794, 128
        %3193 = vxpose.xlu0.b32.cont [4/16] %v2796, 128
        %3194 = vxpose.xlu0.b32.cont [5/16] 0.0, 128
        %3195 = vxpose.xlu0.b32.cont [6/16] 0.0, 128
        %3196 = vxpose.xlu0.b32.cont [7/16] 0.0, 128
        %3197 = vxpose.xlu0.b32.cont [8/16] 0.0, 128
        %3198 = vxpose.xlu0.b32.cont [9/16] 0.0, 128
        %3199 = vxpose.xlu0.b32.cont [10/16] 0.0, 128
        %3200 = vxpose.xlu0.b32.cont [11/16] 0.0, 128
        %3201 = vxpose.xlu0.b32.cont [12/16] 0.0, 128
        %3202 = vxpose.xlu0.b32.cont [13/16] 0.0, 128
        %3203 = vxpose.xlu0.b32.cont [14/16] 0.0, 128
        %3204 = vxpose.xlu0.b32.cont [15/16] 0.0, 128
        %3205 = vxpose.xlu0.b32.end [16/16] 0.0, 128
        %v3206 = vpop.trf.xlu0
        %v3207 = vpop.trf.xlu0
        %v3208 = vpop.trf.xlu0
        %v3209 = vpop.trf.xlu0
        %v3210 = vpop.trf.xlu0
        %v3211 = vpop.trf.xlu0
        %v3212 = vpop.trf.xlu0
        %v3213 = vpop.trf.xlu0
        %v3214 = vpop.trf.xlu0
        %v3215 = vpop.trf.xlu0
        %v3216 = vpop.trf.xlu0
        %v3217 = vpop.trf.xlu0
        %v3218 = vpop.trf.xlu0
        %v3219 = vpop.trf.xlu0
        %v3220 = vpop.trf.xlu0
        %v3221 = vpop.trf.xlu0
        %3222 = vxpose.xlu0.b32.start [1/16] %v2799, 128
        %3223 = vxpose.xlu0.b32.cont [2/16] %v2801, 128
        %3224 = vxpose.xlu0.b32.cont [3/16] %v2804, 128
        %3225 = vxpose.xlu0.b32.cont [4/16] %v2806, 128
        %3226 = vxpose.xlu0.b32.cont [5/16] 0.0, 128
        %3227 = vxpose.xlu0.b32.cont [6/16] 0.0, 128
        %3228 = vxpose.xlu0.b32.cont [7/16] 0.0, 128
        %3229 = vxpose.xlu0.b32.cont [8/16] 0.0, 128
        %3230 = vxpose.xlu0.b32.cont [9/16] 0.0, 128
        %3231 = vxpose.xlu0.b32.cont [10/16] 0.0, 128
        %3232 = vxpose.xlu0.b32.cont [11/16] 0.0, 128
        %3233 = vxpose.xlu0.b32.cont [12/16] 0.0, 128
        %3234 = vxpose.xlu0.b32.cont [13/16] 0.0, 128
        %3235 = vxpose.xlu0.b32.cont [14/16] 0.0, 128
        %3236 = vxpose.xlu0.b32.cont [15/16] 0.0, 128
        %3237 = vxpose.xlu0.b32.end [16/16] 0.0, 128
        %v3238 = vpop.trf.xlu0
        %v3239 = vpop.trf.xlu0
        %v3240 = vpop.trf.xlu0
        %v3241 = vpop.trf.xlu0
        %v3242 = vpop.trf.xlu0
        %v3243 = vpop.trf.xlu0
        %v3244 = vpop.trf.xlu0
        %v3245 = vpop.trf.xlu0
        %v3246 = vpop.trf.xlu0
        %v3247 = vpop.trf.xlu0
        %v3248 = vpop.trf.xlu0
        %v3249 = vpop.trf.xlu0
        %v3250 = vpop.trf.xlu0
        %v3251 = vpop.trf.xlu0
        %v3252 = vpop.trf.xlu0
        %v3253 = vpop.trf.xlu0
        %3254 = vxpose.xlu0.b32.start [1/16] %v2809, 128
        %3255 = vxpose.xlu0.b32.cont [2/16] %v2811, 128
        %3256 = vxpose.xlu0.b32.cont [3/16] %v2814, 128
        %3257 = vxpose.xlu0.b32.cont [4/16] %v2816, 128
        %3258 = vxpose.xlu0.b32.cont [5/16] 0.0, 128
        %3259 = vxpose.xlu0.b32.cont [6/16] 0.0, 128
        %3260 = vxpose.xlu0.b32.cont [7/16] 0.0, 128
        %3261 = vxpose.xlu0.b32.cont [8/16] 0.0, 128
        %3262 = vxpose.xlu0.b32.cont [9/16] 0.0, 128
        %3263 = vxpose.xlu0.b32.cont [10/16] 0.0, 128
        %3264 = vxpose.xlu0.b32.cont [11/16] 0.0, 128
        %3265 = vxpose.xlu0.b32.cont [12/16] 0.0, 128
        %3266 = vxpose.xlu0.b32.cont [13/16] 0.0, 128
        %3267 = vxpose.xlu0.b32.cont [14/16] 0.0, 128
        %3268 = vxpose.xlu0.b32.cont [15/16] 0.0, 128
        %3269 = vxpose.xlu0.b32.end [16/16] 0.0, 128
        %v3270 = vpop.trf.xlu0
        %v3271 = vpop.trf.xlu0
        %v3272 = vpop.trf.xlu0
        %v3273 = vpop.trf.xlu0
        %v3274 = vpop.trf.xlu0
        %v3275 = vpop.trf.xlu0
        %v3276 = vpop.trf.xlu0
        %v3277 = vpop.trf.xlu0
        %v3278 = vpop.trf.xlu0
        %v3279 = vpop.trf.xlu0
        %v3280 = vpop.trf.xlu0
        %v3281 = vpop.trf.xlu0
        %v3282 = vpop.trf.xlu0
        %v3283 = vpop.trf.xlu0
        %v3284 = vpop.trf.xlu0
        %v3285 = vpop.trf.xlu0
        %3286 = vxpose.xlu0.b32.start [1/16] %v2819, 128
        %3287 = vxpose.xlu0.b32.cont [2/16] %v2821, 128
        %3288 = vxpose.xlu0.b32.cont [3/16] %v2824, 128
        %3289 = vxpose.xlu0.b32.cont [4/16] %v2826, 128
        %3290 = vxpose.xlu0.b32.cont [5/16] 0.0, 128
        %3291 = vxpose.xlu0.b32.cont [6/16] 0.0, 128
        %3292 = vxpose.xlu0.b32.cont [7/16] 0.0, 128
        %3293 = vxpose.xlu0.b32.cont [8/16] 0.0, 128
        %3294 = vxpose.xlu0.b32.cont [9/16] 0.0, 128
        %3295 = vxpose.xlu0.b32.cont [10/16] 0.0, 128
        %3296 = vxpose.xlu0.b32.cont [11/16] 0.0, 128
        %3297 = vxpose.xlu0.b32.cont [12/16] 0.0, 128
        %3298 = vxpose.xlu0.b32.cont [13/16] 0.0, 128
        %3299 = vxpose.xlu0.b32.cont [14/16] 0.0, 128
        %3300 = vxpose.xlu0.b32.cont [15/16] 0.0, 128
        %3301 = vxpose.xlu0.b32.end [16/16] 0.0, 128
        %v3302 = vpop.trf.xlu0
        %v3303 = vpop.trf.xlu0
        %v3304 = vpop.trf.xlu0
        %v3305 = vpop.trf.xlu0
        %v3306 = vpop.trf.xlu0
        %v3307 = vpop.trf.xlu0
        %v3308 = vpop.trf.xlu0
        %v3309 = vpop.trf.xlu0
        %v3310 = vpop.trf.xlu0
        %v3311 = vpop.trf.xlu0
        %v3312 = vpop.trf.xlu0
        %v3313 = vpop.trf.xlu0
        %v3314 = vpop.trf.xlu0
        %v3315 = vpop.trf.xlu0
        %v3316 = vpop.trf.xlu0
        %v3317 = vpop.trf.xlu0
        %3318 = vxpose.xlu0.b32.start [1/16] %v2829, 128
        %3319 = vxpose.xlu0.b32.cont [2/16] %v2831, 128
        %3320 = vxpose.xlu0.b32.cont [3/16] %v2834, 128
        %3321 = vxpose.xlu0.b32.cont [4/16] %v2836, 128
        %3322 = vxpose.xlu0.b32.cont [5/16] 0.0, 128
        %3323 = vxpose.xlu0.b32.cont [6/16] 0.0, 128
        %3324 = vxpose.xlu0.b32.cont [7/16] 0.0, 128
        %3325 = vxpose.xlu0.b32.cont [8/16] 0.0, 128
        %3326 = vxpose.xlu0.b32.cont [9/16] 0.0, 128
        %3327 = vxpose.xlu0.b32.cont [10/16] 0.0, 128
        %3328 = vxpose.xlu0.b32.cont [11/16] 0.0, 128
        %3329 = vxpose.xlu0.b32.cont [12/16] 0.0, 128
        %3330 = vxpose.xlu0.b32.cont [13/16] 0.0, 128
        %3331 = vxpose.xlu0.b32.cont [14/16] 0.0, 128
        %3332 = vxpose.xlu0.b32.cont [15/16] 0.0, 128
        %3333 = vxpose.xlu0.b32.end [16/16] 0.0, 128
        %v3334 = vpop.trf.xlu0
        %v3335 = vpop.trf.xlu0
        %v3336 = vpop.trf.xlu0
        %v3337 = vpop.trf.xlu0
        %v3338 = vpop.trf.xlu0
        %v3339 = vpop.trf.xlu0
        %v3340 = vpop.trf.xlu0
        %v3341 = vpop.trf.xlu0
        %v3342 = vpop.trf.xlu0
        %v3343 = vpop.trf.xlu0
        %v3344 = vpop.trf.xlu0
        %v3345 = vpop.trf.xlu0
        %v3346 = vpop.trf.xlu0
        %v3347 = vpop.trf.xlu0
        %v3348 = vpop.trf.xlu0
        %v3349 = vpop.trf.xlu0
        %v3350 = vld [vmem:[%s433] sm:$0xf]
        %v3351 = vld [vmem:[%s433 + $0x4] sm:$0xf]
        %v3352 = vunpack.c.l.bf16 %v3350
        %v3353 = vunpack.c.l.bf16 %v3351
        %v3354 = vadd.f32 %v1955, %v3352
        %v3355 = vadd.f32 %v1956, %v3353
        %v3372 = vrot.slane %v1530, 7
        %v3373 = vsel %vm1432, %v3372, %v1500
        %v3374 = vrot.slane %v1560, 6
        %v3375 = vsel %vm1436, %v3374, %v3373
        %v3376 = vrot.slane %v1590, 5
        %v3377 = vsel %vm1440, %v3376, %v3375
        %v3378 = vrot.slane %v1620, 4
        %vm3379 = vcmask 1044484
        %v3380 = vsel %vm3379, %v3378, %v3377
        %v3381 = vrot.slane %v1650, 3
        %vm3382 = vcmask 1045509
        %v3383 = vsel %vm3382, %v3381, %v3380
        %v3384 = vrot.slane %v1680, 2
        %vm3385 = vcmask 1046534
        %v3386 = vsel %vm3385, %v3384, %v3383
        %v3387 = vrot.slane %v1710, 1
        %vm3388 = vcmask 1047559
        %v3389 = vsel %vm3388, %v3387, %v3386
        %v3390 = vrot.slane %v1770, 7
        %v3391 = vsel %vm1432, %v3390, %v1740
        %v3392 = vrot.slane %v1800, 6
        %v3393 = vsel %vm1436, %v3392, %v3391
        %v3394 = vrot.slane %v1830, 5
        %v3395 = vsel %vm1440, %v3394, %v3393
        %v3396 = vrot.slane %v1860, 4
        %v3397 = vsel %vm3379, %v3396, %v3395
        %v3398 = vrot.slane %v1890, 3
        %v3399 = vsel %vm3382, %v3398, %v3397
        %v3400 = vrot.slane %v1920, 2
        %v3401 = vsel %vm3385, %v3400, %v3399
        %v3402 = vrot.slane %v1950, 1
        %v3403 = vsel %vm3388, %v3402, %v3401
        %v3406 = vadd.f32 %v3354, %v3389
        %v3407 = vadd.f32 %v3355, %v3403
        %vm3408 = vcmp.gt.f32.partialorder %v3406, 0.0
        %vm3409 = vcmp.gt.f32.partialorder %v3407, 0.0
        %v3410 = vmul.f32 %v3406, 0.2
        %v3411 = vmul.f32 %v3407, 0.2
        %v3412 = vsel %vm3408, %v3406, %v3410
        %v3413 = vsel %vm3409, %v3407, %v3411
        %v3414 = vpack.c.bf16 %v3413, %v3412
        %v3416 = vsel %vm1391, %v3414, 0
        %3418 = vmatpush.bf16.msra.mxu0 0
        %3419 = vmatpush.bf16.msra.mxu0 0
        %3420 = vmatpush.bf16.msra.mxu0 0
        %3421 = vmatpush.bf16.msra.mxu0 0
        %3422 = vmatpush.bf16.msra.mxu0 0
        %3423 = vmatpush.bf16.msra.mxu0 0
        %3424 = vmatpush.bf16.msra.mxu0 %v2570
        %3425 = vmatpush.bf16.msra.mxu0 %v2569
        %3426 = vmatmul.bf16.gmra.mxu0 %v3416
        %v3427 = vpop.f32.mrf.mxu0
        %v3428 = vadd.f32 0.0, %v3427
        %v3429 = vpop.f32.mrf.mxu0
        %v3430 = vadd.f32 0.0, %v3429
        %3431 = vdwg.mxu0
        %v3432 = vrot.slane %v1417, 1
        %v3433 = vrot.slane %v1417, 2
        %v3434 = vrot.slane %v1417, 3
        %v3435 = vrot.slane %v1417, 4
        %v3436 = vrot.slane %v1417, 5
        %v3437 = vrot.slane %v1417, 6
        %v3438 = vrot.slane %v1417, 7
        %v3439 = vrot.slane %v1418, 1
        %v3440 = vrot.slane %v1418, 2
        %v3441 = vrot.slane %v1418, 3
        %v3442 = vrot.slane %v1418, 4
        %v3443 = vrot.slane %v1418, 5
        %v3444 = vrot.slane %v1418, 6
        %v3445 = vrot.slane %v1418, 7
        %vm3446 = vcmp.ne.s32.totalorder %v3432, 0
        %vm3447 = vcmp.ne.s32.totalorder %v3433, 0
        %vm3448 = vcmp.ne.s32.totalorder %v3434, 0
        %vm3449 = vcmp.ne.s32.totalorder %v3435, 0
        %vm3450 = vcmp.ne.s32.totalorder %v3436, 0
        %vm3451 = vcmp.ne.s32.totalorder %v3437, 0
        %vm3452 = vcmp.ne.s32.totalorder %v3438, 0
        %vm3453 = vcmp.ne.s32.totalorder %v3439, 0
        %vm3454 = vcmp.ne.s32.totalorder %v3440, 0
        %vm3455 = vcmp.ne.s32.totalorder %v3441, 0
        %vm3456 = vcmp.ne.s32.totalorder %v3442, 0
        %vm3457 = vcmp.ne.s32.totalorder %v3443, 0
        %vm3458 = vcmp.ne.s32.totalorder %v3444, 0
        %vm3459 = vcmp.ne.s32.totalorder %v3445, 0
        %v3460 = vperm.slane %v3428, 0
        %v3461 = vlaneseq
        %v3462 = vshrl.u32 %v3461, 7
        %3464 = vset.pattern.permute.xlu0 %v3462
        %3465 = vperm.xlu0 %3464, %v3460
        %v3466 = vpop.permute.xlu0 %3465
        %v3467 = vperm.slane %v3428, 1
        %v3468 = vlaneseq
        %v3469 = vshrl.u32 %v3468, 7
        %3471 = vset.pattern.permute.xlu0 %v3469
        %3472 = vperm.xlu0 %3471, %v3467
        %v3473 = vpop.permute.xlu0 %3472
        %v3474 = vperm.slane %v3428, 2
        %v3475 = vlaneseq
        %v3476 = vshrl.u32 %v3475, 7
        %3478 = vset.pattern.permute.xlu0 %v3476
        %3479 = vperm.xlu0 %3478, %v3474
        %v3480 = vpop.permute.xlu0 %3479
        %v3481 = vperm.slane %v3428, 3
        %v3482 = vlaneseq
        %v3483 = vshrl.u32 %v3482, 7
        %3485 = vset.pattern.permute.xlu0 %v3483
        %3486 = vperm.xlu0 %3485, %v3481
        %v3487 = vpop.permute.xlu0 %3486
        %v3488 = vperm.slane %v3428, 4
        %v3489 = vlaneseq
        %v3490 = vshrl.u32 %v3489, 7
        %3492 = vset.pattern.permute.xlu0 %v3490
        %3493 = vperm.xlu0 %3492, %v3488
        %v3494 = vpop.permute.xlu0 %3493
        %v3495 = vperm.slane %v3428, 5
        %v3496 = vlaneseq
        %v3497 = vshrl.u32 %v3496, 7
        %3499 = vset.pattern.permute.xlu0 %v3497
        %3500 = vperm.xlu0 %3499, %v3495
        %v3501 = vpop.permute.xlu0 %3500
        %v3502 = vperm.slane %v3428, 6
        %v3503 = vlaneseq
        %v3504 = vshrl.u32 %v3503, 7
        %3506 = vset.pattern.permute.xlu0 %v3504
        %3507 = vperm.xlu0 %3506, %v3502
        %v3508 = vpop.permute.xlu0 %3507
        %v3509 = vperm.slane %v3428, 7
        %v3510 = vlaneseq
        %v3511 = vshrl.u32 %v3510, 7
        %3513 = vset.pattern.permute.xlu0 %v3511
        %3514 = vperm.xlu0 %3513, %v3509
        %v3515 = vpop.permute.xlu0 %3514
        %v3516 = vperm.slane %v3430, 0
        %v3517 = vlaneseq
        %v3518 = vshrl.u32 %v3517, 7
        %3520 = vset.pattern.permute.xlu0 %v3518
        %3521 = vperm.xlu0 %3520, %v3516
        %v3522 = vpop.permute.xlu0 %3521
        %v3523 = vperm.slane %v3430, 1
        %v3524 = vlaneseq
        %v3525 = vshrl.u32 %v3524, 7
        %3527 = vset.pattern.permute.xlu0 %v3525
        %3528 = vperm.xlu0 %3527, %v3523
        %v3529 = vpop.permute.xlu0 %3528
        %v3530 = vperm.slane %v3430, 2
        %v3531 = vlaneseq
        %v3532 = vshrl.u32 %v3531, 7
        %3534 = vset.pattern.permute.xlu0 %v3532
        %3535 = vperm.xlu0 %3534, %v3530
        %v3536 = vpop.permute.xlu0 %3535
        %v3537 = vperm.slane %v3430, 3
        %v3538 = vlaneseq
        %v3539 = vshrl.u32 %v3538, 7
        %3541 = vset.pattern.permute.xlu0 %v3539
        %3542 = vperm.xlu0 %3541, %v3537
        %v3543 = vpop.permute.xlu0 %3542
        %v3544 = vperm.slane %v3430, 4
        %v3545 = vlaneseq
        %v3546 = vshrl.u32 %v3545, 7
        %3548 = vset.pattern.permute.xlu0 %v3546
        %3549 = vperm.xlu0 %3548, %v3544
        %v3550 = vpop.permute.xlu0 %3549
        %v3551 = vperm.slane %v3430, 5
        %v3552 = vlaneseq
        %v3553 = vshrl.u32 %v3552, 7
        %3555 = vset.pattern.permute.xlu0 %v3553
        %3556 = vperm.xlu0 %3555, %v3551
        %v3557 = vpop.permute.xlu0 %3556
        %v3558 = vperm.slane %v3430, 6
        %v3559 = vlaneseq
        %v3560 = vshrl.u32 %v3559, 7
        %3562 = vset.pattern.permute.xlu0 %v3560
        %3563 = vperm.xlu0 %3562, %v3558
        %v3564 = vpop.permute.xlu0 %3563
        %v3565 = vperm.slane %v3430, 7
        %v3566 = vlaneseq
        %v3567 = vshrl.u32 %v3566, 7
        %3569 = vset.pattern.permute.xlu0 %v3567
        %3570 = vperm.xlu0 %3569, %v3565
        %v3571 = vpop.permute.xlu0 %3570
        %v3572 = vsel %vm3446, 1, 0
        %v3573 = vsel %vm3447, 1, 0
        %v3574 = vsel %vm3448, 1, 0
        %v3575 = vsel %vm3449, 1, 0
        %v3576 = vsel %vm3450, 1, 0
        %v3577 = vsel %vm3451, 1, 0
        %v3578 = vsel %vm3452, 1, 0
        %v3579 = vsel %vm3453, 1, 0
        %v3580 = vsel %vm3454, 1, 0
        %v3581 = vsel %vm3455, 1, 0
        %v3582 = vsel %vm3456, 1, 0
        %v3583 = vsel %vm3457, 1, 0
        %v3584 = vsel %vm3458, 1, 0
        %v3585 = vsel %vm3459, 1, 0
        %v3586 = vperm.slane %v1417, 0
        %v3587 = vperm.slane %v3572, 0
        %v3588 = vperm.slane %v3573, 0
        %v3589 = vperm.slane %v3574, 0
        %v3590 = vperm.slane %v3575, 0
        %v3591 = vperm.slane %v3576, 0
        %v3592 = vperm.slane %v3577, 0
        %v3593 = vperm.slane %v3578, 0
        %v3594 = vperm.slane %v1418, 0
        %v3595 = vperm.slane %v3579, 0
        %v3596 = vperm.slane %v3580, 0
        %v3597 = vperm.slane %v3581, 0
        %v3598 = vperm.slane %v3582, 0
        %v3599 = vperm.slane %v3583, 0
        %v3600 = vperm.slane %v3584, 0
        %v3601 = vperm.slane %v3585, 0
        %vm3602 = vcmp.eq.s32.totalorder %v3586, 1
        %vm3603 = vcmp.eq.s32.totalorder %v3587, 1
        %vm3604 = vcmp.eq.s32.totalorder %v3588, 1
        %vm3605 = vcmp.eq.s32.totalorder %v3589, 1
        %vm3606 = vcmp.eq.s32.totalorder %v3590, 1
        %vm3607 = vcmp.eq.s32.totalorder %v3591, 1
        %vm3608 = vcmp.eq.s32.totalorder %v3592, 1
        %vm3609 = vcmp.eq.s32.totalorder %v3593, 1
        %vm3610 = vcmp.eq.s32.totalorder %v3594, 1
        %vm3611 = vcmp.eq.s32.totalorder %v3595, 1
        %vm3612 = vcmp.eq.s32.totalorder %v3596, 1
        %vm3613 = vcmp.eq.s32.totalorder %v3597, 1
        %vm3614 = vcmp.eq.s32.totalorder %v3598, 1
        %vm3615 = vcmp.eq.s32.totalorder %v3599, 1
        %vm3616 = vcmp.eq.s32.totalorder %v3600, 1
        %vm3617 = vcmp.eq.s32.totalorder %v3601, 1
        %v3618 = vsel %vm3602, %v3466, %v2854
        %v3619 = vsel %vm3603, %v3473, %v2886
        %v3620 = vsel %vm3604, %v3480, %v2918
        %v3621 = vsel %vm3605, %v3487, %v2950
        %v3622 = vsel %vm3606, %v3494, %v2982
        %v3623 = vsel %vm3607, %v3501, %v3014
        %v3624 = vsel %vm3608, %v3508, %v3046
        %v3625 = vsel %vm3609, %v3515, %v3078
        %v3626 = vsel %vm3610, %v3522, %v3110
        %v3627 = vsel %vm3611, %v3529, %v3142
        %v3628 = vsel %vm3612, %v3536, %v3174
        %v3629 = vsel %vm3613, %v3543, %v3206
        %v3630 = vsel %vm3614, %v3550, %v3238
        %v3631 = vsel %vm3615, %v3557, %v3270
        %v3632 = vsel %vm3616, %v3564, %v3302
        %v3633 = vsel %vm3617, %v3571, %v3334
        %v3636 = vrot.slane %v1421, 1
        %v3637 = vrot.slane %v1421, 2
        %v3638 = vrot.slane %v1421, 3
        %v3639 = vrot.slane %v1421, 4
        %v3640 = vrot.slane %v1421, 5
        %v3641 = vrot.slane %v1421, 6
        %v3642 = vrot.slane %v1421, 7
        %v3643 = vrot.slane %v1422, 1
        %v3644 = vrot.slane %v1422, 2
        %v3645 = vrot.slane %v1422, 3
        %v3646 = vrot.slane %v1422, 4
        %v3647 = vrot.slane %v1422, 5
        %v3648 = vrot.slane %v1422, 6
        %v3649 = vrot.slane %v1422, 7
        %vm3664 = vcmp.gt.f32.partialorder %v1421, 0.0
        %vm3665 = vcmp.gt.f32.partialorder %v3636, 0.0
        %vm3666 = vcmp.gt.f32.partialorder %v3637, 0.0
        %vm3667 = vcmp.gt.f32.partialorder %v3638, 0.0
        %vm3668 = vcmp.gt.f32.partialorder %v3639, 0.0
        %vm3669 = vcmp.gt.f32.partialorder %v3640, 0.0
        %vm3670 = vcmp.gt.f32.partialorder %v3641, 0.0
        %vm3671 = vcmp.gt.f32.partialorder %v3642, 0.0
        %vm3672 = vcmp.gt.f32.partialorder %v1422, 0.0
        %vm3673 = vcmp.gt.f32.partialorder %v3643, 0.0
        %vm3674 = vcmp.gt.f32.partialorder %v3644, 0.0
        %vm3675 = vcmp.gt.f32.partialorder %v3645, 0.0
        %vm3676 = vcmp.gt.f32.partialorder %v3646, 0.0
        %vm3677 = vcmp.gt.f32.partialorder %v3647, 0.0
        %vm3678 = vcmp.gt.f32.partialorder %v3648, 0.0
        %vm3679 = vcmp.gt.f32.partialorder %v3649, 0.0
        %v3680 = vsel %vm3664, 1, 0
        %v3681 = vsel %vm3665, 1, 0
        %v3682 = vsel %vm3666, 1, 0
        %v3683 = vsel %vm3667, 1, 0
        %v3684 = vsel %vm3668, 1, 0
        %v3685 = vsel %vm3669, 1, 0
        %v3686 = vsel %vm3670, 1, 0
        %v3687 = vsel %vm3671, 1, 0
        %v3688 = vsel %vm3672, 1, 0
        %v3689 = vsel %vm3673, 1, 0
        %v3690 = vsel %vm3674, 1, 0
        %v3691 = vsel %vm3675, 1, 0
        %v3692 = vsel %vm3676, 1, 0
        %v3693 = vsel %vm3677, 1, 0
        %v3694 = vsel %vm3678, 1, 0
        %v3695 = vsel %vm3679, 1, 0
        %v3696 = vperm.slane %v3680, 0
        %v3697 = vperm.slane %v3681, 0
        %v3698 = vperm.slane %v3682, 0
        %v3699 = vperm.slane %v3683, 0
        %v3700 = vperm.slane %v3684, 0
        %v3701 = vperm.slane %v3685, 0
        %v3702 = vperm.slane %v3686, 0
        %v3703 = vperm.slane %v3687, 0
        %v3704 = vperm.slane %v3688, 0
        %v3705 = vperm.slane %v3689, 0
        %v3706 = vperm.slane %v3690, 0
        %v3707 = vperm.slane %v3691, 0
        %v3708 = vperm.slane %v3692, 0
        %v3709 = vperm.slane %v3693, 0
        %v3710 = vperm.slane %v3694, 0
        %v3711 = vperm.slane %v3695, 0
        %vm3712 = vcmp.eq.s32.totalorder %v3696, 1
        %vm3713 = vcmp.eq.s32.totalorder %v3697, 1
        %vm3714 = vcmp.eq.s32.totalorder %v3698, 1
        %vm3715 = vcmp.eq.s32.totalorder %v3699, 1
        %vm3716 = vcmp.eq.s32.totalorder %v3700, 1
        %vm3717 = vcmp.eq.s32.totalorder %v3701, 1
        %vm3718 = vcmp.eq.s32.totalorder %v3702, 1
        %vm3719 = vcmp.eq.s32.totalorder %v3703, 1
        %vm3720 = vcmp.eq.s32.totalorder %v3704, 1
        %vm3721 = vcmp.eq.s32.totalorder %v3705, 1
        %vm3722 = vcmp.eq.s32.totalorder %v3706, 1
        %vm3723 = vcmp.eq.s32.totalorder %v3707, 1
        %vm3724 = vcmp.eq.s32.totalorder %v3708, 1
        %vm3725 = vcmp.eq.s32.totalorder %v3709, 1
        %vm3726 = vcmp.eq.s32.totalorder %v3710, 1
        %vm3727 = vcmp.eq.s32.totalorder %v3711, 1
        %v3728 = vsel %vm3712, %v3618, -1e+30
        %v3729 = vsel %vm3713, %v3619, -1e+30
        %v3730 = vsel %vm3714, %v3620, -1e+30
        %v3731 = vsel %vm3715, %v3621, -1e+30
        %v3732 = vsel %vm3716, %v3622, -1e+30
        %v3733 = vsel %vm3717, %v3623, -1e+30
        %v3734 = vsel %vm3718, %v3624, -1e+30
        %v3735 = vsel %vm3719, %v3625, -1e+30
        %v3736 = vsel %vm3720, %v3626, -1e+30
        %v3737 = vsel %vm3721, %v3627, -1e+30
        %v3738 = vsel %vm3722, %v3628, -1e+30
        %v3739 = vsel %vm3723, %v3629, -1e+30
        %v3740 = vsel %vm3724, %v3630, -1e+30
        %v3741 = vsel %vm3725, %v3631, -1e+30
        %v3742 = vsel %vm3726, %v3632, -1e+30
        %v3743 = vsel %vm3727, %v3633, -1e+30
        %vm3744 = vcmask 257024
        %v3745 = vsel %vm3744, %v3728, -inf
        %3746 = vmax.xlane.f32.xlu0 %v3745
        %v3747 = vpop.xlane.xlu0 %3746
        %v3748 = vsel %vm3744, %v3729, -inf
        %3749 = vmax.xlane.f32.xlu0 %v3748
        %v3750 = vpop.xlane.xlu0 %3749
        %v3751 = vsel %vm3744, %v3730, -inf
        %3752 = vmax.xlane.f32.xlu0 %v3751
        %v3753 = vpop.xlane.xlu0 %3752
        %v3754 = vsel %vm3744, %v3731, -inf
        %3755 = vmax.xlane.f32.xlu0 %v3754
        %v3756 = vpop.xlane.xlu0 %3755
        %v3757 = vsel %vm3744, %v3732, -inf
        %3758 = vmax.xlane.f32.xlu0 %v3757
        %v3759 = vpop.xlane.xlu0 %3758
        %v3760 = vsel %vm3744, %v3733, -inf
        %3761 = vmax.xlane.f32.xlu0 %v3760
        %v3762 = vpop.xlane.xlu0 %3761
        %v3763 = vsel %vm3744, %v3734, -inf
        %3764 = vmax.xlane.f32.xlu0 %v3763
        %v3765 = vpop.xlane.xlu0 %3764
        %v3766 = vsel %vm3744, %v3735, -inf
        %3767 = vmax.xlane.f32.xlu0 %v3766
        %v3768 = vpop.xlane.xlu0 %3767
        %v3769 = vsel %vm3744, %v3736, -inf
        %3770 = vmax.xlane.f32.xlu0 %v3769
        %v3771 = vpop.xlane.xlu0 %3770
        %v3772 = vsel %vm3744, %v3737, -inf
        %3773 = vmax.xlane.f32.xlu0 %v3772
        %v3774 = vpop.xlane.xlu0 %3773
        %v3775 = vsel %vm3744, %v3738, -inf
        %3776 = vmax.xlane.f32.xlu0 %v3775
        %v3777 = vpop.xlane.xlu0 %3776
        %v3778 = vsel %vm3744, %v3739, -inf
        %3779 = vmax.xlane.f32.xlu0 %v3778
        %v3780 = vpop.xlane.xlu0 %3779
        %v3781 = vsel %vm3744, %v3740, -inf
        %3782 = vmax.xlane.f32.xlu0 %v3781
        %v3783 = vpop.xlane.xlu0 %3782
        %v3784 = vsel %vm3744, %v3741, -inf
        %3785 = vmax.xlane.f32.xlu0 %v3784
        %v3786 = vpop.xlane.xlu0 %3785
        %v3787 = vsel %vm3744, %v3742, -inf
        %3788 = vmax.xlane.f32.xlu0 %v3787
        %v3789 = vpop.xlane.xlu0 %3788
        %v3790 = vsel %vm3744, %v3743, -inf
        %3791 = vmax.xlane.f32.xlu0 %v3790
        %v3792 = vpop.xlane.xlu0 %3791
        %v3793 = vsub.f32 %v3728, %v3747
        %v3794 = vsub.f32 %v3729, %v3750
        %v3795 = vsub.f32 %v3730, %v3753
        %v3796 = vsub.f32 %v3731, %v3756
        %v3797 = vsub.f32 %v3732, %v3759
        %v3798 = vsub.f32 %v3733, %v3762
        %v3799 = vsub.f32 %v3734, %v3765
        %v3800 = vsub.f32 %v3735, %v3768
        %v3801 = vsub.f32 %v3736, %v3771
        %v3802 = vsub.f32 %v3737, %v3774
        %v3803 = vsub.f32 %v3738, %v3777
        %v3804 = vsub.f32 %v3739, %v3780
        %v3805 = vsub.f32 %v3740, %v3783
        %v3806 = vsub.f32 %v3741, %v3786
        %v3807 = vsub.f32 %v3742, %v3789
        %v3808 = vsub.f32 %v3743, %v3792
        %v3809 = vmul.f32 %v3793, 1.442695
        %v3810 = vpow.pop %v3809
        %v3811 = vmul.f32 %v3794, 1.442695
        %v3812 = vpow.pop %v3811
        %v3813 = vmul.f32 %v3795, 1.442695
        %v3814 = vpow.pop %v3813
        %v3815 = vmul.f32 %v3796, 1.442695
        %v3816 = vpow.pop %v3815
        %v3817 = vmul.f32 %v3797, 1.442695
        %v3818 = vpow.pop %v3817
        %v3819 = vmul.f32 %v3798, 1.442695
        %v3820 = vpow.pop %v3819
        %v3821 = vmul.f32 %v3799, 1.442695
        %v3822 = vpow.pop %v3821
        %v3823 = vmul.f32 %v3800, 1.442695
        %v3824 = vpow.pop %v3823
        %v3825 = vmul.f32 %v3801, 1.442695
        %v3826 = vpow.pop %v3825
        %v3827 = vmul.f32 %v3802, 1.442695
        %v3828 = vpow.pop %v3827
        %v3829 = vmul.f32 %v3803, 1.442695
        %v3830 = vpow.pop %v3829
        %v3831 = vmul.f32 %v3804, 1.442695
        %v3832 = vpow.pop %v3831
        %v3833 = vmul.f32 %v3805, 1.442695
        %v3834 = vpow.pop %v3833
        %v3835 = vmul.f32 %v3806, 1.442695
        %v3836 = vpow.pop %v3835
        %v3837 = vmul.f32 %v3807, 1.442695
        %v3838 = vpow.pop %v3837
        %v3839 = vmul.f32 %v3808, 1.442695
        %v3840 = vpow.pop %v3839
        %v3841 = vperm.slane %v1421, 0
        %v3842 = vperm.slane %v3636, 0
        %v3843 = vperm.slane %v3637, 0
        %v3844 = vperm.slane %v3638, 0
        %v3845 = vperm.slane %v3639, 0
        %v3846 = vperm.slane %v3640, 0
        %v3847 = vperm.slane %v3641, 0
        %v3848 = vperm.slane %v3642, 0
        %v3849 = vperm.slane %v1422, 0
        %v3850 = vperm.slane %v3643, 0
        %v3851 = vperm.slane %v3644, 0
        %v3852 = vperm.slane %v3645, 0
        %v3853 = vperm.slane %v3646, 0
        %v3854 = vperm.slane %v3647, 0
        %v3855 = vperm.slane %v3648, 0
        %v3856 = vperm.slane %v3649, 0
        %v3873 = vmul.f32 %v3810, %v3841
        %v3874 = vmul.f32 %v3812, %v3842
        %v3875 = vmul.f32 %v3814, %v3843
        %v3876 = vmul.f32 %v3816, %v3844
        %v3877 = vmul.f32 %v3818, %v3845
        %v3878 = vmul.f32 %v3820, %v3846
        %v3879 = vmul.f32 %v3822, %v3847
        %v3880 = vmul.f32 %v3824, %v3848
        %v3881 = vmul.f32 %v3826, %v3849
        %v3882 = vmul.f32 %v3828, %v3850
        %v3883 = vmul.f32 %v3830, %v3851
        %v3884 = vmul.f32 %v3832, %v3852
        %v3885 = vmul.f32 %v3834, %v3853
        %v3886 = vmul.f32 %v3836, %v3854
        %v3887 = vmul.f32 %v3838, %v3855
        %v3888 = vmul.f32 %v3840, %v3856
        %v3889 = vsel %vm3744, %v3873, 0.0
        %3890 = vadd.xlane.f32.xlu0 %v3889
        %v3891 = vpop.xlane.xlu0 %3890
        %v3892 = vsel %vm3744, %v3874, 0.0
        %3893 = vadd.xlane.f32.xlu0 %v3892
        %v3894 = vpop.xlane.xlu0 %3893
        %v3895 = vsel %vm3744, %v3875, 0.0
        %3896 = vadd.xlane.f32.xlu0 %v3895
        %v3897 = vpop.xlane.xlu0 %3896
        %v3898 = vsel %vm3744, %v3876, 0.0
        %3899 = vadd.xlane.f32.xlu0 %v3898
        %v3900 = vpop.xlane.xlu0 %3899
        %v3901 = vsel %vm3744, %v3877, 0.0
        %3902 = vadd.xlane.f32.xlu0 %v3901
        %v3903 = vpop.xlane.xlu0 %3902
        %v3904 = vsel %vm3744, %v3878, 0.0
        %3905 = vadd.xlane.f32.xlu0 %v3904
        %v3906 = vpop.xlane.xlu0 %3905
        %v3907 = vsel %vm3744, %v3879, 0.0
        %3908 = vadd.xlane.f32.xlu0 %v3907
        %v3909 = vpop.xlane.xlu0 %3908
        %v3910 = vsel %vm3744, %v3880, 0.0
        %3911 = vadd.xlane.f32.xlu0 %v3910
        %v3912 = vpop.xlane.xlu0 %3911
        %v3913 = vsel %vm3744, %v3881, 0.0
        %3914 = vadd.xlane.f32.xlu0 %v3913
        %v3915 = vpop.xlane.xlu0 %3914
        %v3916 = vsel %vm3744, %v3882, 0.0
        %3917 = vadd.xlane.f32.xlu0 %v3916
        %v3918 = vpop.xlane.xlu0 %3917
        %v3919 = vsel %vm3744, %v3883, 0.0
        %3920 = vadd.xlane.f32.xlu0 %v3919
        %v3921 = vpop.xlane.xlu0 %3920
        %v3922 = vsel %vm3744, %v3884, 0.0
        %3923 = vadd.xlane.f32.xlu0 %v3922
        %v3924 = vpop.xlane.xlu0 %3923
        %v3925 = vsel %vm3744, %v3885, 0.0
        %3926 = vadd.xlane.f32.xlu0 %v3925
        %v3927 = vpop.xlane.xlu0 %3926
        %v3928 = vsel %vm3744, %v3886, 0.0
        %3929 = vadd.xlane.f32.xlu0 %v3928
        %v3930 = vpop.xlane.xlu0 %3929
        %v3931 = vsel %vm3744, %v3887, 0.0
        %3932 = vadd.xlane.f32.xlu0 %v3931
        %v3933 = vpop.xlane.xlu0 %3932
        %v3934 = vsel %vm3744, %v3888, 0.0
        %3935 = vadd.xlane.f32.xlu0 %v3934
        %v3936 = vpop.xlane.xlu0 %3935
        %v3937 = vrcp.pop %v3891
        %v3938 = vrcp.pop %v3894
        %v3939 = vrcp.pop %v3897
        %v3940 = vrcp.pop %v3900
        %v3941 = vrcp.pop %v3903
        %v3942 = vrcp.pop %v3906
        %v3943 = vrcp.pop %v3909
        %v3944 = vrcp.pop %v3912
        %v3945 = vrcp.pop %v3915
        %v3946 = vrcp.pop %v3918
        %v3947 = vrcp.pop %v3921
        %v3948 = vrcp.pop %v3924
        %v3949 = vrcp.pop %v3927
        %v3950 = vrcp.pop %v3930
        %v3951 = vrcp.pop %v3933
        %v3952 = vrcp.pop %v3936
        %v3953 = vmul.f32 %v3873, %v3937
        %v3954 = vmul.f32 %v3874, %v3938
        %v3955 = vmul.f32 %v3875, %v3939
        %v3956 = vmul.f32 %v3876, %v3940
        %v3957 = vmul.f32 %v3877, %v3941
        %v3958 = vmul.f32 %v3878, %v3942
        %v3959 = vmul.f32 %v3879, %v3943
        %v3960 = vmul.f32 %v3880, %v3944
        %v3961 = vmul.f32 %v3881, %v3945
        %v3962 = vmul.f32 %v3882, %v3946
        %v3963 = vmul.f32 %v3883, %v3947
        %v3964 = vmul.f32 %v3884, %v3948
        %v3965 = vmul.f32 %v3885, %v3949
        %v3966 = vmul.f32 %v3886, %v3950
        %v3967 = vmul.f32 %v3887, %v3951
        %v3968 = vmul.f32 %v3888, %v3952
        %v3969 = vpack.c.bf16 %v3953, %v3953
        %v3970 = vpack.c.bf16 %v3954, %v3954
        %v3971 = vpack.c.bf16 %v3955, %v3955
        %v3972 = vpack.c.bf16 %v3956, %v3956
        %v3973 = vpack.c.bf16 %v3957, %v3957
        %v3974 = vpack.c.bf16 %v3958, %v3958
        %v3975 = vpack.c.bf16 %v3959, %v3959
        %v3976 = vpack.c.bf16 %v3960, %v3960
        %v3977 = vpack.c.bf16 %v3961, %v3961
        %v3978 = vpack.c.bf16 %v3962, %v3962
        %v3979 = vpack.c.bf16 %v3963, %v3963
        %v3980 = vpack.c.bf16 %v3964, %v3964
        %v3981 = vpack.c.bf16 %v3965, %v3965
        %v3982 = vpack.c.bf16 %v3966, %v3966
        %v3983 = vpack.c.bf16 %v3967, %v3967
        %v3984 = vpack.c.bf16 %v3968, %v3968
        %v4001 = vunpack.c.l.b16 %v3969
        %v4002 = vunpack.c.l.b16 %v3970
        %v4003 = vunpack.c.l.b16 %v3971
        %v4004 = vunpack.c.l.b16 %v3972
        %v4005 = vunpack.c.l.b16 %v3973
        %v4006 = vunpack.c.l.b16 %v3974
        %v4007 = vunpack.c.l.b16 %v3975
        %v4008 = vunpack.c.l.b16 %v3976
        %v4009 = vunpack.c.l.b16 %v3977
        %v4010 = vunpack.c.l.b16 %v3978
        %v4011 = vunpack.c.l.b16 %v3979
        %v4012 = vunpack.c.l.b16 %v3980
        %v4013 = vunpack.c.l.b16 %v3981
        %v4014 = vunpack.c.l.b16 %v3982
        %v4015 = vunpack.c.l.b16 %v3983
        %v4016 = vunpack.c.l.b16 %v3984
        %v4017 = vpack.c.b16 %v4001, %v4001
        %v4018 = vpack.c.b16 %v4002, %v4002
        %v4019 = vpack.c.b16 %v4003, %v4003
        %v4020 = vpack.c.b16 %v4004, %v4004
        %v4021 = vpack.c.b16 %v4005, %v4005
        %v4022 = vpack.c.b16 %v4006, %v4006
        %v4023 = vpack.c.b16 %v4007, %v4007
        %v4024 = vpack.c.b16 %v4008, %v4008
        %v4025 = vpack.c.b16 %v4009, %v4009
        %v4026 = vpack.c.b16 %v4010, %v4010
        %v4027 = vpack.c.b16 %v4011, %v4011
        %v4028 = vpack.c.b16 %v4012, %v4012
        %v4029 = vpack.c.b16 %v4013, %v4013
        %v4030 = vpack.c.b16 %v4014, %v4014
        %v4031 = vpack.c.b16 %v4015, %v4015
        %v4032 = vpack.c.b16 %v4016, %v4016
        %v4033 = vunpack.c.l.b16 %v4017
        %v4034 = vunpack.c.l.b16 %v4018
        %v4035 = vunpack.c.l.b16 %v4019
        %v4036 = vunpack.c.l.b16 %v4020
        %v4037 = vunpack.c.l.b16 %v4021
        %v4038 = vunpack.c.l.b16 %v4022
        %v4039 = vunpack.c.l.b16 %v4023
        %v4040 = vunpack.c.l.b16 %v4024
        %v4041 = vunpack.c.l.b16 %v4025
        %v4042 = vunpack.c.l.b16 %v4026
        %v4043 = vunpack.c.l.b16 %v4027
        %v4044 = vunpack.c.l.b16 %v4028
        %v4045 = vunpack.c.l.b16 %v4029
        %v4046 = vunpack.c.l.b16 %v4030
        %v4047 = vunpack.c.l.b16 %v4031
        %v4048 = vunpack.c.l.b16 %v4032
        %v4049 = vrot.slane %v4034, 7
        %v4050 = vsel %vm1432, %v4049, %v4033
        %v4051 = vrot.slane %v4035, 6
        %v4052 = vsel %vm1436, %v4051, %v4050
        %v4053 = vrot.slane %v4036, 5
        %v4054 = vsel %vm1440, %v4053, %v4052
        %v4055 = vrot.slane %v4037, 4
        %v4056 = vsel %vm3379, %v4055, %v4054
        %v4057 = vrot.slane %v4038, 3
        %v4058 = vsel %vm3382, %v4057, %v4056
        %v4059 = vrot.slane %v4039, 2
        %v4060 = vsel %vm3385, %v4059, %v4058
        %v4061 = vrot.slane %v4040, 1
        %v4062 = vsel %vm3388, %v4061, %v4060
        %v4063 = vrot.slane %v4042, 7
        %v4064 = vsel %vm1432, %v4063, %v4041
        %v4065 = vrot.slane %v4043, 6
        %v4066 = vsel %vm1436, %v4065, %v4064
        %v4067 = vrot.slane %v4044, 5
        %v4068 = vsel %vm1440, %v4067, %v4066
        %v4069 = vrot.slane %v4045, 4
        %v4070 = vsel %vm3379, %v4069, %v4068
        %v4071 = vrot.slane %v4046, 3
        %v4072 = vsel %vm3382, %v4071, %v4070
        %v4073 = vrot.slane %v4047, 2
        %v4074 = vsel %vm3385, %v4073, %v4072
        %v4075 = vrot.slane %v4048, 1
        %v4076 = vsel %vm3388, %v4075, %v4074
        %v4077 = vpack.c.b16 %v4076, %v4062
        %v4082 = vunpack.c.l.b16 %v1957
        %v4083 = vunpack.c.l.b16 %v1958
        %v4084 = vunpack.c.l.b16 %v1959
        %v4085 = vunpack.c.l.b16 %v1960
        %v4086 = vpack.c.b16 %v4083, %v4082
        %v4087 = vpack.c.b16 %v4085, %v4084
        %v4091 = vsel %vm1391, %v4077, 0
        %4093 = vmatpush.bf16.msra.mxu0 0
        %4094 = vmatpush.bf16.msra.mxu0 0
        %4095 = vmatpush.bf16.msra.mxu0 0
        %4096 = vmatpush.bf16.msra.mxu0 0
        %4097 = vmatpush.bf16.msra.mxu0 0
        %4098 = vmatpush.bf16.msra.mxu0 0
        %4099 = vmatpush.bf16.msra.mxu0 %v4087
        %4100 = vmatpush.bf16.msra.mxu0 %v4086
        %4101 = vmatmul.bf16.gmra.mxu0 %v4091
        %v4102 = vpop.f32.mrf.mxu0
        %v4103 = vadd.f32 0.0, %v4102
        %v4104 = vpop.f32.mrf.mxu0
        %v4105 = vadd.f32 0.0, %v4104
        %4106 = vdwg.mxu0
        %v4107 = vrot.slane %v4033, 1
        %v4108 = vsel %vm1432, %v4034, %v4107
        %v4109 = vrot.slane %v4035, 7
        %v4110 = vsel %vm1436, %v4109, %v4108
        %v4111 = vrot.slane %v4036, 6
        %v4112 = vsel %vm1440, %v4111, %v4110
        %v4113 = vrot.slane %v4037, 5
        %v4114 = vsel %vm3379, %v4113, %v4112
        %v4115 = vrot.slane %v4038, 4
        %v4116 = vsel %vm3382, %v4115, %v4114
        %v4117 = vrot.slane %v4039, 3
        %v4118 = vsel %vm3385, %v4117, %v4116
        %v4119 = vrot.slane %v4040, 2
        %v4120 = vsel %vm3388, %v4119, %v4118
        %v4121 = vrot.slane %v4041, 1
        %v4122 = vsel %vm1432, %v4042, %v4121
        %v4123 = vrot.slane %v4043, 7
        %v4124 = vsel %vm1436, %v4123, %v4122
        %v4125 = vrot.slane %v4044, 6
        %v4126 = vsel %vm1440, %v4125, %v4124
        %v4127 = vrot.slane %v4045, 5
        %v4128 = vsel %vm3379, %v4127, %v4126
        %v4129 = vrot.slane %v4046, 4
        %v4130 = vsel %vm3382, %v4129, %v4128
        %v4131 = vrot.slane %v4047, 3
        %v4132 = vsel %vm3385, %v4131, %v4130
        %v4133 = vrot.slane %v4048, 2
        %v4134 = vsel %vm3388, %v4133, %v4132
        %v4135 = vpack.c.b16 %v4134, %v4120
        %4136 = vrot.lane.b32.xlu0 %v4086, 120
        %v4137 = vpop.permute.xlu0 %4136
        %4138 = vrot.lane.b32.xlu0 %v4087, 120
        %v4139 = vpop.permute.xlu0 %4138
        %v4143 = vsel %vm1391, %v4135, 0
        %4145 = vmatpush.bf16.msra.mxu0 0
        %4146 = vmatpush.bf16.msra.mxu0 0
        %4147 = vmatpush.bf16.msra.mxu0 0
        %4148 = vmatpush.bf16.msra.mxu0 0
        %4149 = vmatpush.bf16.msra.mxu0 0
        %4150 = vmatpush.bf16.msra.mxu0 0
        %4151 = vmatpush.bf16.msra.mxu0 %v4139
        %4152 = vmatpush.bf16.msra.mxu0 %v4137
        %4153 = vmatmul.bf16.gmra.mxu0 %v4143
        %v4154 = vpop.f32.mrf.mxu0
        %v4155 = vadd.f32 0.0, %v4154
        %v4156 = vpop.f32.mrf.mxu0
        %v4157 = vadd.f32 0.0, %v4156
        %4158 = vdwg.mxu0
        %v4159 = vrot.slane %v4033, 2
        %v4160 = vrot.slane %v4034, 1
        %v4161 = vsel %vm1432, %v4160, %v4159
        %v4162 = vsel %vm1436, %v4035, %v4161
        %v4163 = vrot.slane %v4036, 7
        %v4164 = vsel %vm1440, %v4163, %v4162
        %v4165 = vrot.slane %v4037, 6
        %v4166 = vsel %vm3379, %v4165, %v4164
        %v4167 = vrot.slane %v4038, 5
        %v4168 = vsel %vm3382, %v4167, %v4166
        %v4169 = vrot.slane %v4039, 4
        %v4170 = vsel %vm3385, %v4169, %v4168
        %v4171 = vrot.slane %v4040, 3
        %v4172 = vsel %vm3388, %v4171, %v4170
        %v4173 = vrot.slane %v4041, 2
        %v4174 = vrot.slane %v4042, 1
        %v4175 = vsel %vm1432, %v4174, %v4173
        %v4176 = vsel %vm1436, %v4043, %v4175
        %v4177 = vrot.slane %v4044, 7
        %v4178 = vsel %vm1440, %v4177, %v4176
        %v4179 = vrot.slane %v4045, 6
        %v4180 = vsel %vm3379, %v4179, %v4178
        %v4181 = vrot.slane %v4046, 5
        %v4182 = vsel %vm3382, %v4181, %v4180
        %v4183 = vrot.slane %v4047, 4
        %v4184 = vsel %vm3385, %v4183, %v4182
        %v4185 = vrot.slane %v4048, 3
        %v4186 = vsel %vm3388, %v4185, %v4184
        %v4187 = vpack.c.b16 %v4186, %v4172
        %4188 = vrot.lane.b32.xlu0 %v4086, 112
        %v4189 = vpop.permute.xlu0 %4188
        %4190 = vrot.lane.b32.xlu0 %v4087, 112
        %v4191 = vpop.permute.xlu0 %4190
        %v4195 = vsel %vm1391, %v4187, 0
        %4197 = vmatpush.bf16.msra.mxu0 0
        %4198 = vmatpush.bf16.msra.mxu0 0
        %4199 = vmatpush.bf16.msra.mxu0 0
        %4200 = vmatpush.bf16.msra.mxu0 0
        %4201 = vmatpush.bf16.msra.mxu0 0
        %4202 = vmatpush.bf16.msra.mxu0 0
        %4203 = vmatpush.bf16.msra.mxu0 %v4191
        %4204 = vmatpush.bf16.msra.mxu0 %v4189
        %4205 = vmatmul.bf16.gmra.mxu0 %v4195
        %v4206 = vpop.f32.mrf.mxu0
        %v4207 = vadd.f32 0.0, %v4206
        %v4208 = vpop.f32.mrf.mxu0
        %v4209 = vadd.f32 0.0, %v4208
        %4210 = vdwg.mxu0
        %v4211 = vrot.slane %v4033, 3
        %v4212 = vrot.slane %v4034, 2
        %v4213 = vsel %vm1432, %v4212, %v4211
        %v4214 = vrot.slane %v4035, 1
        %v4215 = vsel %vm1436, %v4214, %v4213
        %v4216 = vsel %vm1440, %v4036, %v4215
        %v4217 = vrot.slane %v4037, 7
        %v4218 = vsel %vm3379, %v4217, %v4216
        %v4219 = vrot.slane %v4038, 6
        %v4220 = vsel %vm3382, %v4219, %v4218
        %v4221 = vrot.slane %v4039, 5
        %v4222 = vsel %vm3385, %v4221, %v4220
        %v4223 = vrot.slane %v4040, 4
        %v4224 = vsel %vm3388, %v4223, %v4222
        %v4225 = vrot.slane %v4041, 3
        %v4226 = vrot.slane %v4042, 2
        %v4227 = vsel %vm1432, %v4226, %v4225
        %v4228 = vrot.slane %v4043, 1
        %v4229 = vsel %vm1436, %v4228, %v4227
        %v4230 = vsel %vm1440, %v4044, %v4229
        %v4231 = vrot.slane %v4045, 7
        %v4232 = vsel %vm3379, %v4231, %v4230
        %v4233 = vrot.slane %v4046, 6
        %v4234 = vsel %vm3382, %v4233, %v4232
        %v4235 = vrot.slane %v4047, 5
        %v4236 = vsel %vm3385, %v4235, %v4234
        %v4237 = vrot.slane %v4048, 4
        %v4238 = vsel %vm3388, %v4237, %v4236
        %v4239 = vpack.c.b16 %v4238, %v4224
        %4240 = vrot.lane.b32.xlu0 %v4086, 104
        %v4241 = vpop.permute.xlu0 %4240
        %4242 = vrot.lane.b32.xlu0 %v4087, 104
        %v4243 = vpop.permute.xlu0 %4242
        %v4247 = vsel %vm1391, %v4239, 0
        %4249 = vmatpush.bf16.msra.mxu0 0
        %4250 = vmatpush.bf16.msra.mxu0 0
        %4251 = vmatpush.bf16.msra.mxu0 0
        %4252 = vmatpush.bf16.msra.mxu0 0
        %4253 = vmatpush.bf16.msra.mxu0 0
        %4254 = vmatpush.bf16.msra.mxu0 0
        %4255 = vmatpush.bf16.msra.mxu0 %v4243
        %4256 = vmatpush.bf16.msra.mxu0 %v4241
        %4257 = vmatmul.bf16.gmra.mxu0 %v4247
        %v4258 = vpop.f32.mrf.mxu0
        %v4259 = vadd.f32 0.0, %v4258
        %v4260 = vpop.f32.mrf.mxu0
        %v4261 = vadd.f32 0.0, %v4260
        %4262 = vdwg.mxu0
        %4265 = vrot.lane.b32.xlu0 %v4155, 8
        %v4266 = vpop.permute.xlu0 %4265
        %4267 = vrot.lane.b32.xlu0 %v4157, 8
        %v4268 = vpop.permute.xlu0 %4267
        %4273 = vrot.lane.b32.xlu0 %v4207, 16
        %v4274 = vpop.permute.xlu0 %4273
        %4275 = vrot.lane.b32.xlu0 %v4209, 16
        %v4276 = vpop.permute.xlu0 %4275
        %4281 = vrot.lane.b32.xlu0 %v4259, 24
        %v4282 = vpop.permute.xlu0 %4281
        %4283 = vrot.lane.b32.xlu0 %v4261, 24
        %v4284 = vpop.permute.xlu0 %4283
        %v4287 = vsel %vm684, %v4103, %v4266
        %v4288 = vsel %vm684, %v4105, %v4268
        %vm4289 = vcmask 130048
        %v4290 = vsel %vm4289, %v4287, %v4274
        %v4291 = vsel %vm4289, %v4288, %v4276
        %vm4292 = vcmask 195584
        %v4293 = vsel %vm4292, %v4290, %v4282
        %v4294 = vsel %vm4292, %v4291, %v4284
        %v4295 = vld [vmem:[%s10] sm:$0x1]
        %v4297 = vperm.slane %v4295, 0
        %v4299 = vadd.f32 %v4293, %v4297
        %v4300 = vadd.f32 %v4294, %v4297
        %4301 = vst.msk [vmem:[%s428] sm:$0xff] %vm1391, %v4299
        %4302 = vst.msk [vmem:[%s428 + $0x8] sm:$0xff] %vm1391, %v4300
        %s4303 = sand.u32 %s284, 1
        %s4304 = scalar_lea.sflag [#allocation3], %s4303
        %s4305 = sand.u32 %s284, 1
        %s4306 = smul.addr %s4305, 16
        %s4307 = scalar_lea.vmem [#allocation2], %s4306
        // Predicated region
        $region65: #{tpu_custom_call.1} parent=63 // pred_check
          %p4308 = pneg %p294
        $region66: #{tpu_custom_call.1} parent=63 // pred_check_branch
          %4310 = sbr.rel (%p4308) target = $region68
        $region67: #{tpu_custom_call.1} parent=63 // pred_region
          %s4311 = smul.u32 2, %s25
          %4313 = vsyncadd %s4304, 0
          %s4314 = smul.addr %s4311, 8
          %s4315 = scalar_lea.hbm %s11, %s4314
          %s4316 = sshll.u32 %s4307, 4
          %s4317 = int_to_ptr.vmem [resolvable:$true] %s4316
          %s4318 = sshll.u32 %s4315, 4
          %s4319 = int_to_ptr.hbm [resolvable:$true] %s4318
          %4324 = dma.vmem_to_hbm [thread:$0]  %s4317, 256, %s4319, %s4304, 128, 128, 8
        $region68: #{tpu_custom_call.1} parent=63 // pred_fallthru
          _
      $region64: #{tpu_custom_call.1} parent=5 // pred_fallthru
        _
      %p4325 = scmp.le.s32.totalorder 2, %s20
      // Predicated region
      $region69: #{tpu_custom_call.1} parent=5 // pred_check
        %p4326 = pneg %p4325
      $region70: #{tpu_custom_call.1} parent=5 // pred_check_branch
        %4328 = sbr.rel (%p4326) target = $region72
      $region71: #{tpu_custom_call.1} parent=5 // pred_region
        %s4329 = ssub.s32 %s20, 2
        // Predicated region
        $region73: #{tpu_custom_call.1} parent=71 // pred_check
          %p4330 = pneg %p300
        $region74: #{tpu_custom_call.1} parent=71 // pred_check_branch
          %4332 = sbr.rel (%p4330) target = $region76
        $region75: #{tpu_custom_call.1} parent=71 // pred_region
          %s4333 = sand.u32 %s285, 1
          %s4334 = scalar_lea.sflag [#allocation3], %s4333
          %s4335 = sand.u32 %s285, 1
          %s4336 = smul.addr %s4335, 16
          %s4337 = scalar_lea.vmem [#allocation2], %s4336
          %4339 = dma.done %s4334, 256
        $region76: #{tpu_custom_call.1} parent=71 // pred_fallthru
          _
      $region72: #{tpu_custom_call.1} parent=5 // pred_fallthru
        _
    $region6: #{tpu_custom_call.1} parent=1 // loop_footer
      %s24 = sadd.s32 1, %s20
    $region7: #{tpu_custom_call.1} parent=1 // loop_footer_branch
      %19 = sbr.rel target = $region3
    $region8: #{tpu_custom_call.1} parent=1 // loop_exit
      _
    %4340 = vsyncpa [#allocation3], 1
    %s4341 = scalar_lea.sflag [#allocation3], 1
    %4342 = vsyncpa %s4341, 1

</llo_original>
